<compile_context>
chip_gen: v5e
topology: v5e:2x2
jax: 0.10.0
libtpu: 0.0.40
codegen_flags: <defaults>
</compile_context>

<pallas_src>
import functools

import jax
import jax.numpy as jnp
from jax import lax
from jax.experimental import pallas as pl
from jax.experimental.pallas import tpu as pltpu


# -----------------------------------------------------------------------------
# Kernel
# -----------------------------------------------------------------------------
def _upsampling_add_kernel(x_ref, uh_ref, uw_ref, w_ref, b_ref, skip_ref, o_ref,
                           *, tco, cin):
    """One (batch element, output-channel block) per grid step.

    x_ref    : (1, Cin, H, W)        low-res input feature map (whole image)
    uh_ref   : (2H, H)               bilinear row-upsample matrix
    uw_ref   : (W, 2W)               bilinear col-upsample matrix
    w_ref    : SMEM (Cout*Cin,)      1x1 conv weights with BN scale folded in
    b_ref    : SMEM (Cout,)          folded BN bias
    skip_ref : (1, tco, 2H, 2W)      skip connection block
    o_ref    : (1, tco, 2H, 2W)      output block
    """
    c_blk = pl.program_id(1)
    x = x_ref[0].astype(jnp.float32)       # (Cin, H, W)
    uh = uh_ref[...]                       # (2H, H)
    uw = uw_ref[...]                       # (W, 2W)

    # TODO(synk): for large Cin (>~32) an MXU matmul over channels would beat
    # these unrolled VPU FMAs; the decoder test sizes here are small.
    for co in range(tco):
        ch = c_blk * tco + co
        # --- 1x1 conv (+ folded BN scale): scalar-broadcast FMAs on the VPU ---
        acc = w_ref[ch * cin] * x[0]
        for ci in range(1, cin):
            acc = acc + w_ref[ch * cin + ci] * x[ci]        # (H, W) f32

        # --- bilinear 2x upsample (align_corners=False) via interp matmuls ---
        up = jnp.dot(acc, uw, preferred_element_type=jnp.float32)   # (H, 2W)
        up = jnp.dot(uh, up, preferred_element_type=jnp.float32)    # (2H, 2W)

        # --- folded BN bias + skip addition ---
        res = up + b_ref[ch] + skip_ref[0, co]
        o_ref[0, co] = res.astype(o_ref.dtype)


# -----------------------------------------------------------------------------
# Helpers / wrapper
# -----------------------------------------------------------------------------
def _bilinear_up2_matrix(size, dtype=jnp.float32):
    """(2*size, size) matrix U such that U @ v is the 2x bilinear upsample of v
    (matches nn.Upsample(scale_factor=2, mode='bilinear', align_corners=False))."""
    o = jnp.arange(2 * size, dtype=jnp.float32)
    src = jnp.maximum((o + 0.5) * 0.5 - 0.5, 0.0)
    j0 = jnp.floor(src)
    w1 = src - j0
    w0 = 1.0 - w1
    j0i = jnp.clip(j0.astype(jnp.int32), 0, size - 1)
    j1i = jnp.clip(j0.astype(jnp.int32) + 1, 0, size - 1)
    rows = jnp.arange(2 * size)
    u = jnp.zeros((2 * size, size), dtype)
    u = u.at[rows, j0i].add(w0.astype(dtype))
    u = u.at[rows, j1i].add(w1.astype(dtype))
    return u


@jax.jit
def upsampling_add(x, x_skip, conv_w, bn_gamma, bn_beta, bn_mean, bn_var):
    """Equivalent of UpsamplingAdd.forward (BatchNorm in eval / running-stats mode).

    x      : (N, Cin, H, W)
    x_skip : (N, Cout, 2H, 2W)
    conv_w : (Cout, Cin, 1, 1)
    returns: (N, Cout, 2H, 2W)  (NCHW throughout; no layout transposes)
    """
    eps = 1e-5
    n, cin, h, w = x.shape
    _, cout, hs, ws = x_skip.shape
    if (hs, ws) != (2 * h, 2 * w):
        # TODO(synk): general F.pad path (diffY/diffX != 0) not implemented; the
        # Decoder always uses skip spatial == 2 * input spatial.
        raise NotImplementedError("skip spatial size must equal 2x input spatial size")

    # Fold BN scale into the 1x1 conv weights; only the bias enters the kernel.
    scale = bn_gamma.astype(jnp.float32) / jnp.sqrt(bn_var.astype(jnp.float32) + eps)
    w_mat = conv_w[:, :, 0, 0].astype(jnp.float32) * scale[:, None]      # (Cout, Cin)
    bias = bn_beta.astype(jnp.float32) - bn_mean.astype(jnp.float32) * scale  # (Cout,)

    u_h = _bilinear_up2_matrix(h)         # (2H, H):  up = U_h @ y
    u_w = _bilinear_up2_matrix(w).T       # (W, 2W):  up = y @ U_w

    # Output-channel tile: largest divisor of Cout that is <= 8 (bounds VMEM per
    # grid step and gives the pipeline more than N steps).
    tco = 1
    for d in range(1, min(cout, 8) + 1):
        if cout % d == 0:
            tco = d

    kernel = functools.partial(_upsampling_add_kernel, tco=tco, cin=cin)
    out = pl.pallas_call(
        kernel,
        out_shape=jax.ShapeDtypeStruct((n, cout, 2 * h, 2 * w), x_skip.dtype),
        grid=(n, cout // tco),
        in_specs=[
            pl.BlockSpec((1, cin, h, w), lambda i, c: (i, 0, 0, 0)),   # resident across c
            pl.BlockSpec((2 * h, h), lambda i, c: (0, 0)),
            pl.BlockSpec((w, 2 * w), lambda i, c: (0, 0)),
            pl.BlockSpec(memory_space=pltpu.MemorySpace.SMEM),          # folded weights
            pl.BlockSpec(memory_space=pltpu.MemorySpace.SMEM),          # folded bias
            pl.BlockSpec((1, tco, 2 * h, 2 * w), lambda i, c: (i, c, 0, 0)),
        ],
        out_specs=pl.BlockSpec((1, tco, 2 * h, 2 * w), lambda i, c: (i, c, 0, 0)),
        compiler_params=pltpu.CompilerParams(
            dimension_semantics=("parallel", "parallel")),
    )(x, u_h, u_w, w_mat.reshape(-1), bias, x_skip)
    return out


# -----------------------------------------------------------------------------
# Pure-JAX reference (original op order: upsample -> conv -> BN -> add)
# -----------------------------------------------------------------------------
def _reference_upsampling_add(x, skip, conv_w, gamma, beta, mean, var, eps=1e-5):
    def up2(a, axis):
        s = a.shape[axis]
        prev = jnp.concatenate([lax.slice_in_dim(a, 0, 1, axis=axis),
                                lax.slice_in_dim(a, 0, s - 1, axis=axis)], axis=axis)
        nxt = jnp.concatenate([lax.slice_in_dim(a, 1, s, axis=axis),
                               lax.slice_in_dim(a, s - 1, s, axis=axis)], axis=axis)
        even = 0.25 * prev + 0.75 * a
        odd = 0.75 * a + 0.25 * nxt
        inter = jnp.stack([even, odd], axis=axis + 1)
        shp = list(a.shape)
        shp[axis] *= 2
        return inter.reshape(shp)

    up = up2(up2(x, 2), 3)                                    # (N, Cin, 2H, 2W)
    wmat = conv_w[:, :, 0, 0]
    y = jnp.einsum("oc,nchw->nohw", wmat, up)
    scale = gamma / jnp.sqrt(var + eps)
    bias = beta - mean * scale
    y = y * scale[None, :, None, None] + bias[None, :, None, None]
    return y + skip


# -----------------------------------------------------------------------------
# Main
# -----------------------------------------------------------------------------
if __name__ == "__main__":
    key = jax.random.PRNGKey(0)
    keys = iter(jax.random.split(key, 32))

    # Decoder-like upsampling chain (channels scaled down): 16 -> 8 -> 4 -> 4.
    n_batch, h0, w0 = 2, 8, 8
    stages = [(16, 8), (8, 4), (4, 4)]          # (Cin, Cout) per UpsamplingAdd

    x = jax.random.normal(next(keys), (n_batch, stages[0][0], h0, w0), jnp.float32)

    for si, (cin, cout) in enumerate(stages):
        h, w = x.shape[2], x.shape[3]
        skip = jax.random.normal(next(keys), (n_batch, cout, 2 * h, 2 * w), jnp.float32)
        conv_w = jax.random.normal(next(keys), (cout, cin, 1, 1), jnp.float32) * 0.1
        gamma = jax.random.normal(next(keys), (cout,), jnp.float32) * 0.1 + 1.0
        beta = jax.random.normal(next(keys), (cout,), jnp.float32) * 0.1
        mean = jax.random.normal(next(keys), (cout,), jnp.float32) * 0.1
        var = jax.random.uniform(next(keys), (cout,), jnp.float32, minval=0.5, maxval=1.5)

        out = upsampling_add(x, skip, conv_w, gamma, beta, mean, var)
        out = jax.block_until_ready(out)

        ref = _reference_upsampling_add(x, skip, conv_w, gamma, beta, mean, var)
        assert out.shape == (n_batch, cout, 2 * h, 2 * w)
        assert jnp.allclose(out, ref, rtol=1e-4, atol=1e-4), f"mismatch at stage {si}"

        x = out   # feed the decoder upsampling chain

    # TODO(synk): the ResNet-18 trunk of Decoder (7x7 stride-2 conv, bn1, relu,
    # layer1-3 residual blocks) is not implemented as Pallas kernels here.
    print("KERNEL_OK")
</pallas_src>

<mosaic_0001>
module attributes {stable_mosaic.version = 11 : i64} {
  func.func @_upsampling_add_kernel(%arg0: i32, %arg1: i32, %arg2: memref<1x16x8x8xf32, #tpu.memory_space<vmem>>, %arg3: memref<16x8xf32, #tpu.memory_space<vmem>>, %arg4: memref<8x16xf32, #tpu.memory_space<vmem>>, %arg5: memref<128xf32, #tpu.memory_space<smem>>, %arg6: memref<8xf32, #tpu.memory_space<smem>>, %arg7: memref<1x8x16x16xf32, #tpu.memory_space<vmem>>, %arg8: memref<1x8x16x16xf32, #tpu.memory_space<vmem>>) attributes {dimension_semantics = [#tpu.dimension_semantics<parallel>, #tpu.dimension_semantics<parallel>], iteration_bounds = array<i64: 2, 1>, scalar_prefetch = 0 : i64, scratch_operands = 0 : i64, tpu.core_type = #tpu.core_type<tc>, window_params = [{transform_indices = @transform_0, window_bounds = array<i64: 1, 16, 8, 8>}, {pipeline_mode = #tpu.pipeline_mode<synchronous>, transform_indices = @transform_1, window_bounds = array<i64: 16, 8>}, {pipeline_mode = #tpu.pipeline_mode<synchronous>, transform_indices = @transform_2, window_bounds = array<i64: 8, 16>}, {transform_indices = @transform_3, window_bounds = array<i64: 128>}, {transform_indices = @transform_4, window_bounds = array<i64: 8>}, {transform_indices = @transform_5, window_bounds = array<i64: 1, 8, 16, 16>}, {transform_indices = @transform_6, window_bounds = array<i64: 1, 8, 16, 16>}]} {
    %c0 = arith.constant 0 : index
    %c0_0 = arith.constant 0 : index
    %c0_1 = arith.constant 0 : index
    %c0_2 = arith.constant 0 : index
    %0 = vector.load %arg2[%c0, %c0_0, %c0_1, %c0_2] : memref<1x16x8x8xf32, #tpu.memory_space<vmem>>, vector<1x16x8x8xf32>
    %1 = vector.shape_cast %0 : vector<1x16x8x8xf32> to vector<16x8x8xf32>
    %c0_3 = arith.constant 0 : index
    %c0_4 = arith.constant 0 : index
    %2 = vector.load %arg3[%c0_3, %c0_4] : memref<16x8xf32, #tpu.memory_space<vmem>>, vector<16x8xf32>
    %c0_5 = arith.constant 0 : index
    %c0_6 = arith.constant 0 : index
    %3 = vector.load %arg4[%c0_5, %c0_6] : memref<8x16xf32, #tpu.memory_space<vmem>>, vector<8x16xf32>
    %c8_i32 = arith.constant 8 : i32
    %4 = arith.muli %arg1, %c8_i32 : i32
    %c0_i32 = arith.constant 0 : i32
    %5 = arith.addi %4, %c0_i32 : i32
    %c16_i32 = arith.constant 16 : i32
    %6 = arith.muli %5, %c16_i32 : i32
    %7 = arith.index_cast %6 : i32 to index
    %8 = memref.load %arg5[%7] : memref<128xf32, #tpu.memory_space<smem>>
    %9 = vector.extract_strided_slice %1 {offsets = [0, 0, 0], sizes = [1, 8, 8], strides = [1, 1, 1]} : vector<16x8x8xf32> to vector<1x8x8xf32>
    %10 = vector.shape_cast %9 : vector<1x8x8xf32> to vector<8x8xf32>
    %11 = vector.broadcast %8 : f32 to vector<8x8xf32>
    %12 = arith.mulf %11, %10 : vector<8x8xf32>
    %c16_i32_7 = arith.constant 16 : i32
    %13 = arith.muli %5, %c16_i32_7 : i32
    %c1_i32 = arith.constant 1 : i32
    %14 = arith.addi %13, %c1_i32 : i32
    %15 = arith.index_cast %14 : i32 to index
    %16 = memref.load %arg5[%15] : memref<128xf32, #tpu.memory_space<smem>>
    %17 = vector.extract_strided_slice %1 {offsets = [1, 0, 0], sizes = [1, 8, 8], strides = [1, 1, 1]} : vector<16x8x8xf32> to vector<1x8x8xf32>
    %18 = vector.shape_cast %17 : vector<1x8x8xf32> to vector<8x8xf32>
    %19 = vector.broadcast %16 : f32 to vector<8x8xf32>
    %20 = arith.mulf %19, %18 : vector<8x8xf32>
    %21 = arith.addf %12, %20 : vector<8x8xf32>
    %c16_i32_8 = arith.constant 16 : i32
    %22 = arith.muli %5, %c16_i32_8 : i32
    %c2_i32 = arith.constant 2 : i32
    %23 = arith.addi %22, %c2_i32 : i32
    %24 = arith.index_cast %23 : i32 to index
    %25 = memref.load %arg5[%24] : memref<128xf32, #tpu.memory_space<smem>>
    %26 = vector.extract_strided_slice %1 {offsets = [2, 0, 0], sizes = [1, 8, 8], strides = [1, 1, 1]} : vector<16x8x8xf32> to vector<1x8x8xf32>
    %27 = vector.shape_cast %26 : vector<1x8x8xf32> to vector<8x8xf32>
    %28 = vector.broadcast %25 : f32 to vector<8x8xf32>
    %29 = arith.mulf %28, %27 : vector<8x8xf32>
    %30 = arith.addf %21, %29 : vector<8x8xf32>
    %c16_i32_9 = arith.constant 16 : i32
    %31 = arith.muli %5, %c16_i32_9 : i32
    %c3_i32 = arith.constant 3 : i32
    %32 = arith.addi %31, %c3_i32 : i32
    %33 = arith.index_cast %32 : i32 to index
    %34 = memref.load %arg5[%33] : memref<128xf32, #tpu.memory_space<smem>>
    %35 = vector.extract_strided_slice %1 {offsets = [3, 0, 0], sizes = [1, 8, 8], strides = [1, 1, 1]} : vector<16x8x8xf32> to vector<1x8x8xf32>
    %36 = vector.shape_cast %35 : vector<1x8x8xf32> to vector<8x8xf32>
    %37 = vector.broadcast %34 : f32 to vector<8x8xf32>
    %38 = arith.mulf %37, %36 : vector<8x8xf32>
    %39 = arith.addf %30, %38 : vector<8x8xf32>
    %c16_i32_10 = arith.constant 16 : i32
    %40 = arith.muli %5, %c16_i32_10 : i32
    %c4_i32 = arith.constant 4 : i32
    %41 = arith.addi %40, %c4_i32 : i32
    %42 = arith.index_cast %41 : i32 to index
    %43 = memref.load %arg5[%42] : memref<128xf32, #tpu.memory_space<smem>>
    %44 = vector.extract_strided_slice %1 {offsets = [4, 0, 0], sizes = [1, 8, 8], strides = [1, 1, 1]} : vector<16x8x8xf32> to vector<1x8x8xf32>
    %45 = vector.shape_cast %44 : vector<1x8x8xf32> to vector<8x8xf32>
    %46 = vector.broadcast %43 : f32 to vector<8x8xf32>
    %47 = arith.mulf %46, %45 : vector<8x8xf32>
    %48 = arith.addf %39, %47 : vector<8x8xf32>
    %c16_i32_11 = arith.constant 16 : i32
    %49 = arith.muli %5, %c16_i32_11 : i32
    %c5_i32 = arith.constant 5 : i32
    %50 = arith.addi %49, %c5_i32 : i32
    %51 = arith.index_cast %50 : i32 to index
    %52 = memref.load %arg5[%51] : memref<128xf32, #tpu.memory_space<smem>>
    %53 = vector.extract_strided_slice %1 {offsets = [5, 0, 0], sizes = [1, 8, 8], strides = [1, 1, 1]} : vector<16x8x8xf32> to vector<1x8x8xf32>
    %54 = vector.shape_cast %53 : vector<1x8x8xf32> to vector<8x8xf32>
    %55 = vector.broadcast %52 : f32 to vector<8x8xf32>
    %56 = arith.mulf %55, %54 : vector<8x8xf32>
    %57 = arith.addf %48, %56 : vector<8x8xf32>
    %c16_i32_12 = arith.constant 16 : i32
    %58 = arith.muli %5, %c16_i32_12 : i32
    %c6_i32 = arith.constant 6 : i32
    %59 = arith.addi %58, %c6_i32 : i32
    %60 = arith.index_cast %59 : i32 to index
    %61 = memref.load %arg5[%60] : memref<128xf32, #tpu.memory_space<smem>>
    %62 = vector.extract_strided_slice %1 {offsets = [6, 0, 0], sizes = [1, 8, 8], strides = [1, 1, 1]} : vector<16x8x8xf32> to vector<1x8x8xf32>
    %63 = vector.shape_cast %62 : vector<1x8x8xf32> to vector<8x8xf32>
    %64 = vector.broadcast %61 : f32 to vector<8x8xf32>
    %65 = arith.mulf %64, %63 : vector<8x8xf32>
    %66 = arith.addf %57, %65 : vector<8x8xf32>
    %c16_i32_13 = arith.constant 16 : i32
    %67 = arith.muli %5, %c16_i32_13 : i32
    %c7_i32 = arith.constant 7 : i32
    %68 = arith.addi %67, %c7_i32 : i32
    %69 = arith.index_cast %68 : i32 to index
    %70 = memref.load %arg5[%69] : memref<128xf32, #tpu.memory_space<smem>>
    %71 = vector.extract_strided_slice %1 {offsets = [7, 0, 0], sizes = [1, 8, 8], strides = [1, 1, 1]} : vector<16x8x8xf32> to vector<1x8x8xf32>
    %72 = vector.shape_cast %71 : vector<1x8x8xf32> to vector<8x8xf32>
    %73 = vector.broadcast %70 : f32 to vector<8x8xf32>
    %74 = arith.mulf %73, %72 : vector<8x8xf32>
    %75 = arith.addf %66, %74 : vector<8x8xf32>
    %c16_i32_14 = arith.constant 16 : i32
    %76 = arith.muli %5, %c16_i32_14 : i32
    %c8_i32_15 = arith.constant 8 : i32
    %77 = arith.addi %76, %c8_i32_15 : i32
    %78 = arith.index_cast %77 : i32 to index
    %79 = memref.load %arg5[%78] : memref<128xf32, #tpu.memory_space<smem>>
    %80 = vector.extract_strided_slice %1 {offsets = [8, 0, 0], sizes = [1, 8, 8], strides = [1, 1, 1]} : vector<16x8x8xf32> to vector<1x8x8xf32>
    %81 = vector.shape_cast %80 : vector<1x8x8xf32> to vector<8x8xf32>
    %82 = vector.broadcast %79 : f32 to vector<8x8xf32>
    %83 = arith.mulf %82, %81 : vector<8x8xf32>
    %84 = arith.addf %75, %83 : vector<8x8xf32>
    %c16_i32_16 = arith.constant 16 : i32
    %85 = arith.muli %5, %c16_i32_16 : i32
    %c9_i32 = arith.constant 9 : i32
    %86 = arith.addi %85, %c9_i32 : i32
    %87 = arith.index_cast %86 : i32 to index
    %88 = memref.load %arg5[%87] : memref<128xf32, #tpu.memory_space<smem>>
    %89 = vector.extract_strided_slice %1 {offsets = [9, 0, 0], sizes = [1, 8, 8], strides = [1, 1, 1]} : vector<16x8x8xf32> to vector<1x8x8xf32>
    %90 = vector.shape_cast %89 : vector<1x8x8xf32> to vector<8x8xf32>
    %91 = vector.broadcast %88 : f32 to vector<8x8xf32>
    %92 = arith.mulf %91, %90 : vector<8x8xf32>
    %93 = arith.addf %84, %92 : vector<8x8xf32>
    %c16_i32_17 = arith.constant 16 : i32
    %94 = arith.muli %5, %c16_i32_17 : i32
    %c10_i32 = arith.constant 10 : i32
    %95 = arith.addi %94, %c10_i32 : i32
    %96 = arith.index_cast %95 : i32 to index
    %97 = memref.load %arg5[%96] : memref<128xf32, #tpu.memory_space<smem>>
    %98 = vector.extract_strided_slice %1 {offsets = [10, 0, 0], sizes = [1, 8, 8], strides = [1, 1, 1]} : vector<16x8x8xf32> to vector<1x8x8xf32>
    %99 = vector.shape_cast %98 : vector<1x8x8xf32> to vector<8x8xf32>
    %100 = vector.broadcast %97 : f32 to vector<8x8xf32>
    %101 = arith.mulf %100, %99 : vector<8x8xf32>
    %102 = arith.addf %93, %101 : vector<8x8xf32>
    %c16_i32_18 = arith.constant 16 : i32
    %103 = arith.muli %5, %c16_i32_18 : i32
    %c11_i32 = arith.constant 11 : i32
    %104 = arith.addi %103, %c11_i32 : i32
    %105 = arith.index_cast %104 : i32 to index
    %106 = memref.load %arg5[%105] : memref<128xf32, #tpu.memory_space<smem>>
    %107 = vector.extract_strided_slice %1 {offsets = [11, 0, 0], sizes = [1, 8, 8], strides = [1, 1, 1]} : vector<16x8x8xf32> to vector<1x8x8xf32>
    %108 = vector.shape_cast %107 : vector<1x8x8xf32> to vector<8x8xf32>
    %109 = vector.broadcast %106 : f32 to vector<8x8xf32>
    %110 = arith.mulf %109, %108 : vector<8x8xf32>
    %111 = arith.addf %102, %110 : vector<8x8xf32>
    %c16_i32_19 = arith.constant 16 : i32
    %112 = arith.muli %5, %c16_i32_19 : i32
    %c12_i32 = arith.constant 12 : i32
    %113 = arith.addi %112, %c12_i32 : i32
    %114 = arith.index_cast %113 : i32 to index
    %115 = memref.load %arg5[%114] : memref<128xf32, #tpu.memory_space<smem>>
    %116 = vector.extract_strided_slice %1 {offsets = [12, 0, 0], sizes = [1, 8, 8], strides = [1, 1, 1]} : vector<16x8x8xf32> to vector<1x8x8xf32>
    %117 = vector.shape_cast %116 : vector<1x8x8xf32> to vector<8x8xf32>
    %118 = vector.broadcast %115 : f32 to vector<8x8xf32>
    %119 = arith.mulf %118, %117 : vector<8x8xf32>
    %120 = arith.addf %111, %119 : vector<8x8xf32>
    %c16_i32_20 = arith.constant 16 : i32
    %121 = arith.muli %5, %c16_i32_20 : i32
    %c13_i32 = arith.constant 13 : i32
    %122 = arith.addi %121, %c13_i32 : i32
    %123 = arith.index_cast %122 : i32 to index
    %124 = memref.load %arg5[%123] : memref<128xf32, #tpu.memory_space<smem>>
    %125 = vector.extract_strided_slice %1 {offsets = [13, 0, 0], sizes = [1, 8, 8], strides = [1, 1, 1]} : vector<16x8x8xf32> to vector<1x8x8xf32>
    %126 = vector.shape_cast %125 : vector<1x8x8xf32> to vector<8x8xf32>
    %127 = vector.broadcast %124 : f32 to vector<8x8xf32>
    %128 = arith.mulf %127, %126 : vector<8x8xf32>
    %129 = arith.addf %120, %128 : vector<8x8xf32>
    %c16_i32_21 = arith.constant 16 : i32
    %130 = arith.muli %5, %c16_i32_21 : i32
    %c14_i32 = arith.constant 14 : i32
    %131 = arith.addi %130, %c14_i32 : i32
    %132 = arith.index_cast %131 : i32 to index
    %133 = memref.load %arg5[%132] : memref<128xf32, #tpu.memory_space<smem>>
    %134 = vector.extract_strided_slice %1 {offsets = [14, 0, 0], sizes = [1, 8, 8], strides = [1, 1, 1]} : vector<16x8x8xf32> to vector<1x8x8xf32>
    %135 = vector.shape_cast %134 : vector<1x8x8xf32> to vector<8x8xf32>
    %136 = vector.broadcast %133 : f32 to vector<8x8xf32>
    %137 = arith.mulf %136, %135 : vector<8x8xf32>
    %138 = arith.addf %129, %137 : vector<8x8xf32>
    %c16_i32_22 = arith.constant 16 : i32
    %139 = arith.muli %5, %c16_i32_22 : i32
    %c15_i32 = arith.constant 15 : i32
    %140 = arith.addi %139, %c15_i32 : i32
    %141 = arith.index_cast %140 : i32 to index
    %142 = memref.load %arg5[%141] : memref<128xf32, #tpu.memory_space<smem>>
    %143 = vector.extract_strided_slice %1 {offsets = [15, 0, 0], sizes = [1, 8, 8], strides = [1, 1, 1]} : vector<16x8x8xf32> to vector<1x8x8xf32>
    %144 = vector.shape_cast %143 : vector<1x8x8xf32> to vector<8x8xf32>
    %145 = vector.broadcast %142 : f32 to vector<8x8xf32>
    %146 = arith.mulf %145, %144 : vector<8x8xf32>
    %147 = arith.addf %138, %146 : vector<8x8xf32>
    %cst = arith.constant dense<0.000000e+00> : vector<8x16xf32>
    %148 = tpu.matmul %147, %3, %cst {dimension_numbers = #tpu.dot_dimension_numbers<[1], [0], [0], [1], [0, 0, 1, 1], [], []>} : vector<8x8xf32>, vector<8x16xf32>, vector<8x16xf32> -> vector<8x16xf32>
    %cst_23 = arith.constant dense<0.000000e+00> : vector<16x16xf32>
    %149 = tpu.matmul %2, %148, %cst_23 {dimension_numbers = #tpu.dot_dimension_numbers<[1], [0], [0], [1], [0, 0, 1, 1], [], []>} : vector<16x8xf32>, vector<8x16xf32>, vector<16x16xf32> -> vector<16x16xf32>
    %150 = arith.index_cast %5 : i32 to index
    %151 = memref.load %arg6[%150] : memref<8xf32, #tpu.memory_space<smem>>
    %152 = vector.broadcast %151 : f32 to vector<16x16xf32>
    %153 = arith.addf %149, %152 : vector<16x16xf32>
    %c0_24 = arith.constant 0 : index
    %c0_25 = arith.constant 0 : index
    %c0_26 = arith.constant 0 : index
    %c0_27 = arith.constant 0 : index
    %154 = vector.load %arg7[%c0_24, %c0_25, %c0_26, %c0_27] : memref<1x8x16x16xf32, #tpu.memory_space<vmem>>, vector<1x1x16x16xf32>
    %155 = vector.shape_cast %154 : vector<1x1x16x16xf32> to vector<16x16xf32>
    %156 = arith.addf %153, %155 : vector<16x16xf32>
    %c0_28 = arith.constant 0 : index
    %c0_29 = arith.constant 0 : index
    %c0_30 = arith.constant 0 : index
    %c0_31 = arith.constant 0 : index
    %157 = vector.load %arg8[%c0_28, %c0_29, %c0_30, %c0_31] : memref<1x8x16x16xf32, #tpu.memory_space<vmem>>, vector<1x1x16x16xf32>
    %158 = vector.shape_cast %157 : vector<1x1x16x16xf32> to vector<16x16xf32>
    %159 = vector.shape_cast %156 : vector<16x16xf32> to vector<1x1x16x16xf32>
    tpu.vector_store %arg8[%c0_28, %c0_29, %c0_30, %c0_31], %159 {strides = array<i32>} : memref<1x8x16x16xf32, #tpu.memory_space<vmem>>, vector<1x1x16x16xf32>,
    %c8_i32_32 = arith.constant 8 : i32
    %160 = arith.muli %arg1, %c8_i32_32 : i32
    %c1_i32_33 = arith.constant 1 : i32
    %161 = arith.addi %160, %c1_i32_33 : i32
    %c16_i32_34 = arith.constant 16 : i32
    %162 = arith.muli %161, %c16_i32_34 : i32
    %163 = arith.index_cast %162 : i32 to index
    %164 = memref.load %arg5[%163] : memref<128xf32, #tpu.memory_space<smem>>
    %165 = vector.extract_strided_slice %1 {offsets = [0, 0, 0], sizes = [1, 8, 8], strides = [1, 1, 1]} : vector<16x8x8xf32> to vector<1x8x8xf32>
    %166 = vector.shape_cast %165 : vector<1x8x8xf32> to vector<8x8xf32>
    %167 = vector.broadcast %164 : f32 to vector<8x8xf32>
    %168 = arith.mulf %167, %166 : vector<8x8xf32>
    %c16_i32_35 = arith.constant 16 : i32
    %169 = arith.muli %161, %c16_i32_35 : i32
    %c1_i32_36 = arith.constant 1 : i32
    %170 = arith.addi %169, %c1_i32_36 : i32
    %171 = arith.index_cast %170 : i32 to index
    %172 = memref.load %arg5[%171] : memref<128xf32, #tpu.memory_space<smem>>
    %173 = vector.extract_strided_slice %1 {offsets = [1, 0, 0], sizes = [1, 8, 8], strides = [1, 1, 1]} : vector<16x8x8xf32> to vector<1x8x8xf32>
    %174 = vector.shape_cast %173 : vector<1x8x8xf32> to vector<8x8xf32>
    %175 = vector.broadcast %172 : f32 to vector<8x8xf32>
    %176 = arith.mulf %175, %174 : vector<8x8xf32>
    %177 = arith.addf %168, %176 : vector<8x8xf32>
    %c16_i32_37 = arith.constant 16 : i32
    %178 = arith.muli %161, %c16_i32_37 : i32
    %c2_i32_38 = arith.constant 2 : i32
    %179 = arith.addi %178, %c2_i32_38 : i32
    %180 = arith.index_cast %179 : i32 to index
    %181 = memref.load %arg5[%180] : memref<128xf32, #tpu.memory_space<smem>>
    %182 = vector.extract_strided_slice %1 {offsets = [2, 0, 0], sizes = [1, 8, 8], strides = [1, 1, 1]} : vector<16x8x8xf32> to vector<1x8x8xf32>
    %183 = vector.shape_cast %182 : vector<1x8x8xf32> to vector<8x8xf32>
    %184 = vector.broadcast %181 : f32 to vector<8x8xf32>
    %185 = arith.mulf %184, %183 : vector<8x8xf32>
    %186 = arith.addf %177, %185 : vector<8x8xf32>
    %c16_i32_39 = arith.constant 16 : i32
    %187 = arith.muli %161, %c16_i32_39 : i32
    %c3_i32_40 = arith.constant 3 : i32
    %188 = arith.addi %187, %c3_i32_40 : i32
    %189 = arith.index_cast %188 : i32 to index
    %190 = memref.load %arg5[%189] : memref<128xf32, #tpu.memory_space<smem>>
    %191 = vector.extract_strided_slice %1 {offsets = [3, 0, 0], sizes = [1, 8, 8], strides = [1, 1, 1]} : vector<16x8x8xf32> to vector<1x8x8xf32>
    %192 = vector.shape_cast %191 : vector<1x8x8xf32> to vector<8x8xf32>
    %193 = vector.broadcast %190 : f32 to vector<8x8xf32>
    %194 = arith.mulf %193, %192 : vector<8x8xf32>
    %195 = arith.addf %186, %194 : vector<8x8xf32>
    %c16_i32_41 = arith.constant 16 : i32
    %196 = arith.muli %161, %c16_i32_41 : i32
    %c4_i32_42 = arith.constant 4 : i32
    %197 = arith.addi %196, %c4_i32_42 : i32
    %198 = arith.index_cast %197 : i32 to index
    %199 = memref.load %arg5[%198] : memref<128xf32, #tpu.memory_space<smem>>
    %200 = vector.extract_strided_slice %1 {offsets = [4, 0, 0], sizes = [1, 8, 8], strides = [1, 1, 1]} : vector<16x8x8xf32> to vector<1x8x8xf32>
    %201 = vector.shape_cast %200 : vector<1x8x8xf32> to vector<8x8xf32>
    %202 = vector.broadcast %199 : f32 to vector<8x8xf32>
    %203 = arith.mulf %202, %201 : vector<8x8xf32>
    %204 = arith.addf %195, %203 : vector<8x8xf32>
    %c16_i32_43 = arith.constant 16 : i32
    %205 = arith.muli %161, %c16_i32_43 : i32
    %c5_i32_44 = arith.constant 5 : i32
    %206 = arith.addi %205, %c5_i32_44 : i32
    %207 = arith.index_cast %206 : i32 to index
    %208 = memref.load %arg5[%207] : memref<128xf32, #tpu.memory_space<smem>>
    %209 = vector.extract_strided_slice %1 {offsets = [5, 0, 0], sizes = [1, 8, 8], strides = [1, 1, 1]} : vector<16x8x8xf32> to vector<1x8x8xf32>
    %210 = vector.shape_cast %209 : vector<1x8x8xf32> to vector<8x8xf32>
    %211 = vector.broadcast %208 : f32 to vector<8x8xf32>
    %212 = arith.mulf %211, %210 : vector<8x8xf32>
    %213 = arith.addf %204, %212 : vector<8x8xf32>
    %c16_i32_45 = arith.constant 16 : i32
    %214 = arith.muli %161, %c16_i32_45 : i32
    %c6_i32_46 = arith.constant 6 : i32
    %215 = arith.addi %214, %c6_i32_46 : i32
    %216 = arith.index_cast %215 : i32 to index
    %217 = memref.load %arg5[%216] : memref<128xf32, #tpu.memory_space<smem>>
    %218 = vector.extract_strided_slice %1 {offsets = [6, 0, 0], sizes = [1, 8, 8], strides = [1, 1, 1]} : vector<16x8x8xf32> to vector<1x8x8xf32>
    %219 = vector.shape_cast %218 : vector<1x8x8xf32> to vector<8x8xf32>
    %220 = vector.broadcast %217 : f32 to vector<8x8xf32>
    %221 = arith.mulf %220, %219 : vector<8x8xf32>
    %222 = arith.addf %213, %221 : vector<8x8xf32>
    %c16_i32_47 = arith.constant 16 : i32
    %223 = arith.muli %161, %c16_i32_47 : i32
    %c7_i32_48 = arith.constant 7 : i32
    %224 = arith.addi %223, %c7_i32_48 : i32
    %225 = arith.index_cast %224 : i32 to index
    %226 = memref.load %arg5[%225] : memref<128xf32, #tpu.memory_space<smem>>
    %227 = vector.extract_strided_slice %1 {offsets = [7, 0, 0], sizes = [1, 8, 8], strides = [1, 1, 1]} : vector<16x8x8xf32> to vector<1x8x8xf32>
    %228 = vector.shape_cast %227 : vector<1x8x8xf32> to vector<8x8xf32>
    %229 = vector.broadcast %226 : f32 to vector<8x8xf32>
    %230 = arith.mulf %229, %228 : vector<8x8xf32>
    %231 = arith.addf %222, %230 : vector<8x8xf32>
    %c16_i32_49 = arith.constant 16 : i32
    %232 = arith.muli %161, %c16_i32_49 : i32
    %c8_i32_50 = arith.constant 8 : i32
    %233 = arith.addi %232, %c8_i32_50 : i32
    %234 = arith.index_cast %233 : i32 to index
    %235 = memref.load %arg5[%234] : memref<128xf32, #tpu.memory_space<smem>>
    %236 = vector.extract_strided_slice %1 {offsets = [8, 0, 0], sizes = [1, 8, 8], strides = [1, 1, 1]} : vector<16x8x8xf32> to vector<1x8x8xf32>
    %237 = vector.shape_cast %236 : vector<1x8x8xf32> to vector<8x8xf32>
    %238 = vector.broadcast %235 : f32 to vector<8x8xf32>
    %239 = arith.mulf %238, %237 : vector<8x8xf32>
    %240 = arith.addf %231, %239 : vector<8x8xf32>
    %c16_i32_51 = arith.constant 16 : i32
    %241 = arith.muli %161, %c16_i32_51 : i32
    %c9_i32_52 = arith.constant 9 : i32
    %242 = arith.addi %241, %c9_i32_52 : i32
    %243 = arith.index_cast %242 : i32 to index
    %244 = memref.load %arg5[%243] : memref<128xf32, #tpu.memory_space<smem>>
    %245 = vector.extract_strided_slice %1 {offsets = [9, 0, 0], sizes = [1, 8, 8], strides = [1, 1, 1]} : vector<16x8x8xf32> to vector<1x8x8xf32>
    %246 = vector.shape_cast %245 : vector<1x8x8xf32> to vector<8x8xf32>
    %247 = vector.broadcast %244 : f32 to vector<8x8xf32>
    %248 = arith.mulf %247, %246 : vector<8x8xf32>
    %249 = arith.addf %240, %248 : vector<8x8xf32>
    %c16_i32_53 = arith.constant 16 : i32
    %250 = arith.muli %161, %c16_i32_53 : i32
    %c10_i32_54 = arith.constant 10 : i32
    %251 = arith.addi %250, %c10_i32_54 : i32
    %252 = arith.index_cast %251 : i32 to index
    %253 = memref.load %arg5[%252] : memref<128xf32, #tpu.memory_space<smem>>
    %254 = vector.extract_strided_slice %1 {offsets = [10, 0, 0], sizes = [1, 8, 8], strides = [1, 1, 1]} : vector<16x8x8xf32> to vector<1x8x8xf32>
    %255 = vector.shape_cast %254 : vector<1x8x8xf32> to vector<8x8xf32>
    %256 = vector.broadcast %253 : f32 to vector<8x8xf32>
    %257 = arith.mulf %256, %255 : vector<8x8xf32>
    %258 = arith.addf %249, %257 : vector<8x8xf32>
    %c16_i32_55 = arith.constant 16 : i32
    %259 = arith.muli %161, %c16_i32_55 : i32
    %c11_i32_56 = arith.constant 11 : i32
    %260 = arith.addi %259, %c11_i32_56 : i32
    %261 = arith.index_cast %260 : i32 to index
    %262 = memref.load %arg5[%261] : memref<128xf32, #tpu.memory_space<smem>>
    %263 = vector.extract_strided_slice %1 {offsets = [11, 0, 0], sizes = [1, 8, 8], strides = [1, 1, 1]} : vector<16x8x8xf32> to vector<1x8x8xf32>
    %264 = vector.shape_cast %263 : vector<1x8x8xf32> to vector<8x8xf32>
    %265 = vector.broadcast %262 : f32 to vector<8x8xf32>
    %266 = arith.mulf %265, %264 : vector<8x8xf32>
    %267 = arith.addf %258, %266 : vector<8x8xf32>
    %c16_i32_57 = arith.constant 16 : i32
    %268 = arith.muli %161, %c16_i32_57 : i32
    %c12_i32_58 = arith.constant 12 : i32
    %269 = arith.addi %268, %c12_i32_58 : i32
    %270 = arith.index_cast %269 : i32 to index
    %271 = memref.load %arg5[%270] : memref<128xf32, #tpu.memory_space<smem>>
    %272 = vector.extract_strided_slice %1 {offsets = [12, 0, 0], sizes = [1, 8, 8], strides = [1, 1, 1]} : vector<16x8x8xf32> to vector<1x8x8xf32>
    %273 = vector.shape_cast %272 : vector<1x8x8xf32> to vector<8x8xf32>
    %274 = vector.broadcast %271 : f32 to vector<8x8xf32>
    %275 = arith.mulf %274, %273 : vector<8x8xf32>
    %276 = arith.addf %267, %275 : vector<8x8xf32>
    %c16_i32_59 = arith.constant 16 : i32
    %277 = arith.muli %161, %c16_i32_59 : i32
    %c13_i32_60 = arith.constant 13 : i32
    %278 = arith.addi %277, %c13_i32_60 : i32
    %279 = arith.index_cast %278 : i32 to index
    %280 = memref.load %arg5[%279] : memref<128xf32, #tpu.memory_space<smem>>
    %281 = vector.extract_strided_slice %1 {offsets = [13, 0, 0], sizes = [1, 8, 8], strides = [1, 1, 1]} : vector<16x8x8xf32> to vector<1x8x8xf32>
    %282 = vector.shape_cast %281 : vector<1x8x8xf32> to vector<8x8xf32>
    %283 = vector.broadcast %280 : f32 to vector<8x8xf32>
    %284 = arith.mulf %283, %282 : vector<8x8xf32>
    %285 = arith.addf %276, %284 : vector<8x8xf32>
    %c16_i32_61 = arith.constant 16 : i32
    %286 = arith.muli %161, %c16_i32_61 : i32
    %c14_i32_62 = arith.constant 14 : i32
    %287 = arith.addi %286, %c14_i32_62 : i32
    %288 = arith.index_cast %287 : i32 to index
    %289 = memref.load %arg5[%288] : memref<128xf32, #tpu.memory_space<smem>>
    %290 = vector.extract_strided_slice %1 {offsets = [14, 0, 0], sizes = [1, 8, 8], strides = [1, 1, 1]} : vector<16x8x8xf32> to vector<1x8x8xf32>
    %291 = vector.shape_cast %290 : vector<1x8x8xf32> to vector<8x8xf32>
    %292 = vector.broadcast %289 : f32 to vector<8x8xf32>
    %293 = arith.mulf %292, %291 : vector<8x8xf32>
    %294 = arith.addf %285, %293 : vector<8x8xf32>
    %c16_i32_63 = arith.constant 16 : i32
    %295 = arith.muli %161, %c16_i32_63 : i32
    %c15_i32_64 = arith.constant 15 : i32
    %296 = arith.addi %295, %c15_i32_64 : i32
    %297 = arith.index_cast %296 : i32 to index
    %298 = memref.load %arg5[%297] : memref<128xf32, #tpu.memory_space<smem>>
    %299 = vector.extract_strided_slice %1 {offsets = [15, 0, 0], sizes = [1, 8, 8], strides = [1, 1, 1]} : vector<16x8x8xf32> to vector<1x8x8xf32>
    %300 = vector.shape_cast %299 : vector<1x8x8xf32> to vector<8x8xf32>
    %301 = vector.broadcast %298 : f32 to vector<8x8xf32>
    %302 = arith.mulf %301, %300 : vector<8x8xf32>
    %303 = arith.addf %294, %302 : vector<8x8xf32>
    %cst_65 = arith.constant dense<0.000000e+00> : vector<8x16xf32>
    %304 = tpu.matmul %303, %3, %cst_65 {dimension_numbers = #tpu.dot_dimension_numbers<[1], [0], [0], [1], [0, 0, 1, 1], [], []>} : vector<8x8xf32>, vector<8x16xf32>, vector<8x16xf32> -> vector<8x16xf32>
    %cst_66 = arith.constant dense<0.000000e+00> : vector<16x16xf32>
    %305 = tpu.matmul %2, %304, %cst_66 {dimension_numbers = #tpu.dot_dimension_numbers<[1], [0], [0], [1], [0, 0, 1, 1], [], []>} : vector<16x8xf32>, vector<8x16xf32>, vector<16x16xf32> -> vector<16x16xf32>
    %306 = arith.index_cast %161 : i32 to index
    %307 = memref.load %arg6[%306] : memref<8xf32, #tpu.memory_space<smem>>
    %308 = vector.broadcast %307 : f32 to vector<16x16xf32>
    %309 = arith.addf %305, %308 : vector<16x16xf32>
    %c0_67 = arith.constant 0 : index
    %c1 = arith.constant 1 : index
    %c0_68 = arith.constant 0 : index
    %c0_69 = arith.constant 0 : index
    %310 = vector.load %arg7[%c0_67, %c1, %c0_68, %c0_69] : memref<1x8x16x16xf32, #tpu.memory_space<vmem>>, vector<1x1x16x16xf32>
    %311 = vector.shape_cast %310 : vector<1x1x16x16xf32> to vector<16x16xf32>
    %312 = arith.addf %309, %311 : vector<16x16xf32>
    %c0_70 = arith.constant 0 : index
    %c1_71 = arith.constant 1 : index
    %c0_72 = arith.constant 0 : index
    %c0_73 = arith.constant 0 : index
    %313 = vector.load %arg8[%c0_70, %c1_71, %c0_72, %c0_73] : memref<1x8x16x16xf32, #tpu.memory_space<vmem>>, vector<1x1x16x16xf32>
    %314 = vector.shape_cast %313 : vector<1x1x16x16xf32> to vector<16x16xf32>
    %315 = vector.shape_cast %312 : vector<16x16xf32> to vector<1x1x16x16xf32>
    tpu.vector_store %arg8[%c0_70, %c1_71, %c0_72, %c0_73], %315 {strides = array<i32>} : memref<1x8x16x16xf32, #tpu.memory_space<vmem>>, vector<1x1x16x16xf32>,
    %c8_i32_74 = arith.constant 8 : i32
    %316 = arith.muli %arg1, %c8_i32_74 : i32
    %c2_i32_75 = arith.constant 2 : i32
    %317 = arith.addi %316, %c2_i32_75 : i32
    %c16_i32_76 = arith.constant 16 : i32
    %318 = arith.muli %317, %c16_i32_76 : i32
    %319 = arith.index_cast %318 : i32 to index
    %320 = memref.load %arg5[%319] : memref<128xf32, #tpu.memory_space<smem>>
    %321 = vector.extract_strided_slice %1 {offsets = [0, 0, 0], sizes = [1, 8, 8], strides = [1, 1, 1]} : vector<16x8x8xf32> to vector<1x8x8xf32>
    %322 = vector.shape_cast %321 : vector<1x8x8xf32> to vector<8x8xf32>
    %323 = vector.broadcast %320 : f32 to vector<8x8xf32>
    %324 = arith.mulf %323, %322 : vector<8x8xf32>
    %c16_i32_77 = arith.constant 16 : i32
    %325 = arith.muli %317, %c16_i32_77 : i32
    %c1_i32_78 = arith.constant 1 : i32
    %326 = arith.addi %325, %c1_i32_78 : i32
    %327 = arith.index_cast %326 : i32 to index
    %328 = memref.load %arg5[%327] : memref<128xf32, #tpu.memory_space<smem>>
    %329 = vector.extract_strided_slice %1 {offsets = [1, 0, 0], sizes = [1, 8, 8], strides = [1, 1, 1]} : vector<16x8x8xf32> to vector<1x8x8xf32>
    %330 = vector.shape_cast %329 : vector<1x8x8xf32> to vector<8x8xf32>
    %331 = vector.broadcast %328 : f32 to vector<8x8xf32>
    %332 = arith.mulf %331, %330 : vector<8x8xf32>
    %333 = arith.addf %324, %332 : vector<8x8xf32>
    %c16_i32_79 = arith.constant 16 : i32
    %334 = arith.muli %317, %c16_i32_79 : i32
    %c2_i32_80 = arith.constant 2 : i32
    %335 = arith.addi %334, %c2_i32_80 : i32
    %336 = arith.index_cast %335 : i32 to index
    %337 = memref.load %arg5[%336] : memref<128xf32, #tpu.memory_space<smem>>
    %338 = vector.extract_strided_slice %1 {offsets = [2, 0, 0], sizes = [1, 8, 8], strides = [1, 1, 1]} : vector<16x8x8xf32> to vector<1x8x8xf32>
    %339 = vector.shape_cast %338 : vector<1x8x8xf32> to vector<8x8xf32>
    %340 = vector.broadcast %337 : f32 to vector<8x8xf32>
    %341 = arith.mulf %340, %339 : vector<8x8xf32>
    %342 = arith.addf %333, %341 : vector<8x8xf32>
    %c16_i32_81 = arith.constant 16 : i32
    %343 = arith.muli %317, %c16_i32_81 : i32
    %c3_i32_82 = arith.constant 3 : i32
    %344 = arith.addi %343, %c3_i32_82 : i32
    %345 = arith.index_cast %344 : i32 to index
    %346 = memref.load %arg5[%345] : memref<128xf32, #tpu.memory_space<smem>>
    %347 = vector.extract_strided_slice %1 {offsets = [3, 0, 0], sizes = [1, 8, 8], strides = [1, 1, 1]} : vector<16x8x8xf32> to vector<1x8x8xf32>
    %348 = vector.shape_cast %347 : vector<1x8x8xf32> to vector<8x8xf32>
    %349 = vector.broadcast %346 : f32 to vector<8x8xf32>
    %350 = arith.mulf %349, %348 : vector<8x8xf32>
    %351 = arith.addf %342, %350 : vector<8x8xf32>
    %c16_i32_83 = arith.constant 16 : i32
    %352 = arith.muli %317, %c16_i32_83 : i32
    %c4_i32_84 = arith.constant 4 : i32
    %353 = arith.addi %352, %c4_i32_84 : i32
    %354 = arith.index_cast %353 : i32 to index
    %355 = memref.load %arg5[%354] : memref<128xf32, #tpu.memory_space<smem>>
    %356 = vector.extract_strided_slice %1 {offsets = [4, 0, 0], sizes = [1, 8, 8], strides = [1, 1, 1]} : vector<16x8x8xf32> to vector<1x8x8xf32>
    %357 = vector.shape_cast %356 : vector<1x8x8xf32> to vector<8x8xf32>
    %358 = vector.broadcast %355 : f32 to vector<8x8xf32>
    %359 = arith.mulf %358, %357 : vector<8x8xf32>
    %360 = arith.addf %351, %359 : vector<8x8xf32>
    %c16_i32_85 = arith.constant 16 : i32
    %361 = arith.muli %317, %c16_i32_85 : i32
    %c5_i32_86 = arith.constant 5 : i32
    %362 = arith.addi %361, %c5_i32_86 : i32
    %363 = arith.index_cast %362 : i32 to index
    %364 = memref.load %arg5[%363] : memref<128xf32, #tpu.memory_space<smem>>
    %365 = vector.extract_strided_slice %1 {offsets = [5, 0, 0], sizes = [1, 8, 8], strides = [1, 1, 1]} : vector<16x8x8xf32> to vector<1x8x8xf32>
    %366 = vector.shape_cast %365 : vector<1x8x8xf32> to vector<8x8xf32>
    %367 = vector.broadcast %364 : f32 to vector<8x8xf32>
    %368 = arith.mulf %367, %366 : vector<8x8xf32>
    %369 = arith.addf %360, %368 : vector<8x8xf32>
    %c16_i32_87 = arith.constant 16 : i32
    %370 = arith.muli %317, %c16_i32_87 : i32
    %c6_i32_88 = arith.constant 6 : i32
    %371 = arith.addi %370, %c6_i32_88 : i32
    %372 = arith.index_cast %371 : i32 to index
    %373 = memref.load %arg5[%372] : memref<128xf32, #tpu.memory_space<smem>>
    %374 = vector.extract_strided_slice %1 {offsets = [6, 0, 0], sizes = [1, 8, 8], strides = [1, 1, 1]} : vector<16x8x8xf32> to vector<1x8x8xf32>
    %375 = vector.shape_cast %374 : vector<1x8x8xf32> to vector<8x8xf32>
    %376 = vector.broadcast %373 : f32 to vector<8x8xf32>
    %377 = arith.mulf %376, %375 : vector<8x8xf32>
    %378 = arith.addf %369, %377 : vector<8x8xf32>
    %c16_i32_89 = arith.constant 16 : i32
    %379 = arith.muli %317, %c16_i32_89 : i32
    %c7_i32_90 = arith.constant 7 : i32
    %380 = arith.addi %379, %c7_i32_90 : i32
    %381 = arith.index_cast %380 : i32 to index
    %382 = memref.load %arg5[%381] : memref<128xf32, #tpu.memory_space<smem>>
    %383 = vector.extract_strided_slice %1 {offsets = [7, 0, 0], sizes = [1, 8, 8], strides = [1, 1, 1]} : vector<16x8x8xf32> to vector<1x8x8xf32>
    %384 = vector.shape_cast %383 : vector<1x8x8xf32> to vector<8x8xf32>
    %385 = vector.broadcast %382 : f32 to vector<8x8xf32>
    %386 = arith.mulf %385, %384 : vector<8x8xf32>
    %387 = arith.addf %378, %386 : vector<8x8xf32>
    %c16_i32_91 = arith.constant 16 : i32
    %388 = arith.muli %317, %c16_i32_91 : i32
    %c8_i32_92 = arith.constant 8 : i32
    %389 = arith.addi %388, %c8_i32_92 : i32
    %390 = arith.index_cast %389 : i32 to index
    %391 = memref.load %arg5[%390] : memref<128xf32, #tpu.memory_space<smem>>
    %392 = vector.extract_strided_slice %1 {offsets = [8, 0, 0], sizes = [1, 8, 8], strides = [1, 1, 1]} : vector<16x8x8xf32> to vector<1x8x8xf32>
    %393 = vector.shape_cast %392 : vector<1x8x8xf32> to vector<8x8xf32>
    %394 = vector.broadcast %391 : f32 to vector<8x8xf32>
    %395 = arith.mulf %394, %393 : vector<8x8xf32>
    %396 = arith.addf %387, %395 : vector<8x8xf32>
    %c16_i32_93 = arith.constant 16 : i32
    %397 = arith.muli %317, %c16_i32_93 : i32
    %c9_i32_94 = arith.constant 9 : i32
    %398 = arith.addi %397, %c9_i32_94 : i32
    %399 = arith.index_cast %398 : i32 to index
    %400 = memref.load %arg5[%399] : memref<128xf32, #tpu.memory_space<smem>>
    %401 = vector.extract_strided_slice %1 {offsets = [9, 0, 0], sizes = [1, 8, 8], strides = [1, 1, 1]} : vector<16x8x8xf32> to vector<1x8x8xf32>
    %402 = vector.shape_cast %401 : vector<1x8x8xf32> to vector<8x8xf32>
    %403 = vector.broadcast %400 : f32 to vector<8x8xf32>
    %404 = arith.mulf %403, %402 : vector<8x8xf32>
    %405 = arith.addf %396, %404 : vector<8x8xf32>
    %c16_i32_95 = arith.constant 16 : i32
    %406 = arith.muli %317, %c16_i32_95 : i32
    %c10_i32_96 = arith.constant 10 : i32
    %407 = arith.addi %406, %c10_i32_96 : i32
    %408 = arith.index_cast %407 : i32 to index
    %409 = memref.load %arg5[%408] : memref<128xf32, #tpu.memory_space<smem>>
    %410 = vector.extract_strided_slice %1 {offsets = [10, 0, 0], sizes = [1, 8, 8], strides = [1, 1, 1]} : vector<16x8x8xf32> to vector<1x8x8xf32>
    %411 = vector.shape_cast %410 : vector<1x8x8xf32> to vector<8x8xf32>
    %412 = vector.broadcast %409 : f32 to vector<8x8xf32>
    %413 = arith.mulf %412, %411 : vector<8x8xf32>
    %414 = arith.addf %405, %413 : vector<8x8xf32>
    %c16_i32_97 = arith.constant 16 : i32
    %415 = arith.muli %317, %c16_i32_97 : i32
    %c11_i32_98 = arith.constant 11 : i32
    %416 = arith.addi %415, %c11_i32_98 : i32
    %417 = arith.index_cast %416 : i32 to index
    %418 = memref.load %arg5[%417] : memref<128xf32, #tpu.memory_space<smem>>
    %419 = vector.extract_strided_slice %1 {offsets = [11, 0, 0], sizes = [1, 8, 8], strides = [1, 1, 1]} : vector<16x8x8xf32> to vector<1x8x8xf32>
    %420 = vector.shape_cast %419 : vector<1x8x8xf32> to vector<8x8xf32>
    %421 = vector.broadcast %418 : f32 to vector<8x8xf32>
    %422 = arith.mulf %421, %420 : vector<8x8xf32>
    %423 = arith.addf %414, %422 : vector<8x8xf32>
    %c16_i32_99 = arith.constant 16 : i32
    %424 = arith.muli %317, %c16_i32_99 : i32
    %c12_i32_100 = arith.constant 12 : i32
    %425 = arith.addi %424, %c12_i32_100 : i32
    %426 = arith.index_cast %425 : i32 to index
    %427 = memref.load %arg5[%426] : memref<128xf32, #tpu.memory_space<smem>>
    %428 = vector.extract_strided_slice %1 {offsets = [12, 0, 0], sizes = [1, 8, 8], strides = [1, 1, 1]} : vector<16x8x8xf32> to vector<1x8x8xf32>
    %429 = vector.shape_cast %428 : vector<1x8x8xf32> to vector<8x8xf32>
    %430 = vector.broadcast %427 : f32 to vector<8x8xf32>
    %431 = arith.mulf %430, %429 : vector<8x8xf32>
    %432 = arith.addf %423, %431 : vector<8x8xf32>
    %c16_i32_101 = arith.constant 16 : i32
    %433 = arith.muli %317, %c16_i32_101 : i32
    %c13_i32_102 = arith.constant 13 : i32
    %434 = arith.addi %433, %c13_i32_102 : i32
    %435 = arith.index_cast %434 : i32 to index
    %436 = memref.load %arg5[%435] : memref<128xf32, #tpu.memory_space<smem>>
    %437 = vector.extract_strided_slice %1 {offsets = [13, 0, 0], sizes = [1, 8, 8], strides = [1, 1, 1]} : vector<16x8x8xf32> to vector<1x8x8xf32>
    %438 = vector.shape_cast %437 : vector<1x8x8xf32> to vector<8x8xf32>
    %439 = vector.broadcast %436 : f32 to vector<8x8xf32>
    %440 = arith.mulf %439, %438 : vector<8x8xf32>
    %441 = arith.addf %432, %440 : vector<8x8xf32>
    %c16_i32_103 = arith.constant 16 : i32
    %442 = arith.muli %317, %c16_i32_103 : i32
    %c14_i32_104 = arith.constant 14 : i32
    %443 = arith.addi %442, %c14_i32_104 : i32
    %444 = arith.index_cast %443 : i32 to index
    %445 = memref.load %arg5[%444] : memref<128xf32, #tpu.memory_space<smem>>
    %446 = vector.extract_strided_slice %1 {offsets = [14, 0, 0], sizes = [1, 8, 8], strides = [1, 1, 1]} : vector<16x8x8xf32> to vector<1x8x8xf32>
    %447 = vector.shape_cast %446 : vector<1x8x8xf32> to vector<8x8xf32>
    %448 = vector.broadcast %445 : f32 to vector<8x8xf32>
    %449 = arith.mulf %448, %447 : vector<8x8xf32>
    %450 = arith.addf %441, %449 : vector<8x8xf32>
    %c16_i32_105 = arith.constant 16 : i32
    %451 = arith.muli %317, %c16_i32_105 : i32
    %c15_i32_106 = arith.constant 15 : i32
    %452 = arith.addi %451, %c15_i32_106 : i32
    %453 = arith.index_cast %452 : i32 to index
    %454 = memref.load %arg5[%453] : memref<128xf32, #tpu.memory_space<smem>>
    %455 = vector.extract_strided_slice %1 {offsets = [15, 0, 0], sizes = [1, 8, 8], strides = [1, 1, 1]} : vector<16x8x8xf32> to vector<1x8x8xf32>
    %456 = vector.shape_cast %455 : vector<1x8x8xf32> to vector<8x8xf32>
    %457 = vector.broadcast %454 : f32 to vector<8x8xf32>
    %458 = arith.mulf %457, %456 : vector<8x8xf32>
    %459 = arith.addf %450, %458 : vector<8x8xf32>
    %cst_107 = arith.constant dense<0.000000e+00> : vector<8x16xf32>
    %460 = tpu.matmul %459, %3, %cst_107 {dimension_numbers = #tpu.dot_dimension_numbers<[1], [0], [0], [1], [0, 0, 1, 1], [], []>} : vector<8x8xf32>, vector<8x16xf32>, vector<8x16xf32> -> vector<8x16xf32>
    %cst_108 = arith.constant dense<0.000000e+00> : vector<16x16xf32>
    %461 = tpu.matmul %2, %460, %cst_108 {dimension_numbers = #tpu.dot_dimension_numbers<[1], [0], [0], [1], [0, 0, 1, 1], [], []>} : vector<16x8xf32>, vector<8x16xf32>, vector<16x16xf32> -> vector<16x16xf32>
    %462 = arith.index_cast %317 : i32 to index
    %463 = memref.load %arg6[%462] : memref<8xf32, #tpu.memory_space<smem>>
    %464 = vector.broadcast %463 : f32 to vector<16x16xf32>
    %465 = arith.addf %461, %464 : vector<16x16xf32>
    %c0_109 = arith.constant 0 : index
    %c2 = arith.constant 2 : index
    %c0_110 = arith.constant 0 : index
    %c0_111 = arith.constant 0 : index
    %466 = vector.load %arg7[%c0_109, %c2, %c0_110, %c0_111] : memref<1x8x16x16xf32, #tpu.memory_space<vmem>>, vector<1x1x16x16xf32>
    %467 = vector.shape_cast %466 : vector<1x1x16x16xf32> to vector<16x16xf32>
    %468 = arith.addf %465, %467 : vector<16x16xf32>
    %c0_112 = arith.constant 0 : index
    %c2_113 = arith.constant 2 : index
    %c0_114 = arith.constant 0 : index
    %c0_115 = arith.constant 0 : index
    %469 = vector.load %arg8[%c0_112, %c2_113, %c0_114, %c0_115] : memref<1x8x16x16xf32, #tpu.memory_space<vmem>>, vector<1x1x16x16xf32>
    %470 = vector.shape_cast %469 : vector<1x1x16x16xf32> to vector<16x16xf32>
    %471 = vector.shape_cast %468 : vector<16x16xf32> to vector<1x1x16x16xf32>
    tpu.vector_store %arg8[%c0_112, %c2_113, %c0_114, %c0_115], %471 {strides = array<i32>} : memref<1x8x16x16xf32, #tpu.memory_space<vmem>>, vector<1x1x16x16xf32>,
    %c8_i32_116 = arith.constant 8 : i32
    %472 = arith.muli %arg1, %c8_i32_116 : i32
    %c3_i32_117 = arith.constant 3 : i32
    %473 = arith.addi %472, %c3_i32_117 : i32
    %c16_i32_118 = arith.constant 16 : i32
    %474 = arith.muli %473, %c16_i32_118 : i32
    %475 = arith.index_cast %474 : i32 to index
    %476 = memref.load %arg5[%475] : memref<128xf32, #tpu.memory_space<smem>>
    %477 = vector.extract_strided_slice %1 {offsets = [0, 0, 0], sizes = [1, 8, 8], strides = [1, 1, 1]} : vector<16x8x8xf32> to vector<1x8x8xf32>
    %478 = vector.shape_cast %477 : vector<1x8x8xf32> to vector<8x8xf32>
    %479 = vector.broadcast %476 : f32 to vector<8x8xf32>
    %480 = arith.mulf %479, %478 : vector<8x8xf32>
    %c16_i32_119 = arith.constant 16 : i32
    %481 = arith.muli %473, %c16_i32_119 : i32
    %c1_i32_120 = arith.constant 1 : i32
    %482 = arith.addi %481, %c1_i32_120 : i32
    %483 = arith.index_cast %482 : i32 to index
    %484 = memref.load %arg5[%483] : memref<128xf32, #tpu.memory_space<smem>>
    %485 = vector.extract_strided_slice %1 {offsets = [1, 0, 0], sizes = [1, 8, 8], strides = [1, 1, 1]} : vector<16x8x8xf32> to vector<1x8x8xf32>
    %486 = vector.shape_cast %485 : vector<1x8x8xf32> to vector<8x8xf32>
    %487 = vector.broadcast %484 : f32 to vector<8x8xf32>
    %488 = arith.mulf %487, %486 : vector<8x8xf32>
    %489 = arith.addf %480, %488 : vector<8x8xf32>
    %c16_i32_121 = arith.constant 16 : i32
    %490 = arith.muli %473, %c16_i32_121 : i32
    %c2_i32_122 = arith.constant 2 : i32
    %491 = arith.addi %490, %c2_i32_122 : i32
    %492 = arith.index_cast %491 : i32 to index
    %493 = memref.load %arg5[%492] : memref<128xf32, #tpu.memory_space<smem>>
    %494 = vector.extract_strided_slice %1 {offsets = [2, 0, 0], sizes = [1, 8, 8], strides = [1, 1, 1]} : vector<16x8x8xf32> to vector<1x8x8xf32>
    %495 = vector.shape_cast %494 : vector<1x8x8xf32> to vector<8x8xf32>
    %496 = vector.broadcast %493 : f32 to vector<8x8xf32>
    %497 = arith.mulf %496, %495 : vector<8x8xf32>
    %498 = arith.addf %489, %497 : vector<8x8xf32>
    %c16_i32_123 = arith.constant 16 : i32
    %499 = arith.muli %473, %c16_i32_123 : i32
    %c3_i32_124 = arith.constant 3 : i32
    %500 = arith.addi %499, %c3_i32_124 : i32
    %501 = arith.index_cast %500 : i32 to index
    %502 = memref.load %arg5[%501] : memref<128xf32, #tpu.memory_space<smem>>
    %503 = vector.extract_strided_slice %1 {offsets = [3, 0, 0], sizes = [1, 8, 8], strides = [1, 1, 1]} : vector<16x8x8xf32> to vector<1x8x8xf32>
    %504 = vector.shape_cast %503 : vector<1x8x8xf32> to vector<8x8xf32>
    %505 = vector.broadcast %502 : f32 to vector<8x8xf32>
    %506 = arith.mulf %505, %504 : vector<8x8xf32>
    %507 = arith.addf %498, %506 : vector<8x8xf32>
    %c16_i32_125 = arith.constant 16 : i32
    %508 = arith.muli %473, %c16_i32_125 : i32
    %c4_i32_126 = arith.constant 4 : i32
    %509 = arith.addi %508, %c4_i32_126 : i32
    %510 = arith.index_cast %509 : i32 to index
    %511 = memref.load %arg5[%510] : memref<128xf32, #tpu.memory_space<smem>>
    %512 = vector.extract_strided_slice %1 {offsets = [4, 0, 0], sizes = [1, 8, 8], strides = [1, 1, 1]} : vector<16x8x8xf32> to vector<1x8x8xf32>
    %513 = vector.shape_cast %512 : vector<1x8x8xf32> to vector<8x8xf32>
    %514 = vector.broadcast %511 : f32 to vector<8x8xf32>
    %515 = arith.mulf %514, %513 : vector<8x8xf32>
    %516 = arith.addf %507, %515 : vector<8x8xf32>
    %c16_i32_127 = arith.constant 16 : i32
    %517 = arith.muli %473, %c16_i32_127 : i32
    %c5_i32_128 = arith.constant 5 : i32
    %518 = arith.addi %517, %c5_i32_128 : i32
    %519 = arith.index_cast %518 : i32 to index
    %520 = memref.load %arg5[%519] : memref<128xf32, #tpu.memory_space<smem>>
    %521 = vector.extract_strided_slice %1 {offsets = [5, 0, 0], sizes = [1, 8, 8], strides = [1, 1, 1]} : vector<16x8x8xf32> to vector<1x8x8xf32>
    %522 = vector.shape_cast %521 : vector<1x8x8xf32> to vector<8x8xf32>
    %523 = vector.broadcast %520 : f32 to vector<8x8xf32>
    %524 = arith.mulf %523, %522 : vector<8x8xf32>
    %525 = arith.addf %516, %524 : vector<8x8xf32>
    %c16_i32_129 = arith.constant 16 : i32
    %526 = arith.muli %473, %c16_i32_129 : i32
    %c6_i32_130 = arith.constant 6 : i32
    %527 = arith.addi %526, %c6_i32_130 : i32
    %528 = arith.index_cast %527 : i32 to index
    %529 = memref.load %arg5[%528] : memref<128xf32, #tpu.memory_space<smem>>
    %530 = vector.extract_strided_slice %1 {offsets = [6, 0, 0], sizes = [1, 8, 8], strides = [1, 1, 1]} : vector<16x8x8xf32> to vector<1x8x8xf32>
    %531 = vector.shape_cast %530 : vector<1x8x8xf32> to vector<8x8xf32>
    %532 = vector.broadcast %529 : f32 to vector<8x8xf32>
    %533 = arith.mulf %532, %531 : vector<8x8xf32>
    %534 = arith.addf %525, %533 : vector<8x8xf32>
    %c16_i32_131 = arith.constant 16 : i32
    %535 = arith.muli %473, %c16_i32_131 : i32
    %c7_i32_132 = arith.constant 7 : i32
    %536 = arith.addi %535, %c7_i32_132 : i32
    %537 = arith.index_cast %536 : i32 to index
    %538 = memref.load %arg5[%537] : memref<128xf32, #tpu.memory_space<smem>>
    %539 = vector.extract_strided_slice %1 {offsets = [7, 0, 0], sizes = [1, 8, 8], strides = [1, 1, 1]} : vector<16x8x8xf32> to vector<1x8x8xf32>
    %540 = vector.shape_cast %539 : vector<1x8x8xf32> to vector<8x8xf32>
    %541 = vector.broadcast %538 : f32 to vector<8x8xf32>
    %542 = arith.mulf %541, %540 : vector<8x8xf32>
    %543 = arith.addf %534, %542 : vector<8x8xf32>
    %c16_i32_133 = arith.constant 16 : i32
    %544 = arith.muli %473, %c16_i32_133 : i32
    %c8_i32_134 = arith.constant 8 : i32
    %545 = arith.addi %544, %c8_i32_134 : i32
    %546 = arith.index_cast %545 : i32 to index
    %547 = memref.load %arg5[%546] : memref<128xf32, #tpu.memory_space<smem>>
    %548 = vector.extract_strided_slice %1 {offsets = [8, 0, 0], sizes = [1, 8, 8], strides = [1, 1, 1]} : vector<16x8x8xf32> to vector<1x8x8xf32>
    %549 = vector.shape_cast %548 : vector<1x8x8xf32> to vector<8x8xf32>
    %550 = vector.broadcast %547 : f32 to vector<8x8xf32>
    %551 = arith.mulf %550, %549 : vector<8x8xf32>
    %552 = arith.addf %543, %551 : vector<8x8xf32>
    %c16_i32_135 = arith.constant 16 : i32
    %553 = arith.muli %473, %c16_i32_135 : i32
    %c9_i32_136 = arith.constant 9 : i32
    %554 = arith.addi %553, %c9_i32_136 : i32
    %555 = arith.index_cast %554 : i32 to index
    %556 = memref.load %arg5[%555] : memref<128xf32, #tpu.memory_space<smem>>
    %557 = vector.extract_strided_slice %1 {offsets = [9, 0, 0], sizes = [1, 8, 8], strides = [1, 1, 1]} : vector<16x8x8xf32> to vector<1x8x8xf32>
    %558 = vector.shape_cast %557 : vector<1x8x8xf32> to vector<8x8xf32>
    %559 = vector.broadcast %556 : f32 to vector<8x8xf32>
    %560 = arith.mulf %559, %558 : vector<8x8xf32>
    %561 = arith.addf %552, %560 : vector<8x8xf32>
    %c16_i32_137 = arith.constant 16 : i32
    %562 = arith.muli %473, %c16_i32_137 : i32
    %c10_i32_138 = arith.constant 10 : i32
    %563 = arith.addi %562, %c10_i32_138 : i32
    %564 = arith.index_cast %563 : i32 to index
    %565 = memref.load %arg5[%564] : memref<128xf32, #tpu.memory_space<smem>>
    %566 = vector.extract_strided_slice %1 {offsets = [10, 0, 0], sizes = [1, 8, 8], strides = [1, 1, 1]} : vector<16x8x8xf32> to vector<1x8x8xf32>
    %567 = vector.shape_cast %566 : vector<1x8x8xf32> to vector<8x8xf32>
    %568 = vector.broadcast %565 : f32 to vector<8x8xf32>
    %569 = arith.mulf %568, %567 : vector<8x8xf32>
    %570 = arith.addf %561, %569 : vector<8x8xf32>
    %c16_i32_139 = arith.constant 16 : i32
    %571 = arith.muli %473, %c16_i32_139 : i32
    %c11_i32_140 = arith.constant 11 : i32
    %572 = arith.addi %571, %c11_i32_140 : i32
    %573 = arith.index_cast %572 : i32 to index
    %574 = memref.load %arg5[%573] : memref<128xf32, #tpu.memory_space<smem>>
    %575 = vector.extract_strided_slice %1 {offsets = [11, 0, 0], sizes = [1, 8, 8], strides = [1, 1, 1]} : vector<16x8x8xf32> to vector<1x8x8xf32>
    %576 = vector.shape_cast %575 : vector<1x8x8xf32> to vector<8x8xf32>
    %577 = vector.broadcast %574 : f32 to vector<8x8xf32>
    %578 = arith.mulf %577, %576 : vector<8x8xf32>
    %579 = arith.addf %570, %578 : vector<8x8xf32>
    %c16_i32_141 = arith.constant 16 : i32
    %580 = arith.muli %473, %c16_i32_141 : i32
    %c12_i32_142 = arith.constant 12 : i32
    %581 = arith.addi %580, %c12_i32_142 : i32
    %582 = arith.index_cast %581 : i32 to index
    %583 = memref.load %arg5[%582] : memref<128xf32, #tpu.memory_space<smem>>
    %584 = vector.extract_strided_slice %1 {offsets = [12, 0, 0], sizes = [1, 8, 8], strides = [1, 1, 1]} : vector<16x8x8xf32> to vector<1x8x8xf32>
    %585 = vector.shape_cast %584 : vector<1x8x8xf32> to vector<8x8xf32>
    %586 = vector.broadcast %583 : f32 to vector<8x8xf32>
    %587 = arith.mulf %586, %585 : vector<8x8xf32>
    %588 = arith.addf %579, %587 : vector<8x8xf32>
    %c16_i32_143 = arith.constant 16 : i32
    %589 = arith.muli %473, %c16_i32_143 : i32
    %c13_i32_144 = arith.constant 13 : i32
    %590 = arith.addi %589, %c13_i32_144 : i32
    %591 = arith.index_cast %590 : i32 to index
    %592 = memref.load %arg5[%591] : memref<128xf32, #tpu.memory_space<smem>>
    %593 = vector.extract_strided_slice %1 {offsets = [13, 0, 0], sizes = [1, 8, 8], strides = [1, 1, 1]} : vector<16x8x8xf32> to vector<1x8x8xf32>
    %594 = vector.shape_cast %593 : vector<1x8x8xf32> to vector<8x8xf32>
    %595 = vector.broadcast %592 : f32 to vector<8x8xf32>
    %596 = arith.mulf %595, %594 : vector<8x8xf32>
    %597 = arith.addf %588, %596 : vector<8x8xf32>
    %c16_i32_145 = arith.constant 16 : i32
    %598 = arith.muli %473, %c16_i32_145 : i32
    %c14_i32_146 = arith.constant 14 : i32
    %599 = arith.addi %598, %c14_i32_146 : i32
    %600 = arith.index_cast %599 : i32 to index
    %601 = memref.load %arg5[%600] : memref<128xf32, #tpu.memory_space<smem>>
    %602 = vector.extract_strided_slice %1 {offsets = [14, 0, 0], sizes = [1, 8, 8], strides = [1, 1, 1]} : vector<16x8x8xf32> to vector<1x8x8xf32>
    %603 = vector.shape_cast %602 : vector<1x8x8xf32> to vector<8x8xf32>
    %604 = vector.broadcast %601 : f32 to vector<8x8xf32>
    %605 = arith.mulf %604, %603 : vector<8x8xf32>
    %606 = arith.addf %597, %605 : vector<8x8xf32>
    %c16_i32_147 = arith.constant 16 : i32
    %607 = arith.muli %473, %c16_i32_147 : i32
    %c15_i32_148 = arith.constant 15 : i32
    %608 = arith.addi %607, %c15_i32_148 : i32
    %609 = arith.index_cast %608 : i32 to index
    %610 = memref.load %arg5[%609] : memref<128xf32, #tpu.memory_space<smem>>
    %611 = vector.extract_strided_slice %1 {offsets = [15, 0, 0], sizes = [1, 8, 8], strides = [1, 1, 1]} : vector<16x8x8xf32> to vector<1x8x8xf32>
    %612 = vector.shape_cast %611 : vector<1x8x8xf32> to vector<8x8xf32>
    %613 = vector.broadcast %610 : f32 to vector<8x8xf32>
    %614 = arith.mulf %613, %612 : vector<8x8xf32>
    %615 = arith.addf %606, %614 : vector<8x8xf32>
    %cst_149 = arith.constant dense<0.000000e+00> : vector<8x16xf32>
    %616 = tpu.matmul %615, %3, %cst_149 {dimension_numbers = #tpu.dot_dimension_numbers<[1], [0], [0], [1], [0, 0, 1, 1], [], []>} : vector<8x8xf32>, vector<8x16xf32>, vector<8x16xf32> -> vector<8x16xf32>
    %cst_150 = arith.constant dense<0.000000e+00> : vector<16x16xf32>
    %617 = tpu.matmul %2, %616, %cst_150 {dimension_numbers = #tpu.dot_dimension_numbers<[1], [0], [0], [1], [0, 0, 1, 1], [], []>} : vector<16x8xf32>, vector<8x16xf32>, vector<16x16xf32> -> vector<16x16xf32>
    %618 = arith.index_cast %473 : i32 to index
    %619 = memref.load %arg6[%618] : memref<8xf32, #tpu.memory_space<smem>>
    %620 = vector.broadcast %619 : f32 to vector<16x16xf32>
    %621 = arith.addf %617, %620 : vector<16x16xf32>
    %c0_151 = arith.constant 0 : index
    %c3 = arith.constant 3 : index
    %c0_152 = arith.constant 0 : index
    %c0_153 = arith.constant 0 : index
    %622 = vector.load %arg7[%c0_151, %c3, %c0_152, %c0_153] : memref<1x8x16x16xf32, #tpu.memory_space<vmem>>, vector<1x1x16x16xf32>
    %623 = vector.shape_cast %622 : vector<1x1x16x16xf32> to vector<16x16xf32>
    %624 = arith.addf %621, %623 : vector<16x16xf32>
    %c0_154 = arith.constant 0 : index
    %c3_155 = arith.constant 3 : index
    %c0_156 = arith.constant 0 : index
    %c0_157 = arith.constant 0 : index
    %625 = vector.load %arg8[%c0_154, %c3_155, %c0_156, %c0_157] : memref<1x8x16x16xf32, #tpu.memory_space<vmem>>, vector<1x1x16x16xf32>
    %626 = vector.shape_cast %625 : vector<1x1x16x16xf32> to vector<16x16xf32>
    %627 = vector.shape_cast %624 : vector<16x16xf32> to vector<1x1x16x16xf32>
    tpu.vector_store %arg8[%c0_154, %c3_155, %c0_156, %c0_157], %627 {strides = array<i32>} : memref<1x8x16x16xf32, #tpu.memory_space<vmem>>, vector<1x1x16x16xf32>,
    %c8_i32_158 = arith.constant 8 : i32
    %628 = arith.muli %arg1, %c8_i32_158 : i32
    %c4_i32_159 = arith.constant 4 : i32
    %629 = arith.addi %628, %c4_i32_159 : i32
    %c16_i32_160 = arith.constant 16 : i32
    %630 = arith.muli %629, %c16_i32_160 : i32
    %631 = arith.index_cast %630 : i32 to index
    %632 = memref.load %arg5[%631] : memref<128xf32, #tpu.memory_space<smem>>
    %633 = vector.extract_strided_slice %1 {offsets = [0, 0, 0], sizes = [1, 8, 8], strides = [1, 1, 1]} : vector<16x8x8xf32> to vector<1x8x8xf32>
    %634 = vector.shape_cast %633 : vector<1x8x8xf32> to vector<8x8xf32>
    %635 = vector.broadcast %632 : f32 to vector<8x8xf32>
    %636 = arith.mulf %635, %634 : vector<8x8xf32>
    %c16_i32_161 = arith.constant 16 : i32
    %637 = arith.muli %629, %c16_i32_161 : i32
    %c1_i32_162 = arith.constant 1 : i32
    %638 = arith.addi %637, %c1_i32_162 : i32
    %639 = arith.index_cast %638 : i32 to index
    %640 = memref.load %arg5[%639] : memref<128xf32, #tpu.memory_space<smem>>
    %641 = vector.extract_strided_slice %1 {offsets = [1, 0, 0], sizes = [1, 8, 8], strides = [1, 1, 1]} : vector<16x8x8xf32> to vector<1x8x8xf32>
    %642 = vector.shape_cast %641 : vector<1x8x8xf32> to vector<8x8xf32>
    %643 = vector.broadcast %640 : f32 to vector<8x8xf32>
    %644 = arith.mulf %643, %642 : vector<8x8xf32>
    %645 = arith.addf %636, %644 : vector<8x8xf32>
    %c16_i32_163 = arith.constant 16 : i32
    %646 = arith.muli %629, %c16_i32_163 : i32
    %c2_i32_164 = arith.constant 2 : i32
    %647 = arith.addi %646, %c2_i32_164 : i32
    %648 = arith.index_cast %647 : i32 to index
    %649 = memref.load %arg5[%648] : memref<128xf32, #tpu.memory_space<smem>>
    %650 = vector.extract_strided_slice %1 {offsets = [2, 0, 0], sizes = [1, 8, 8], strides = [1, 1, 1]} : vector<16x8x8xf32> to vector<1x8x8xf32>
    %651 = vector.shape_cast %650 : vector<1x8x8xf32> to vector<8x8xf32>
    %652 = vector.broadcast %649 : f32 to vector<8x8xf32>
    %653 = arith.mulf %652, %651 : vector<8x8xf32>
    %654 = arith.addf %645, %653 : vector<8x8xf32>
    %c16_i32_165 = arith.constant 16 : i32
    %655 = arith.muli %629, %c16_i32_165 : i32
    %c3_i32_166 = arith.constant 3 : i32
    %656 = arith.addi %655, %c3_i32_166 : i32
    %657 = arith.index_cast %656 : i32 to index
    %658 = memref.load %arg5[%657] : memref<128xf32, #tpu.memory_space<smem>>
    %659 = vector.extract_strided_slice %1 {offsets = [3, 0, 0], sizes = [1, 8, 8], strides = [1, 1, 1]} : vector<16x8x8xf32> to vector<1x8x8xf32>
    %660 = vector.shape_cast %659 : vector<1x8x8xf32> to vector<8x8xf32>
    %661 = vector.broadcast %658 : f32 to vector<8x8xf32>
    %662 = arith.mulf %661, %660 : vector<8x8xf32>
    %663 = arith.addf %654, %662 : vector<8x8xf32>
    %c16_i32_167 = arith.constant 16 : i32
    %664 = arith.muli %629, %c16_i32_167 : i32
    %c4_i32_168 = arith.constant 4 : i32
    %665 = arith.addi %664, %c4_i32_168 : i32
    %666 = arith.index_cast %665 : i32 to index
    %667 = memref.load %arg5[%666] : memref<128xf32, #tpu.memory_space<smem>>
    %668 = vector.extract_strided_slice %1 {offsets = [4, 0, 0], sizes = [1, 8, 8], strides = [1, 1, 1]} : vector<16x8x8xf32> to vector<1x8x8xf32>
    %669 = vector.shape_cast %668 : vector<1x8x8xf32> to vector<8x8xf32>
    %670 = vector.broadcast %667 : f32 to vector<8x8xf32>
    %671 = arith.mulf %670, %669 : vector<8x8xf32>
    %672 = arith.addf %663, %671 : vector<8x8xf32>
    %c16_i32_169 = arith.constant 16 : i32
    %673 = arith.muli %629, %c16_i32_169 : i32
    %c5_i32_170 = arith.constant 5 : i32
    %674 = arith.addi %673, %c5_i32_170 : i32
    %675 = arith.index_cast %674 : i32 to index
    %676 = memref.load %arg5[%675] : memref<128xf32, #tpu.memory_space<smem>>
    %677 = vector.extract_strided_slice %1 {offsets = [5, 0, 0], sizes = [1, 8, 8], strides = [1, 1, 1]} : vector<16x8x8xf32> to vector<1x8x8xf32>
    %678 = vector.shape_cast %677 : vector<1x8x8xf32> to vector<8x8xf32>
    %679 = vector.broadcast %676 : f32 to vector<8x8xf32>
    %680 = arith.mulf %679, %678 : vector<8x8xf32>
    %681 = arith.addf %672, %680 : vector<8x8xf32>
    %c16_i32_171 = arith.constant 16 : i32
    %682 = arith.muli %629, %c16_i32_171 : i32
    %c6_i32_172 = arith.constant 6 : i32
    %683 = arith.addi %682, %c6_i32_172 : i32
    %684 = arith.index_cast %683 : i32 to index
    %685 = memref.load %arg5[%684] : memref<128xf32, #tpu.memory_space<smem>>
    %686 = vector.extract_strided_slice %1 {offsets = [6, 0, 0], sizes = [1, 8, 8], strides = [1, 1, 1]} : vector<16x8x8xf32> to vector<1x8x8xf32>
    %687 = vector.shape_cast %686 : vector<1x8x8xf32> to vector<8x8xf32>
    %688 = vector.broadcast %685 : f32 to vector<8x8xf32>
    %689 = arith.mulf %688, %687 : vector<8x8xf32>
    %690 = arith.addf %681, %689 : vector<8x8xf32>
    %c16_i32_173 = arith.constant 16 : i32
    %691 = arith.muli %629, %c16_i32_173 : i32
    %c7_i32_174 = arith.constant 7 : i32
    %692 = arith.addi %691, %c7_i32_174 : i32
    %693 = arith.index_cast %692 : i32 to index
    %694 = memref.load %arg5[%693] : memref<128xf32, #tpu.memory_space<smem>>
    %695 = vector.extract_strided_slice %1 {offsets = [7, 0, 0], sizes = [1, 8, 8], strides = [1, 1, 1]} : vector<16x8x8xf32> to vector<1x8x8xf32>
    %696 = vector.shape_cast %695 : vector<1x8x8xf32> to vector<8x8xf32>
    %697 = vector.broadcast %694 : f32 to vector<8x8xf32>
    %698 = arith.mulf %697, %696 : vector<8x8xf32>
    %699 = arith.addf %690, %698 : vector<8x8xf32>
    %c16_i32_175 = arith.constant 16 : i32
    %700 = arith.muli %629, %c16_i32_175 : i32
    %c8_i32_176 = arith.constant 8 : i32
    %701 = arith.addi %700, %c8_i32_176 : i32
    %702 = arith.index_cast %701 : i32 to index
    %703 = memref.load %arg5[%702] : memref<128xf32, #tpu.memory_space<smem>>
    %704 = vector.extract_strided_slice %1 {offsets = [8, 0, 0], sizes = [1, 8, 8], strides = [1, 1, 1]} : vector<16x8x8xf32> to vector<1x8x8xf32>
    %705 = vector.shape_cast %704 : vector<1x8x8xf32> to vector<8x8xf32>
    %706 = vector.broadcast %703 : f32 to vector<8x8xf32>
    %707 = arith.mulf %706, %705 : vector<8x8xf32>
    %708 = arith.addf %699, %707 : vector<8x8xf32>
    %c16_i32_177 = arith.constant 16 : i32
    %709 = arith.muli %629, %c16_i32_177 : i32
    %c9_i32_178 = arith.constant 9 : i32
    %710 = arith.addi %709, %c9_i32_178 : i32
    %711 = arith.index_cast %710 : i32 to index
    %712 = memref.load %arg5[%711] : memref<128xf32, #tpu.memory_space<smem>>
    %713 = vector.extract_strided_slice %1 {offsets = [9, 0, 0], sizes = [1, 8, 8], strides = [1, 1, 1]} : vector<16x8x8xf32> to vector<1x8x8xf32>
    %714 = vector.shape_cast %713 : vector<1x8x8xf32> to vector<8x8xf32>
    %715 = vector.broadcast %712 : f32 to vector<8x8xf32>
    %716 = arith.mulf %715, %714 : vector<8x8xf32>
    %717 = arith.addf %708, %716 : vector<8x8xf32>
    %c16_i32_179 = arith.constant 16 : i32
    %718 = arith.muli %629, %c16_i32_179 : i32
    %c10_i32_180 = arith.constant 10 : i32
    %719 = arith.addi %718, %c10_i32_180 : i32
    %720 = arith.index_cast %719 : i32 to index
    %721 = memref.load %arg5[%720] : memref<128xf32, #tpu.memory_space<smem>>
    %722 = vector.extract_strided_slice %1 {offsets = [10, 0, 0], sizes = [1, 8, 8], strides = [1, 1, 1]} : vector<16x8x8xf32> to vector<1x8x8xf32>
    %723 = vector.shape_cast %722 : vector<1x8x8xf32> to vector<8x8xf32>
    %724 = vector.broadcast %721 : f32 to vector<8x8xf32>
    %725 = arith.mulf %724, %723 : vector<8x8xf32>
    %726 = arith.addf %717, %725 : vector<8x8xf32>
    %c16_i32_181 = arith.constant 16 : i32
    %727 = arith.muli %629, %c16_i32_181 : i32
    %c11_i32_182 = arith.constant 11 : i32
    %728 = arith.addi %727, %c11_i32_182 : i32
    %729 = arith.index_cast %728 : i32 to index
    %730 = memref.load %arg5[%729] : memref<128xf32, #tpu.memory_space<smem>>
    %731 = vector.extract_strided_slice %1 {offsets = [11, 0, 0], sizes = [1, 8, 8], strides = [1, 1, 1]} : vector<16x8x8xf32> to vector<1x8x8xf32>
    %732 = vector.shape_cast %731 : vector<1x8x8xf32> to vector<8x8xf32>
    %733 = vector.broadcast %730 : f32 to vector<8x8xf32>
    %734 = arith.mulf %733, %732 : vector<8x8xf32>
    %735 = arith.addf %726, %734 : vector<8x8xf32>
    %c16_i32_183 = arith.constant 16 : i32
    %736 = arith.muli %629, %c16_i32_183 : i32
    %c12_i32_184 = arith.constant 12 : i32
    %737 = arith.addi %736, %c12_i32_184 : i32
    %738 = arith.index_cast %737 : i32 to index
    %739 = memref.load %arg5[%738] : memref<128xf32, #tpu.memory_space<smem>>
    %740 = vector.extract_strided_slice %1 {offsets = [12, 0, 0], sizes = [1, 8, 8], strides = [1, 1, 1]} : vector<16x8x8xf32> to vector<1x8x8xf32>
    %741 = vector.shape_cast %740 : vector<1x8x8xf32> to vector<8x8xf32>
    %742 = vector.broadcast %739 : f32 to vector<8x8xf32>
    %743 = arith.mulf %742, %741 : vector<8x8xf32>
    %744 = arith.addf %735, %743 : vector<8x8xf32>
    %c16_i32_185 = arith.constant 16 : i32
    %745 = arith.muli %629, %c16_i32_185 : i32
    %c13_i32_186 = arith.constant 13 : i32
    %746 = arith.addi %745, %c13_i32_186 : i32
    %747 = arith.index_cast %746 : i32 to index
    %748 = memref.load %arg5[%747] : memref<128xf32, #tpu.memory_space<smem>>
    %749 = vector.extract_strided_slice %1 {offsets = [13, 0, 0], sizes = [1, 8, 8], strides = [1, 1, 1]} : vector<16x8x8xf32> to vector<1x8x8xf32>
    %750 = vector.shape_cast %749 : vector<1x8x8xf32> to vector<8x8xf32>
    %751 = vector.broadcast %748 : f32 to vector<8x8xf32>
    %752 = arith.mulf %751, %750 : vector<8x8xf32>
    %753 = arith.addf %744, %752 : vector<8x8xf32>
    %c16_i32_187 = arith.constant 16 : i32
    %754 = arith.muli %629, %c16_i32_187 : i32
    %c14_i32_188 = arith.constant 14 : i32
    %755 = arith.addi %754, %c14_i32_188 : i32
    %756 = arith.index_cast %755 : i32 to index
    %757 = memref.load %arg5[%756] : memref<128xf32, #tpu.memory_space<smem>>
    %758 = vector.extract_strided_slice %1 {offsets = [14, 0, 0], sizes = [1, 8, 8], strides = [1, 1, 1]} : vector<16x8x8xf32> to vector<1x8x8xf32>
    %759 = vector.shape_cast %758 : vector<1x8x8xf32> to vector<8x8xf32>
    %760 = vector.broadcast %757 : f32 to vector<8x8xf32>
    %761 = arith.mulf %760, %759 : vector<8x8xf32>
    %762 = arith.addf %753, %761 : vector<8x8xf32>
    %c16_i32_189 = arith.constant 16 : i32
    %763 = arith.muli %629, %c16_i32_189 : i32
    %c15_i32_190 = arith.constant 15 : i32
    %764 = arith.addi %763, %c15_i32_190 : i32
    %765 = arith.index_cast %764 : i32 to index
    %766 = memref.load %arg5[%765] : memref<128xf32, #tpu.memory_space<smem>>
    %767 = vector.extract_strided_slice %1 {offsets = [15, 0, 0], sizes = [1, 8, 8], strides = [1, 1, 1]} : vector<16x8x8xf32> to vector<1x8x8xf32>
    %768 = vector.shape_cast %767 : vector<1x8x8xf32> to vector<8x8xf32>
    %769 = vector.broadcast %766 : f32 to vector<8x8xf32>
    %770 = arith.mulf %769, %768 : vector<8x8xf32>
    %771 = arith.addf %762, %770 : vector<8x8xf32>
    %cst_191 = arith.constant dense<0.000000e+00> : vector<8x16xf32>
    %772 = tpu.matmul %771, %3, %cst_191 {dimension_numbers = #tpu.dot_dimension_numbers<[1], [0], [0], [1], [0, 0, 1, 1], [], []>} : vector<8x8xf32>, vector<8x16xf32>, vector<8x16xf32> -> vector<8x16xf32>
    %cst_192 = arith.constant dense<0.000000e+00> : vector<16x16xf32>
    %773 = tpu.matmul %2, %772, %cst_192 {dimension_numbers = #tpu.dot_dimension_numbers<[1], [0], [0], [1], [0, 0, 1, 1], [], []>} : vector<16x8xf32>, vector<8x16xf32>, vector<16x16xf32> -> vector<16x16xf32>
    %774 = arith.index_cast %629 : i32 to index
    %775 = memref.load %arg6[%774] : memref<8xf32, #tpu.memory_space<smem>>
    %776 = vector.broadcast %775 : f32 to vector<16x16xf32>
    %777 = arith.addf %773, %776 : vector<16x16xf32>
    %c0_193 = arith.constant 0 : index
    %c4 = arith.constant 4 : index
    %c0_194 = arith.constant 0 : index
    %c0_195 = arith.constant 0 : index
    %778 = vector.load %arg7[%c0_193, %c4, %c0_194, %c0_195] : memref<1x8x16x16xf32, #tpu.memory_space<vmem>>, vector<1x1x16x16xf32>
    %779 = vector.shape_cast %778 : vector<1x1x16x16xf32> to vector<16x16xf32>
    %780 = arith.addf %777, %779 : vector<16x16xf32>
    %c0_196 = arith.constant 0 : index
    %c4_197 = arith.constant 4 : index
    %c0_198 = arith.constant 0 : index
    %c0_199 = arith.constant 0 : index
    %781 = vector.load %arg8[%c0_196, %c4_197, %c0_198, %c0_199] : memref<1x8x16x16xf32, #tpu.memory_space<vmem>>, vector<1x1x16x16xf32>
    %782 = vector.shape_cast %781 : vector<1x1x16x16xf32> to vector<16x16xf32>
    %783 = vector.shape_cast %780 : vector<16x16xf32> to vector<1x1x16x16xf32>
    tpu.vector_store %arg8[%c0_196, %c4_197, %c0_198, %c0_199], %783 {strides = array<i32>} : memref<1x8x16x16xf32, #tpu.memory_space<vmem>>, vector<1x1x16x16xf32>,
    %c8_i32_200 = arith.constant 8 : i32
    %784 = arith.muli %arg1, %c8_i32_200 : i32
    %c5_i32_201 = arith.constant 5 : i32
    %785 = arith.addi %784, %c5_i32_201 : i32
    %c16_i32_202 = arith.constant 16 : i32
    %786 = arith.muli %785, %c16_i32_202 : i32
    %787 = arith.index_cast %786 : i32 to index
    %788 = memref.load %arg5[%787] : memref<128xf32, #tpu.memory_space<smem>>
    %789 = vector.extract_strided_slice %1 {offsets = [0, 0, 0], sizes = [1, 8, 8], strides = [1, 1, 1]} : vector<16x8x8xf32> to vector<1x8x8xf32>
    %790 = vector.shape_cast %789 : vector<1x8x8xf32> to vector<8x8xf32>
    %791 = vector.broadcast %788 : f32 to vector<8x8xf32>
    %792 = arith.mulf %791, %790 : vector<8x8xf32>
    %c16_i32_203 = arith.constant 16 : i32
    %793 = arith.muli %785, %c16_i32_203 : i32
    %c1_i32_204 = arith.constant 1 : i32
    %794 = arith.addi %793, %c1_i32_204 : i32
    %795 = arith.index_cast %794 : i32 to index
    %796 = memref.load %arg5[%795] : memref<128xf32, #tpu.memory_space<smem>>
    %797 = vector.extract_strided_slice %1 {offsets = [1, 0, 0], sizes = [1, 8, 8], strides = [1, 1, 1]} : vector<16x8x8xf32> to vector<1x8x8xf32>
    %798 = vector.shape_cast %797 : vector<1x8x8xf32> to vector<8x8xf32>
    %799 = vector.broadcast %796 : f32 to vector<8x8xf32>
    %800 = arith.mulf %799, %798 : vector<8x8xf32>
    %801 = arith.addf %792, %800 : vector<8x8xf32>
    %c16_i32_205 = arith.constant 16 : i32
    %802 = arith.muli %785, %c16_i32_205 : i32
    %c2_i32_206 = arith.constant 2 : i32
    %803 = arith.addi %802, %c2_i32_206 : i32
    %804 = arith.index_cast %803 : i32 to index
    %805 = memref.load %arg5[%804] : memref<128xf32, #tpu.memory_space<smem>>
    %806 = vector.extract_strided_slice %1 {offsets = [2, 0, 0], sizes = [1, 8, 8], strides = [1, 1, 1]} : vector<16x8x8xf32> to vector<1x8x8xf32>
    %807 = vector.shape_cast %806 : vector<1x8x8xf32> to vector<8x8xf32>
    %808 = vector.broadcast %805 : f32 to vector<8x8xf32>
    %809 = arith.mulf %808, %807 : vector<8x8xf32>
    %810 = arith.addf %801, %809 : vector<8x8xf32>
    %c16_i32_207 = arith.constant 16 : i32
    %811 = arith.muli %785, %c16_i32_207 : i32
    %c3_i32_208 = arith.constant 3 : i32
    %812 = arith.addi %811, %c3_i32_208 : i32
    %813 = arith.index_cast %812 : i32 to index
    %814 = memref.load %arg5[%813] : memref<128xf32, #tpu.memory_space<smem>>
    %815 = vector.extract_strided_slice %1 {offsets = [3, 0, 0], sizes = [1, 8, 8], strides = [1, 1, 1]} : vector<16x8x8xf32> to vector<1x8x8xf32>
    %816 = vector.shape_cast %815 : vector<1x8x8xf32> to vector<8x8xf32>
    %817 = vector.broadcast %814 : f32 to vector<8x8xf32>
    %818 = arith.mulf %817, %816 : vector<8x8xf32>
    %819 = arith.addf %810, %818 : vector<8x8xf32>
    %c16_i32_209 = arith.constant 16 : i32
    %820 = arith.muli %785, %c16_i32_209 : i32
    %c4_i32_210 = arith.constant 4 : i32
    %821 = arith.addi %820, %c4_i32_210 : i32
    %822 = arith.index_cast %821 : i32 to index
    %823 = memref.load %arg5[%822] : memref<128xf32, #tpu.memory_space<smem>>
    %824 = vector.extract_strided_slice %1 {offsets = [4, 0, 0], sizes = [1, 8, 8], strides = [1, 1, 1]} : vector<16x8x8xf32> to vector<1x8x8xf32>
    %825 = vector.shape_cast %824 : vector<1x8x8xf32> to vector<8x8xf32>
    %826 = vector.broadcast %823 : f32 to vector<8x8xf32>
    %827 = arith.mulf %826, %825 : vector<8x8xf32>
    %828 = arith.addf %819, %827 : vector<8x8xf32>
    %c16_i32_211 = arith.constant 16 : i32
    %829 = arith.muli %785, %c16_i32_211 : i32
    %c5_i32_212 = arith.constant 5 : i32
    %830 = arith.addi %829, %c5_i32_212 : i32
    %831 = arith.index_cast %830 : i32 to index
    %832 = memref.load %arg5[%831] : memref<128xf32, #tpu.memory_space<smem>>
    %833 = vector.extract_strided_slice %1 {offsets = [5, 0, 0], sizes = [1, 8, 8], strides = [1, 1, 1]} : vector<16x8x8xf32> to vector<1x8x8xf32>
    %834 = vector.shape_cast %833 : vector<1x8x8xf32> to vector<8x8xf32>
    %835 = vector.broadcast %832 : f32 to vector<8x8xf32>
    %836 = arith.mulf %835, %834 : vector<8x8xf32>
    %837 = arith.addf %828, %836 : vector<8x8xf32>
    %c16_i32_213 = arith.constant 16 : i32
    %838 = arith.muli %785, %c16_i32_213 : i32
    %c6_i32_214 = arith.constant 6 : i32
    %839 = arith.addi %838, %c6_i32_214 : i32
    %840 = arith.index_cast %839 : i32 to index
    %841 = memref.load %arg5[%840] : memref<128xf32, #tpu.memory_space<smem>>
    %842 = vector.extract_strided_slice %1 {offsets = [6, 0, 0], sizes = [1, 8, 8], strides = [1, 1, 1]} : vector<16x8x8xf32> to vector<1x8x8xf32>
    %843 = vector.shape_cast %842 : vector<1x8x8xf32> to vector<8x8xf32>
    %844 = vector.broadcast %841 : f32 to vector<8x8xf32>
    %845 = arith.mulf %844, %843 : vector<8x8xf32>
    %846 = arith.addf %837, %845 : vector<8x8xf32>
    %c16_i32_215 = arith.constant 16 : i32
    %847 = arith.muli %785, %c16_i32_215 : i32
    %c7_i32_216 = arith.constant 7 : i32
    %848 = arith.addi %847, %c7_i32_216 : i32
    %849 = arith.index_cast %848 : i32 to index
    %850 = memref.load %arg5[%849] : memref<128xf32, #tpu.memory_space<smem>>
    %851 = vector.extract_strided_slice %1 {offsets = [7, 0, 0], sizes = [1, 8, 8], strides = [1, 1, 1]} : vector<16x8x8xf32> to vector<1x8x8xf32>
    %852 = vector.shape_cast %851 : vector<1x8x8xf32> to vector<8x8xf32>
    %853 = vector.broadcast %850 : f32 to vector<8x8xf32>
    %854 = arith.mulf %853, %852 : vector<8x8xf32>
    %855 = arith.addf %846, %854 : vector<8x8xf32>
    %c16_i32_217 = arith.constant 16 : i32
    %856 = arith.muli %785, %c16_i32_217 : i32
    %c8_i32_218 = arith.constant 8 : i32
    %857 = arith.addi %856, %c8_i32_218 : i32
    %858 = arith.index_cast %857 : i32 to index
    %859 = memref.load %arg5[%858] : memref<128xf32, #tpu.memory_space<smem>>
    %860 = vector.extract_strided_slice %1 {offsets = [8, 0, 0], sizes = [1, 8, 8], strides = [1, 1, 1]} : vector<16x8x8xf32> to vector<1x8x8xf32>
    %861 = vector.shape_cast %860 : vector<1x8x8xf32> to vector<8x8xf32>
    %862 = vector.broadcast %859 : f32 to vector<8x8xf32>
    %863 = arith.mulf %862, %861 : vector<8x8xf32>
    %864 = arith.addf %855, %863 : vector<8x8xf32>
    %c16_i32_219 = arith.constant 16 : i32
    %865 = arith.muli %785, %c16_i32_219 : i32
    %c9_i32_220 = arith.constant 9 : i32
    %866 = arith.addi %865, %c9_i32_220 : i32
    %867 = arith.index_cast %866 : i32 to index
    %868 = memref.load %arg5[%867] : memref<128xf32, #tpu.memory_space<smem>>
    %869 = vector.extract_strided_slice %1 {offsets = [9, 0, 0], sizes = [1, 8, 8], strides = [1, 1, 1]} : vector<16x8x8xf32> to vector<1x8x8xf32>
    %870 = vector.shape_cast %869 : vector<1x8x8xf32> to vector<8x8xf32>
    %871 = vector.broadcast %868 : f32 to vector<8x8xf32>
    %872 = arith.mulf %871, %870 : vector<8x8xf32>
    %873 = arith.addf %864, %872 : vector<8x8xf32>
    %c16_i32_221 = arith.constant 16 : i32
    %874 = arith.muli %785, %c16_i32_221 : i32
    %c10_i32_222 = arith.constant 10 : i32
    %875 = arith.addi %874, %c10_i32_222 : i32
    %876 = arith.index_cast %875 : i32 to index
    %877 = memref.load %arg5[%876] : memref<128xf32, #tpu.memory_space<smem>>
    %878 = vector.extract_strided_slice %1 {offsets = [10, 0, 0], sizes = [1, 8, 8], strides = [1, 1, 1]} : vector<16x8x8xf32> to vector<1x8x8xf32>
    %879 = vector.shape_cast %878 : vector<1x8x8xf32> to vector<8x8xf32>
    %880 = vector.broadcast %877 : f32 to vector<8x8xf32>
    %881 = arith.mulf %880, %879 : vector<8x8xf32>
    %882 = arith.addf %873, %881 : vector<8x8xf32>
    %c16_i32_223 = arith.constant 16 : i32
    %883 = arith.muli %785, %c16_i32_223 : i32
    %c11_i32_224 = arith.constant 11 : i32
    %884 = arith.addi %883, %c11_i32_224 : i32
    %885 = arith.index_cast %884 : i32 to index
    %886 = memref.load %arg5[%885] : memref<128xf32, #tpu.memory_space<smem>>
    %887 = vector.extract_strided_slice %1 {offsets = [11, 0, 0], sizes = [1, 8, 8], strides = [1, 1, 1]} : vector<16x8x8xf32> to vector<1x8x8xf32>
    %888 = vector.shape_cast %887 : vector<1x8x8xf32> to vector<8x8xf32>
    %889 = vector.broadcast %886 : f32 to vector<8x8xf32>
    %890 = arith.mulf %889, %888 : vector<8x8xf32>
    %891 = arith.addf %882, %890 : vector<8x8xf32>
    %c16_i32_225 = arith.constant 16 : i32
    %892 = arith.muli %785, %c16_i32_225 : i32
    %c12_i32_226 = arith.constant 12 : i32
    %893 = arith.addi %892, %c12_i32_226 : i32
    %894 = arith.index_cast %893 : i32 to index
    %895 = memref.load %arg5[%894] : memref<128xf32, #tpu.memory_space<smem>>
    %896 = vector.extract_strided_slice %1 {offsets = [12, 0, 0], sizes = [1, 8, 8], strides = [1, 1, 1]} : vector<16x8x8xf32> to vector<1x8x8xf32>
    %897 = vector.shape_cast %896 : vector<1x8x8xf32> to vector<8x8xf32>
    %898 = vector.broadcast %895 : f32 to vector<8x8xf32>
    %899 = arith.mulf %898, %897 : vector<8x8xf32>
    %900 = arith.addf %891, %899 : vector<8x8xf32>
    %c16_i32_227 = arith.constant 16 : i32
    %901 = arith.muli %785, %c16_i32_227 : i32
    %c13_i32_228 = arith.constant 13 : i32
    %902 = arith.addi %901, %c13_i32_228 : i32
    %903 = arith.index_cast %902 : i32 to index
    %904 = memref.load %arg5[%903] : memref<128xf32, #tpu.memory_space<smem>>
    %905 = vector.extract_strided_slice %1 {offsets = [13, 0, 0], sizes = [1, 8, 8], strides = [1, 1, 1]} : vector<16x8x8xf32> to vector<1x8x8xf32>
    %906 = vector.shape_cast %905 : vector<1x8x8xf32> to vector<8x8xf32>
    %907 = vector.broadcast %904 : f32 to vector<8x8xf32>
    %908 = arith.mulf %907, %906 : vector<8x8xf32>
    %909 = arith.addf %900, %908 : vector<8x8xf32>
    %c16_i32_229 = arith.constant 16 : i32
    %910 = arith.muli %785, %c16_i32_229 : i32
    %c14_i32_230 = arith.constant 14 : i32
    %911 = arith.addi %910, %c14_i32_230 : i32
    %912 = arith.index_cast %911 : i32 to index
    %913 = memref.load %arg5[%912] : memref<128xf32, #tpu.memory_space<smem>>
    %914 = vector.extract_strided_slice %1 {offsets = [14, 0, 0], sizes = [1, 8, 8], strides = [1, 1, 1]} : vector<16x8x8xf32> to vector<1x8x8xf32>
    %915 = vector.shape_cast %914 : vector<1x8x8xf32> to vector<8x8xf32>
    %916 = vector.broadcast %913 : f32 to vector<8x8xf32>
    %917 = arith.mulf %916, %915 : vector<8x8xf32>
    %918 = arith.addf %909, %917 : vector<8x8xf32>
    %c16_i32_231 = arith.constant 16 : i32
    %919 = arith.muli %785, %c16_i32_231 : i32
    %c15_i32_232 = arith.constant 15 : i32
    %920 = arith.addi %919, %c15_i32_232 : i32
    %921 = arith.index_cast %920 : i32 to index
    %922 = memref.load %arg5[%921] : memref<128xf32, #tpu.memory_space<smem>>
    %923 = vector.extract_strided_slice %1 {offsets = [15, 0, 0], sizes = [1, 8, 8], strides = [1, 1, 1]} : vector<16x8x8xf32> to vector<1x8x8xf32>
    %924 = vector.shape_cast %923 : vector<1x8x8xf32> to vector<8x8xf32>
    %925 = vector.broadcast %922 : f32 to vector<8x8xf32>
    %926 = arith.mulf %925, %924 : vector<8x8xf32>
    %927 = arith.addf %918, %926 : vector<8x8xf32>
    %cst_233 = arith.constant dense<0.000000e+00> : vector<8x16xf32>
    %928 = tpu.matmul %927, %3, %cst_233 {dimension_numbers = #tpu.dot_dimension_numbers<[1], [0], [0], [1], [0, 0, 1, 1], [], []>} : vector<8x8xf32>, vector<8x16xf32>, vector<8x16xf32> -> vector<8x16xf32>
    %cst_234 = arith.constant dense<0.000000e+00> : vector<16x16xf32>
    %929 = tpu.matmul %2, %928, %cst_234 {dimension_numbers = #tpu.dot_dimension_numbers<[1], [0], [0], [1], [0, 0, 1, 1], [], []>} : vector<16x8xf32>, vector<8x16xf32>, vector<16x16xf32> -> vector<16x16xf32>
    %930 = arith.index_cast %785 : i32 to index
    %931 = memref.load %arg6[%930] : memref<8xf32, #tpu.memory_space<smem>>
    %932 = vector.broadcast %931 : f32 to vector<16x16xf32>
    %933 = arith.addf %929, %932 : vector<16x16xf32>
    %c0_235 = arith.constant 0 : index
    %c5 = arith.constant 5 : index
    %c0_236 = arith.constant 0 : index
    %c0_237 = arith.constant 0 : index
    %934 = vector.load %arg7[%c0_235, %c5, %c0_236, %c0_237] : memref<1x8x16x16xf32, #tpu.memory_space<vmem>>, vector<1x1x16x16xf32>
    %935 = vector.shape_cast %934 : vector<1x1x16x16xf32> to vector<16x16xf32>
    %936 = arith.addf %933, %935 : vector<16x16xf32>
    %c0_238 = arith.constant 0 : index
    %c5_239 = arith.constant 5 : index
    %c0_240 = arith.constant 0 : index
    %c0_241 = arith.constant 0 : index
    %937 = vector.load %arg8[%c0_238, %c5_239, %c0_240, %c0_241] : memref<1x8x16x16xf32, #tpu.memory_space<vmem>>, vector<1x1x16x16xf32>
    %938 = vector.shape_cast %937 : vector<1x1x16x16xf32> to vector<16x16xf32>
    %939 = vector.shape_cast %936 : vector<16x16xf32> to vector<1x1x16x16xf32>
    tpu.vector_store %arg8[%c0_238, %c5_239, %c0_240, %c0_241], %939 {strides = array<i32>} : memref<1x8x16x16xf32, #tpu.memory_space<vmem>>, vector<1x1x16x16xf32>,
    %c8_i32_242 = arith.constant 8 : i32
    %940 = arith.muli %arg1, %c8_i32_242 : i32
    %c6_i32_243 = arith.constant 6 : i32
    %941 = arith.addi %940, %c6_i32_243 : i32
    %c16_i32_244 = arith.constant 16 : i32
    %942 = arith.muli %941, %c16_i32_244 : i32
    %943 = arith.index_cast %942 : i32 to index
    %944 = memref.load %arg5[%943] : memref<128xf32, #tpu.memory_space<smem>>
    %945 = vector.extract_strided_slice %1 {offsets = [0, 0, 0], sizes = [1, 8, 8], strides = [1, 1, 1]} : vector<16x8x8xf32> to vector<1x8x8xf32>
    %946 = vector.shape_cast %945 : vector<1x8x8xf32> to vector<8x8xf32>
    %947 = vector.broadcast %944 : f32 to vector<8x8xf32>
    %948 = arith.mulf %947, %946 : vector<8x8xf32>
    %c16_i32_245 = arith.constant 16 : i32
    %949 = arith.muli %941, %c16_i32_245 : i32
    %c1_i32_246 = arith.constant 1 : i32
    %950 = arith.addi %949, %c1_i32_246 : i32
    %951 = arith.index_cast %950 : i32 to index
    %952 = memref.load %arg5[%951] : memref<128xf32, #tpu.memory_space<smem>>
    %953 = vector.extract_strided_slice %1 {offsets = [1, 0, 0], sizes = [1, 8, 8], strides = [1, 1, 1]} : vector<16x8x8xf32> to vector<1x8x8xf32>
    %954 = vector.shape_cast %953 : vector<1x8x8xf32> to vector<8x8xf32>
    %955 = vector.broadcast %952 : f32 to vector<8x8xf32>
    %956 = arith.mulf %955, %954 : vector<8x8xf32>
    %957 = arith.addf %948, %956 : vector<8x8xf32>
    %c16_i32_247 = arith.constant 16 : i32
    %958 = arith.muli %941, %c16_i32_247 : i32
    %c2_i32_248 = arith.constant 2 : i32
    %959 = arith.addi %958, %c2_i32_248 : i32
    %960 = arith.index_cast %959 : i32 to index
    %961 = memref.load %arg5[%960] : memref<128xf32, #tpu.memory_space<smem>>
    %962 = vector.extract_strided_slice %1 {offsets = [2, 0, 0], sizes = [1, 8, 8], strides = [1, 1, 1]} : vector<16x8x8xf32> to vector<1x8x8xf32>
    %963 = vector.shape_cast %962 : vector<1x8x8xf32> to vector<8x8xf32>
    %964 = vector.broadcast %961 : f32 to vector<8x8xf32>
    %965 = arith.mulf %964, %963 : vector<8x8xf32>
    %966 = arith.addf %957, %965 : vector<8x8xf32>
    %c16_i32_249 = arith.constant 16 : i32
    %967 = arith.muli %941, %c16_i32_249 : i32
    %c3_i32_250 = arith.constant 3 : i32
    %968 = arith.addi %967, %c3_i32_250 : i32
    %969 = arith.index_cast %968 : i32 to index
    %970 = memref.load %arg5[%969] : memref<128xf32, #tpu.memory_space<smem>>
    %971 = vector.extract_strided_slice %1 {offsets = [3, 0, 0], sizes = [1, 8, 8], strides = [1, 1, 1]} : vector<16x8x8xf32> to vector<1x8x8xf32>
    %972 = vector.shape_cast %971 : vector<1x8x8xf32> to vector<8x8xf32>
    %973 = vector.broadcast %970 : f32 to vector<8x8xf32>
    %974 = arith.mulf %973, %972 : vector<8x8xf32>
    %975 = arith.addf %966, %974 : vector<8x8xf32>
    %c16_i32_251 = arith.constant 16 : i32
    %976 = arith.muli %941, %c16_i32_251 : i32
    %c4_i32_252 = arith.constant 4 : i32
    %977 = arith.addi %976, %c4_i32_252 : i32
    %978 = arith.index_cast %977 : i32 to index
    %979 = memref.load %arg5[%978] : memref<128xf32, #tpu.memory_space<smem>>
    %980 = vector.extract_strided_slice %1 {offsets = [4, 0, 0], sizes = [1, 8, 8], strides = [1, 1, 1]} : vector<16x8x8xf32> to vector<1x8x8xf32>
    %981 = vector.shape_cast %980 : vector<1x8x8xf32> to vector<8x8xf32>
    %982 = vector.broadcast %979 : f32 to vector<8x8xf32>
    %983 = arith.mulf %982, %981 : vector<8x8xf32>
    %984 = arith.addf %975, %983 : vector<8x8xf32>
    %c16_i32_253 = arith.constant 16 : i32
    %985 = arith.muli %941, %c16_i32_253 : i32
    %c5_i32_254 = arith.constant 5 : i32
    %986 = arith.addi %985, %c5_i32_254 : i32
    %987 = arith.index_cast %986 : i32 to index
    %988 = memref.load %arg5[%987] : memref<128xf32, #tpu.memory_space<smem>>
    %989 = vector.extract_strided_slice %1 {offsets = [5, 0, 0], sizes = [1, 8, 8], strides = [1, 1, 1]} : vector<16x8x8xf32> to vector<1x8x8xf32>
    %990 = vector.shape_cast %989 : vector<1x8x8xf32> to vector<8x8xf32>
    %991 = vector.broadcast %988 : f32 to vector<8x8xf32>
    %992 = arith.mulf %991, %990 : vector<8x8xf32>
    %993 = arith.addf %984, %992 : vector<8x8xf32>
    %c16_i32_255 = arith.constant 16 : i32
    %994 = arith.muli %941, %c16_i32_255 : i32
    %c6_i32_256 = arith.constant 6 : i32
    %995 = arith.addi %994, %c6_i32_256 : i32
    %996 = arith.index_cast %995 : i32 to index
    %997 = memref.load %arg5[%996] : memref<128xf32, #tpu.memory_space<smem>>
    %998 = vector.extract_strided_slice %1 {offsets = [6, 0, 0], sizes = [1, 8, 8], strides = [1, 1, 1]} : vector<16x8x8xf32> to vector<1x8x8xf32>
    %999 = vector.shape_cast %998 : vector<1x8x8xf32> to vector<8x8xf32>
    %1000 = vector.broadcast %997 : f32 to vector<8x8xf32>
    %1001 = arith.mulf %1000, %999 : vector<8x8xf32>
    %1002 = arith.addf %993, %1001 : vector<8x8xf32>
    %c16_i32_257 = arith.constant 16 : i32
    %1003 = arith.muli %941, %c16_i32_257 : i32
    %c7_i32_258 = arith.constant 7 : i32
    %1004 = arith.addi %1003, %c7_i32_258 : i32
    %1005 = arith.index_cast %1004 : i32 to index
    %1006 = memref.load %arg5[%1005] : memref<128xf32, #tpu.memory_space<smem>>
    %1007 = vector.extract_strided_slice %1 {offsets = [7, 0, 0], sizes = [1, 8, 8], strides = [1, 1, 1]} : vector<16x8x8xf32> to vector<1x8x8xf32>
    %1008 = vector.shape_cast %1007 : vector<1x8x8xf32> to vector<8x8xf32>
    %1009 = vector.broadcast %1006 : f32 to vector<8x8xf32>
    %1010 = arith.mulf %1009, %1008 : vector<8x8xf32>
    %1011 = arith.addf %1002, %1010 : vector<8x8xf32>
    %c16_i32_259 = arith.constant 16 : i32
    %1012 = arith.muli %941, %c16_i32_259 : i32
    %c8_i32_260 = arith.constant 8 : i32
    %1013 = arith.addi %1012, %c8_i32_260 : i32
    %1014 = arith.index_cast %1013 : i32 to index
    %1015 = memref.load %arg5[%1014] : memref<128xf32, #tpu.memory_space<smem>>
    %1016 = vector.extract_strided_slice %1 {offsets = [8, 0, 0], sizes = [1, 8, 8], strides = [1, 1, 1]} : vector<16x8x8xf32> to vector<1x8x8xf32>
    %1017 = vector.shape_cast %1016 : vector<1x8x8xf32> to vector<8x8xf32>
    %1018 = vector.broadcast %1015 : f32 to vector<8x8xf32>
    %1019 = arith.mulf %1018, %1017 : vector<8x8xf32>
    %1020 = arith.addf %1011, %1019 : vector<8x8xf32>
    %c16_i32_261 = arith.constant 16 : i32
    %1021 = arith.muli %941, %c16_i32_261 : i32
    %c9_i32_262 = arith.constant 9 : i32
    %1022 = arith.addi %1021, %c9_i32_262 : i32
    %1023 = arith.index_cast %1022 : i32 to index
    %1024 = memref.load %arg5[%1023] : memref<128xf32, #tpu.memory_space<smem>>
    %1025 = vector.extract_strided_slice %1 {offsets = [9, 0, 0], sizes = [1, 8, 8], strides = [1, 1, 1]} : vector<16x8x8xf32> to vector<1x8x8xf32>
    %1026 = vector.shape_cast %1025 : vector<1x8x8xf32> to vector<8x8xf32>
    %1027 = vector.broadcast %1024 : f32 to vector<8x8xf32>
    %1028 = arith.mulf %1027, %1026 : vector<8x8xf32>
    %1029 = arith.addf %1020, %1028 : vector<8x8xf32>
    %c16_i32_263 = arith.constant 16 : i32
    %1030 = arith.muli %941, %c16_i32_263 : i32
    %c10_i32_264 = arith.constant 10 : i32
    %1031 = arith.addi %1030, %c10_i32_264 : i32
    %1032 = arith.index_cast %1031 : i32 to index
    %1033 = memref.load %arg5[%1032] : memref<128xf32, #tpu.memory_space<smem>>
    %1034 = vector.extract_strided_slice %1 {offsets = [10, 0, 0], sizes = [1, 8, 8], strides = [1, 1, 1]} : vector<16x8x8xf32> to vector<1x8x8xf32>
    %1035 = vector.shape_cast %1034 : vector<1x8x8xf32> to vector<8x8xf32>
    %1036 = vector.broadcast %1033 : f32 to vector<8x8xf32>
    %1037 = arith.mulf %1036, %1035 : vector<8x8xf32>
    %1038 = arith.addf %1029, %1037 : vector<8x8xf32>
    %c16_i32_265 = arith.constant 16 : i32
    %1039 = arith.muli %941, %c16_i32_265 : i32
    %c11_i32_266 = arith.constant 11 : i32
    %1040 = arith.addi %1039, %c11_i32_266 : i32
    %1041 = arith.index_cast %1040 : i32 to index
    %1042 = memref.load %arg5[%1041] : memref<128xf32, #tpu.memory_space<smem>>
    %1043 = vector.extract_strided_slice %1 {offsets = [11, 0, 0], sizes = [1, 8, 8], strides = [1, 1, 1]} : vector<16x8x8xf32> to vector<1x8x8xf32>
    %1044 = vector.shape_cast %1043 : vector<1x8x8xf32> to vector<8x8xf32>
    %1045 = vector.broadcast %1042 : f32 to vector<8x8xf32>
    %1046 = arith.mulf %1045, %1044 : vector<8x8xf32>
    %1047 = arith.addf %1038, %1046 : vector<8x8xf32>
    %c16_i32_267 = arith.constant 16 : i32
    %1048 = arith.muli %941, %c16_i32_267 : i32
    %c12_i32_268 = arith.constant 12 : i32
    %1049 = arith.addi %1048, %c12_i32_268 : i32
    %1050 = arith.index_cast %1049 : i32 to index
    %1051 = memref.load %arg5[%1050] : memref<128xf32, #tpu.memory_space<smem>>
    %1052 = vector.extract_strided_slice %1 {offsets = [12, 0, 0], sizes = [1, 8, 8], strides = [1, 1, 1]} : vector<16x8x8xf32> to vector<1x8x8xf32>
    %1053 = vector.shape_cast %1052 : vector<1x8x8xf32> to vector<8x8xf32>
    %1054 = vector.broadcast %1051 : f32 to vector<8x8xf32>
    %1055 = arith.mulf %1054, %1053 : vector<8x8xf32>
    %1056 = arith.addf %1047, %1055 : vector<8x8xf32>
    %c16_i32_269 = arith.constant 16 : i32
    %1057 = arith.muli %941, %c16_i32_269 : i32
    %c13_i32_270 = arith.constant 13 : i32
    %1058 = arith.addi %1057, %c13_i32_270 : i32
    %1059 = arith.index_cast %1058 : i32 to index
    %1060 = memref.load %arg5[%1059] : memref<128xf32, #tpu.memory_space<smem>>
    %1061 = vector.extract_strided_slice %1 {offsets = [13, 0, 0], sizes = [1, 8, 8], strides = [1, 1, 1]} : vector<16x8x8xf32> to vector<1x8x8xf32>
    %1062 = vector.shape_cast %1061 : vector<1x8x8xf32> to vector<8x8xf32>
    %1063 = vector.broadcast %1060 : f32 to vector<8x8xf32>
    %1064 = arith.mulf %1063, %1062 : vector<8x8xf32>
    %1065 = arith.addf %1056, %1064 : vector<8x8xf32>
    %c16_i32_271 = arith.constant 16 : i32
    %1066 = arith.muli %941, %c16_i32_271 : i32
    %c14_i32_272 = arith.constant 14 : i32
    %1067 = arith.addi %1066, %c14_i32_272 : i32
    %1068 = arith.index_cast %1067 : i32 to index
    %1069 = memref.load %arg5[%1068] : memref<128xf32, #tpu.memory_space<smem>>
    %1070 = vector.extract_strided_slice %1 {offsets = [14, 0, 0], sizes = [1, 8, 8], strides = [1, 1, 1]} : vector<16x8x8xf32> to vector<1x8x8xf32>
    %1071 = vector.shape_cast %1070 : vector<1x8x8xf32> to vector<8x8xf32>
    %1072 = vector.broadcast %1069 : f32 to vector<8x8xf32>
    %1073 = arith.mulf %1072, %1071 : vector<8x8xf32>
    %1074 = arith.addf %1065, %1073 : vector<8x8xf32>
    %c16_i32_273 = arith.constant 16 : i32
    %1075 = arith.muli %941, %c16_i32_273 : i32
    %c15_i32_274 = arith.constant 15 : i32
    %1076 = arith.addi %1075, %c15_i32_274 : i32
    %1077 = arith.index_cast %1076 : i32 to index
    %1078 = memref.load %arg5[%1077] : memref<128xf32, #tpu.memory_space<smem>>
    %1079 = vector.extract_strided_slice %1 {offsets = [15, 0, 0], sizes = [1, 8, 8], strides = [1, 1, 1]} : vector<16x8x8xf32> to vector<1x8x8xf32>
    %1080 = vector.shape_cast %1079 : vector<1x8x8xf32> to vector<8x8xf32>
    %1081 = vector.broadcast %1078 : f32 to vector<8x8xf32>
    %1082 = arith.mulf %1081, %1080 : vector<8x8xf32>
    %1083 = arith.addf %1074, %1082 : vector<8x8xf32>
    %cst_275 = arith.constant dense<0.000000e+00> : vector<8x16xf32>
    %1084 = tpu.matmul %1083, %3, %cst_275 {dimension_numbers = #tpu.dot_dimension_numbers<[1], [0], [0], [1], [0, 0, 1, 1], [], []>} : vector<8x8xf32>, vector<8x16xf32>, vector<8x16xf32> -> vector<8x16xf32>
    %cst_276 = arith.constant dense<0.000000e+00> : vector<16x16xf32>
    %1085 = tpu.matmul %2, %1084, %cst_276 {dimension_numbers = #tpu.dot_dimension_numbers<[1], [0], [0], [1], [0, 0, 1, 1], [], []>} : vector<16x8xf32>, vector<8x16xf32>, vector<16x16xf32> -> vector<16x16xf32>
    %1086 = arith.index_cast %941 : i32 to index
    %1087 = memref.load %arg6[%1086] : memref<8xf32, #tpu.memory_space<smem>>
    %1088 = vector.broadcast %1087 : f32 to vector<16x16xf32>
    %1089 = arith.addf %1085, %1088 : vector<16x16xf32>
    %c0_277 = arith.constant 0 : index
    %c6 = arith.constant 6 : index
    %c0_278 = arith.constant 0 : index
    %c0_279 = arith.constant 0 : index
    %1090 = vector.load %arg7[%c0_277, %c6, %c0_278, %c0_279] : memref<1x8x16x16xf32, #tpu.memory_space<vmem>>, vector<1x1x16x16xf32>
    %1091 = vector.shape_cast %1090 : vector<1x1x16x16xf32> to vector<16x16xf32>
    %1092 = arith.addf %1089, %1091 : vector<16x16xf32>
    %c0_280 = arith.constant 0 : index
    %c6_281 = arith.constant 6 : index
    %c0_282 = arith.constant 0 : index
    %c0_283 = arith.constant 0 : index
    %1093 = vector.load %arg8[%c0_280, %c6_281, %c0_282, %c0_283] : memref<1x8x16x16xf32, #tpu.memory_space<vmem>>, vector<1x1x16x16xf32>
    %1094 = vector.shape_cast %1093 : vector<1x1x16x16xf32> to vector<16x16xf32>
    %1095 = vector.shape_cast %1092 : vector<16x16xf32> to vector<1x1x16x16xf32>
    tpu.vector_store %arg8[%c0_280, %c6_281, %c0_282, %c0_283], %1095 {strides = array<i32>} : memref<1x8x16x16xf32, #tpu.memory_space<vmem>>, vector<1x1x16x16xf32>,
    %c8_i32_284 = arith.constant 8 : i32
    %1096 = arith.muli %arg1, %c8_i32_284 : i32
    %c7_i32_285 = arith.constant 7 : i32
    %1097 = arith.addi %1096, %c7_i32_285 : i32
    %c16_i32_286 = arith.constant 16 : i32
    %1098 = arith.muli %1097, %c16_i32_286 : i32
    %1099 = arith.index_cast %1098 : i32 to index
    %1100 = memref.load %arg5[%1099] : memref<128xf32, #tpu.memory_space<smem>>
    %1101 = vector.extract_strided_slice %1 {offsets = [0, 0, 0], sizes = [1, 8, 8], strides = [1, 1, 1]} : vector<16x8x8xf32> to vector<1x8x8xf32>
    %1102 = vector.shape_cast %1101 : vector<1x8x8xf32> to vector<8x8xf32>
    %1103 = vector.broadcast %1100 : f32 to vector<8x8xf32>
    %1104 = arith.mulf %1103, %1102 : vector<8x8xf32>
    %c16_i32_287 = arith.constant 16 : i32
    %1105 = arith.muli %1097, %c16_i32_287 : i32
    %c1_i32_288 = arith.constant 1 : i32
    %1106 = arith.addi %1105, %c1_i32_288 : i32
    %1107 = arith.index_cast %1106 : i32 to index
    %1108 = memref.load %arg5[%1107] : memref<128xf32, #tpu.memory_space<smem>>
    %1109 = vector.extract_strided_slice %1 {offsets = [1, 0, 0], sizes = [1, 8, 8], strides = [1, 1, 1]} : vector<16x8x8xf32> to vector<1x8x8xf32>
    %1110 = vector.shape_cast %1109 : vector<1x8x8xf32> to vector<8x8xf32>
    %1111 = vector.broadcast %1108 : f32 to vector<8x8xf32>
    %1112 = arith.mulf %1111, %1110 : vector<8x8xf32>
    %1113 = arith.addf %1104, %1112 : vector<8x8xf32>
    %c16_i32_289 = arith.constant 16 : i32
    %1114 = arith.muli %1097, %c16_i32_289 : i32
    %c2_i32_290 = arith.constant 2 : i32
    %1115 = arith.addi %1114, %c2_i32_290 : i32
    %1116 = arith.index_cast %1115 : i32 to index
    %1117 = memref.load %arg5[%1116] : memref<128xf32, #tpu.memory_space<smem>>
    %1118 = vector.extract_strided_slice %1 {offsets = [2, 0, 0], sizes = [1, 8, 8], strides = [1, 1, 1]} : vector<16x8x8xf32> to vector<1x8x8xf32>
    %1119 = vector.shape_cast %1118 : vector<1x8x8xf32> to vector<8x8xf32>
    %1120 = vector.broadcast %1117 : f32 to vector<8x8xf32>
    %1121 = arith.mulf %1120, %1119 : vector<8x8xf32>
    %1122 = arith.addf %1113, %1121 : vector<8x8xf32>
    %c16_i32_291 = arith.constant 16 : i32
    %1123 = arith.muli %1097, %c16_i32_291 : i32
    %c3_i32_292 = arith.constant 3 : i32
    %1124 = arith.addi %1123, %c3_i32_292 : i32
    %1125 = arith.index_cast %1124 : i32 to index
    %1126 = memref.load %arg5[%1125] : memref<128xf32, #tpu.memory_space<smem>>
    %1127 = vector.extract_strided_slice %1 {offsets = [3, 0, 0], sizes = [1, 8, 8], strides = [1, 1, 1]} : vector<16x8x8xf32> to vector<1x8x8xf32>
    %1128 = vector.shape_cast %1127 : vector<1x8x8xf32> to vector<8x8xf32>
    %1129 = vector.broadcast %1126 : f32 to vector<8x8xf32>
    %1130 = arith.mulf %1129, %1128 : vector<8x8xf32>
    %1131 = arith.addf %1122, %1130 : vector<8x8xf32>
    %c16_i32_293 = arith.constant 16 : i32
    %1132 = arith.muli %1097, %c16_i32_293 : i32
    %c4_i32_294 = arith.constant 4 : i32
    %1133 = arith.addi %1132, %c4_i32_294 : i32
    %1134 = arith.index_cast %1133 : i32 to index
    %1135 = memref.load %arg5[%1134] : memref<128xf32, #tpu.memory_space<smem>>
    %1136 = vector.extract_strided_slice %1 {offsets = [4, 0, 0], sizes = [1, 8, 8], strides = [1, 1, 1]} : vector<16x8x8xf32> to vector<1x8x8xf32>
    %1137 = vector.shape_cast %1136 : vector<1x8x8xf32> to vector<8x8xf32>
    %1138 = vector.broadcast %1135 : f32 to vector<8x8xf32>
    %1139 = arith.mulf %1138, %1137 : vector<8x8xf32>
    %1140 = arith.addf %1131, %1139 : vector<8x8xf32>
    %c16_i32_295 = arith.constant 16 : i32
    %1141 = arith.muli %1097, %c16_i32_295 : i32
    %c5_i32_296 = arith.constant 5 : i32
    %1142 = arith.addi %1141, %c5_i32_296 : i32
    %1143 = arith.index_cast %1142 : i32 to index
    %1144 = memref.load %arg5[%1143] : memref<128xf32, #tpu.memory_space<smem>>
    %1145 = vector.extract_strided_slice %1 {offsets = [5, 0, 0], sizes = [1, 8, 8], strides = [1, 1, 1]} : vector<16x8x8xf32> to vector<1x8x8xf32>
    %1146 = vector.shape_cast %1145 : vector<1x8x8xf32> to vector<8x8xf32>
    %1147 = vector.broadcast %1144 : f32 to vector<8x8xf32>
    %1148 = arith.mulf %1147, %1146 : vector<8x8xf32>
    %1149 = arith.addf %1140, %1148 : vector<8x8xf32>
    %c16_i32_297 = arith.constant 16 : i32
    %1150 = arith.muli %1097, %c16_i32_297 : i32
    %c6_i32_298 = arith.constant 6 : i32
    %1151 = arith.addi %1150, %c6_i32_298 : i32
    %1152 = arith.index_cast %1151 : i32 to index
    %1153 = memref.load %arg5[%1152] : memref<128xf32, #tpu.memory_space<smem>>
    %1154 = vector.extract_strided_slice %1 {offsets = [6, 0, 0], sizes = [1, 8, 8], strides = [1, 1, 1]} : vector<16x8x8xf32> to vector<1x8x8xf32>
    %1155 = vector.shape_cast %1154 : vector<1x8x8xf32> to vector<8x8xf32>
    %1156 = vector.broadcast %1153 : f32 to vector<8x8xf32>
    %1157 = arith.mulf %1156, %1155 : vector<8x8xf32>
    %1158 = arith.addf %1149, %1157 : vector<8x8xf32>
    %c16_i32_299 = arith.constant 16 : i32
    %1159 = arith.muli %1097, %c16_i32_299 : i32
    %c7_i32_300 = arith.constant 7 : i32
    %1160 = arith.addi %1159, %c7_i32_300 : i32
    %1161 = arith.index_cast %1160 : i32 to index
    %1162 = memref.load %arg5[%1161] : memref<128xf32, #tpu.memory_space<smem>>
    %1163 = vector.extract_strided_slice %1 {offsets = [7, 0, 0], sizes = [1, 8, 8], strides = [1, 1, 1]} : vector<16x8x8xf32> to vector<1x8x8xf32>
    %1164 = vector.shape_cast %1163 : vector<1x8x8xf32> to vector<8x8xf32>
    %1165 = vector.broadcast %1162 : f32 to vector<8x8xf32>
    %1166 = arith.mulf %1165, %1164 : vector<8x8xf32>
    %1167 = arith.addf %1158, %1166 : vector<8x8xf32>
    %c16_i32_301 = arith.constant 16 : i32
    %1168 = arith.muli %1097, %c16_i32_301 : i32
    %c8_i32_302 = arith.constant 8 : i32
    %1169 = arith.addi %1168, %c8_i32_302 : i32
    %1170 = arith.index_cast %1169 : i32 to index
    %1171 = memref.load %arg5[%1170] : memref<128xf32, #tpu.memory_space<smem>>
    %1172 = vector.extract_strided_slice %1 {offsets = [8, 0, 0], sizes = [1, 8, 8], strides = [1, 1, 1]} : vector<16x8x8xf32> to vector<1x8x8xf32>
    %1173 = vector.shape_cast %1172 : vector<1x8x8xf32> to vector<8x8xf32>
    %1174 = vector.broadcast %1171 : f32 to vector<8x8xf32>
    %1175 = arith.mulf %1174, %1173 : vector<8x8xf32>
    %1176 = arith.addf %1167, %1175 : vector<8x8xf32>
    %c16_i32_303 = arith.constant 16 : i32
    %1177 = arith.muli %1097, %c16_i32_303 : i32
    %c9_i32_304 = arith.constant 9 : i32
    %1178 = arith.addi %1177, %c9_i32_304 : i32
    %1179 = arith.index_cast %1178 : i32 to index
    %1180 = memref.load %arg5[%1179] : memref<128xf32, #tpu.memory_space<smem>>
    %1181 = vector.extract_strided_slice %1 {offsets = [9, 0, 0], sizes = [1, 8, 8], strides = [1, 1, 1]} : vector<16x8x8xf32> to vector<1x8x8xf32>
    %1182 = vector.shape_cast %1181 : vector<1x8x8xf32> to vector<8x8xf32>
    %1183 = vector.broadcast %1180 : f32 to vector<8x8xf32>
    %1184 = arith.mulf %1183, %1182 : vector<8x8xf32>
    %1185 = arith.addf %1176, %1184 : vector<8x8xf32>
    %c16_i32_305 = arith.constant 16 : i32
    %1186 = arith.muli %1097, %c16_i32_305 : i32
    %c10_i32_306 = arith.constant 10 : i32
    %1187 = arith.addi %1186, %c10_i32_306 : i32
    %1188 = arith.index_cast %1187 : i32 to index
    %1189 = memref.load %arg5[%1188] : memref<128xf32, #tpu.memory_space<smem>>
    %1190 = vector.extract_strided_slice %1 {offsets = [10, 0, 0], sizes = [1, 8, 8], strides = [1, 1, 1]} : vector<16x8x8xf32> to vector<1x8x8xf32>
    %1191 = vector.shape_cast %1190 : vector<1x8x8xf32> to vector<8x8xf32>
    %1192 = vector.broadcast %1189 : f32 to vector<8x8xf32>
    %1193 = arith.mulf %1192, %1191 : vector<8x8xf32>
    %1194 = arith.addf %1185, %1193 : vector<8x8xf32>
    %c16_i32_307 = arith.constant 16 : i32
    %1195 = arith.muli %1097, %c16_i32_307 : i32
    %c11_i32_308 = arith.constant 11 : i32
    %1196 = arith.addi %1195, %c11_i32_308 : i32
    %1197 = arith.index_cast %1196 : i32 to index
    %1198 = memref.load %arg5[%1197] : memref<128xf32, #tpu.memory_space<smem>>
    %1199 = vector.extract_strided_slice %1 {offsets = [11, 0, 0], sizes = [1, 8, 8], strides = [1, 1, 1]} : vector<16x8x8xf32> to vector<1x8x8xf32>
    %1200 = vector.shape_cast %1199 : vector<1x8x8xf32> to vector<8x8xf32>
    %1201 = vector.broadcast %1198 : f32 to vector<8x8xf32>
    %1202 = arith.mulf %1201, %1200 : vector<8x8xf32>
    %1203 = arith.addf %1194, %1202 : vector<8x8xf32>
    %c16_i32_309 = arith.constant 16 : i32
    %1204 = arith.muli %1097, %c16_i32_309 : i32
    %c12_i32_310 = arith.constant 12 : i32
    %1205 = arith.addi %1204, %c12_i32_310 : i32
    %1206 = arith.index_cast %1205 : i32 to index
    %1207 = memref.load %arg5[%1206] : memref<128xf32, #tpu.memory_space<smem>>
    %1208 = vector.extract_strided_slice %1 {offsets = [12, 0, 0], sizes = [1, 8, 8], strides = [1, 1, 1]} : vector<16x8x8xf32> to vector<1x8x8xf32>
    %1209 = vector.shape_cast %1208 : vector<1x8x8xf32> to vector<8x8xf32>
    %1210 = vector.broadcast %1207 : f32 to vector<8x8xf32>
    %1211 = arith.mulf %1210, %1209 : vector<8x8xf32>
    %1212 = arith.addf %1203, %1211 : vector<8x8xf32>
    %c16_i32_311 = arith.constant 16 : i32
    %1213 = arith.muli %1097, %c16_i32_311 : i32
    %c13_i32_312 = arith.constant 13 : i32
    %1214 = arith.addi %1213, %c13_i32_312 : i32
    %1215 = arith.index_cast %1214 : i32 to index
    %1216 = memref.load %arg5[%1215] : memref<128xf32, #tpu.memory_space<smem>>
    %1217 = vector.extract_strided_slice %1 {offsets = [13, 0, 0], sizes = [1, 8, 8], strides = [1, 1, 1]} : vector<16x8x8xf32> to vector<1x8x8xf32>
    %1218 = vector.shape_cast %1217 : vector<1x8x8xf32> to vector<8x8xf32>
    %1219 = vector.broadcast %1216 : f32 to vector<8x8xf32>
    %1220 = arith.mulf %1219, %1218 : vector<8x8xf32>
    %1221 = arith.addf %1212, %1220 : vector<8x8xf32>
    %c16_i32_313 = arith.constant 16 : i32
    %1222 = arith.muli %1097, %c16_i32_313 : i32
    %c14_i32_314 = arith.constant 14 : i32
    %1223 = arith.addi %1222, %c14_i32_314 : i32
    %1224 = arith.index_cast %1223 : i32 to index
    %1225 = memref.load %arg5[%1224] : memref<128xf32, #tpu.memory_space<smem>>
    %1226 = vector.extract_strided_slice %1 {offsets = [14, 0, 0], sizes = [1, 8, 8], strides = [1, 1, 1]} : vector<16x8x8xf32> to vector<1x8x8xf32>
    %1227 = vector.shape_cast %1226 : vector<1x8x8xf32> to vector<8x8xf32>
    %1228 = vector.broadcast %1225 : f32 to vector<8x8xf32>
    %1229 = arith.mulf %1228, %1227 : vector<8x8xf32>
    %1230 = arith.addf %1221, %1229 : vector<8x8xf32>
    %c16_i32_315 = arith.constant 16 : i32
    %1231 = arith.muli %1097, %c16_i32_315 : i32
    %c15_i32_316 = arith.constant 15 : i32
    %1232 = arith.addi %1231, %c15_i32_316 : i32
    %1233 = arith.index_cast %1232 : i32 to index
    %1234 = memref.load %arg5[%1233] : memref<128xf32, #tpu.memory_space<smem>>
    %1235 = vector.extract_strided_slice %1 {offsets = [15, 0, 0], sizes = [1, 8, 8], strides = [1, 1, 1]} : vector<16x8x8xf32> to vector<1x8x8xf32>
    %1236 = vector.shape_cast %1235 : vector<1x8x8xf32> to vector<8x8xf32>
    %1237 = vector.broadcast %1234 : f32 to vector<8x8xf32>
    %1238 = arith.mulf %1237, %1236 : vector<8x8xf32>
    %1239 = arith.addf %1230, %1238 : vector<8x8xf32>
    %cst_317 = arith.constant dense<0.000000e+00> : vector<8x16xf32>
    %1240 = tpu.matmul %1239, %3, %cst_317 {dimension_numbers = #tpu.dot_dimension_numbers<[1], [0], [0], [1], [0, 0, 1, 1], [], []>} : vector<8x8xf32>, vector<8x16xf32>, vector<8x16xf32> -> vector<8x16xf32>
    %cst_318 = arith.constant dense<0.000000e+00> : vector<16x16xf32>
    %1241 = tpu.matmul %2, %1240, %cst_318 {dimension_numbers = #tpu.dot_dimension_numbers<[1], [0], [0], [1], [0, 0, 1, 1], [], []>} : vector<16x8xf32>, vector<8x16xf32>, vector<16x16xf32> -> vector<16x16xf32>
    %1242 = arith.index_cast %1097 : i32 to index
    %1243 = memref.load %arg6[%1242] : memref<8xf32, #tpu.memory_space<smem>>
    %1244 = vector.broadcast %1243 : f32 to vector<16x16xf32>
    %1245 = arith.addf %1241, %1244 : vector<16x16xf32>
    %c0_319 = arith.constant 0 : index
    %c7 = arith.constant 7 : index
    %c0_320 = arith.constant 0 : index
    %c0_321 = arith.constant 0 : index
    %1246 = vector.load %arg7[%c0_319, %c7, %c0_320, %c0_321] : memref<1x8x16x16xf32, #tpu.memory_space<vmem>>, vector<1x1x16x16xf32>
    %1247 = vector.shape_cast %1246 : vector<1x1x16x16xf32> to vector<16x16xf32>
    %1248 = arith.addf %1245, %1247 : vector<16x16xf32>
    %c0_322 = arith.constant 0 : index
    %c7_323 = arith.constant 7 : index
    %c0_324 = arith.constant 0 : index
    %c0_325 = arith.constant 0 : index
    %1249 = vector.load %arg8[%c0_322, %c7_323, %c0_324, %c0_325] : memref<1x8x16x16xf32, #tpu.memory_space<vmem>>, vector<1x1x16x16xf32>
    %1250 = vector.shape_cast %1249 : vector<1x1x16x16xf32> to vector<16x16xf32>
    %1251 = vector.shape_cast %1248 : vector<16x16xf32> to vector<1x1x16x16xf32>
    tpu.vector_store %arg8[%c0_322, %c7_323, %c0_324, %c0_325], %1251 {strides = array<i32>} : memref<1x8x16x16xf32, #tpu.memory_space<vmem>>, vector<1x1x16x16xf32>,
    return
  }
  func.func @transform_0(%arg0: i32, %arg1: i32) -> (i32, i32, i32, i32) {
    %c0_i32 = arith.constant 0 : i32
    %c0_i32_0 = arith.constant 0 : i32
    %c0_i32_1 = arith.constant 0 : i32
    %c0_i32_2 = arith.constant 0 : i32
    return %arg0, %c0_i32, %c0_i32_0, %c0_i32_1 : i32, i32, i32, i32
  }
  func.func @transform_1(%arg0: i32, %arg1: i32) -> (i32, i32) {
    %c0_i32 = arith.constant 0 : i32
    %c0_i32_0 = arith.constant 0 : i32
    %c0_i32_1 = arith.constant 0 : i32
    return %c0_i32, %c0_i32_0 : i32, i32
  }
  func.func @transform_2(%arg0: i32, %arg1: i32) -> (i32, i32) {
    %c0_i32 = arith.constant 0 : i32
    %c0_i32_0 = arith.constant 0 : i32
    %c0_i32_1 = arith.constant 0 : i32
    return %c0_i32, %c0_i32_0 : i32, i32
  }
  func.func @transform_3(%arg0: i32, %arg1: i32) -> i32 {
    %c0_i32 = arith.constant 0 : i32
    %c0_i32_0 = arith.constant 0 : i32
    return %c0_i32 : i32
  }
  func.func @transform_4(%arg0: i32, %arg1: i32) -> i32 {
    %c0_i32 = arith.constant 0 : i32
    %c0_i32_0 = arith.constant 0 : i32
    return %c0_i32 : i32
  }
  func.func @transform_5(%arg0: i32, %arg1: i32) -> (i32, i32, i32, i32) {
    %c0_i32 = arith.constant 0 : i32
    %c0_i32_0 = arith.constant 0 : i32
    %c0_i32_1 = arith.constant 0 : i32
    return %arg0, %arg1, %c0_i32, %c0_i32_0 : i32, i32, i32, i32
  }
  func.func @transform_6(%arg0: i32, %arg1: i32) -> (i32, i32, i32, i32) {
    %c0_i32 = arith.constant 0 : i32
    %c0_i32_0 = arith.constant 0 : i32
    %c0_i32_1 = arith.constant 0 : i32
    return %arg0, %arg1, %c0_i32, %c0_i32_0 : i32, i32, i32, i32
  }
}

</mosaic_0001>

<llo_original>
// kernel: mul.2
$region0: #{mul.2}
  #allocation0 [shape = 's32[1]{0}', space=sflag, size = 0x4, scoped, tag = 'scoped memory for mul.2']
  %s0 = inlined_call_operand.vmem [shape: f32[128], index: 0, kind: input, shape index: {}]
  %s1 = inlined_call_operand.vmem [shape: f32[128], index: 1, kind: input, shape index: {}]
  %s2 = inlined_call_operand.vmem [shape: f32[128], index: 2, kind: output, shape index: {}]
  %v3 = vld [vmem:[%s0] sm:$0x1]
  %v4 = vld [vmem:[%s1] sm:$0x1]
  %5 = xla_tuple %v3, %v4
  %6 = xla_tuple %5
  %v7 = vmul.f32 %v3, %v4
  %8 = xla_tuple %v7
  %9 = vst [vmem:[%s2] sm:$0x1] %v7

// kernel: upsampling_add.1
$region0: #{upsampling_add.1}
  #allocation0 [shape = 'u32[]', space=smem, size = 0x4, offset = 0x4, fixed_abs, tag = 'smem constant byte address 0x4 - core index']
  #allocation1 [shape = 'u32[72,128]{1,0:T(1,128)}', space=vmem, size = 0x9000, scoped, tag = 'internal scratch']
  %s0 = inlined_call_operand.vmem [shape: f32[2,16,8,8], index: 0, kind: input, shape index: {}]
  %s1 = inlined_call_operand.vmem [shape: f32[16,8], index: 1, kind: input, shape index: {}]
  %s2 = inlined_call_operand.vmem [shape: f32[8,16], index: 2, kind: input, shape index: {}]
  %s3 = inlined_call_operand.vmem [shape: f32[128], index: 3, kind: input, shape index: {}]
  %s4 = inlined_call_operand.vmem [shape: f32[8], index: 4, kind: input, shape index: {}]
  %s5 = inlined_call_operand.vmem [shape: f32[2,8,16,16], index: 5, kind: input, shape index: {}]
  %s6 = inlined_call_operand.hbm [shape: f32[2,8,16,16], index: 6, kind: output, shape index: {}]
  %s7 = sld [smem:[#allocation0]]
  $region65: #{upsampling_add.1} parent=0
    _
  %s9 = ssub.s32 1, %s7
  %s10 = scalar_select 0, %s9, %s7
  $region1: #{upsampling_add.1} parent=0
    #allocation2 [shape = 'u8[512]{0}', space=smem, size = 0x200, scoped, tag = 'input window, operand 3, single buffered']
    #allocation3 [shape = 's32[2]{0}', space=sflag, size = 0x8, scoped, tag = 'scoped memory for upsampling_add.1']
    #allocation4 [shape = 's32[2]{0}', space=sflag, size = 0x8, scoped, tag = 'scoped memory for upsampling_add.1']
    #allocation5 [shape = 'u8[512]{0}', space=smem, size = 0x200, scoped, tag = 'input window, operand 4, single buffered']
    #allocation6 [shape = 's32[1]{0}', space=sflag, size = 0x4, scoped, tag = 'scoped memory for upsampling_add.1']
    #allocation7 [shape = 'u8[131072]{0}', space=vmem, size = 0x20000, scoped, tag = 'output window, operand 0']
    %11 = vsyncpa [#allocation4], 0
    %12 = vsyncpa [#allocation6], 0
    %13 = vsyncpa [#allocation3], 0
    %s14 = scalar_lea.sflag [#allocation3], 1
    %15 = vsyncpa %s14, 0
    loop: start=0, step=1, limit=4
    $region2: #{upsampling_add.1} parent=1 // loop_pre_header
      _
    $region3: #{upsampling_add.1} parent=1 // loop_header
      %s17 = sphi 0, %s21
      %p18 = scmp.ge.s32.totalorder %s17, 4
      %s24 = sphi 0, %s36
      %s25 = sphi 0, %s32
      %s26 = sphi 0, %s24
      %s27 = sphi 0, %s25
      %s28 = sphi 0, %s26
      %s29 = sphi 0, %s27
      %s39 = sphi 0, %s41
      %s42 = sphi 0, %s39
      %s43 = sphi 0, %s42
      %s59 = sphi 0, %s43
      %s63 = sphi 0, %s63
      %s65 = sphi 0, %s63
      %s66 = sphi 0, %s65
      %s80 = sphi 0, %s66
      %s84 = sphi 0, %s84
      %s86 = sphi 0, %s84
      %s87 = sphi 0, %s86
      %s101 = sphi 0, %s87
      %s105 = sphi 0, %s105
      %s107 = sphi 0, %s105
      %s108 = sphi 0, %s107
      %s122 = sphi 0, %s108
      %s126 = sphi 0, %s126
      %s128 = sphi 0, %s126
      %s129 = sphi 0, %s128
      %s143 = sphi 0, %s129
      %s151 = sphi 0, %s153
      %s154 = sphi 0, %s151
      %s155 = sphi 0, %s154
      %s171 = sphi 0, %s155
      %s179 = sphi 0, %s181
      %s182 = sphi 0, %s179
      %s183 = sphi 0, %s182
      %s199 = sphi 0, %s183
    $region4: #{upsampling_add.1} parent=1 // loop_header_branch
      %20 = sbr.rel (%p18) target = $region8
    $region5: #{upsampling_add.1} parent=1 // loop_body
      %s22 = ssub.s32 %s17, 1
      %s23 = ssub.s32 %s17, 2
      %s30 = sadd.s32 1, %s25
      %p31 = scmp.ge.s32.totalorder %s30, 1
      %s32 = scalar_select %p31, 0, %s30
      %s33 = sadd.s32 1, %s24
      %s34 = scalar_select %p31, %s33, %s24
      %p35 = scmp.ge.s32.totalorder %s34, 2
      %s36 = scalar_select %p35, 0, %s34
      %s37 = ssub.s32 %s24, %s36
      %p38 = scmp.eq.s32.totalorder %s37, 0
      %s40 = sadd.s32 %s39, 1
      %s41 = scalar_select %p38, %s39, %s40
      %p44 = pneg %p38
      %p45 = scmp.eq.s32.totalorder %s17, 1
      %p46 = por %p44, %p45
      %p47 = scmp.ne.s32.totalorder %s39, %s42
      %p48 = scmp.eq.s32.totalorder %s17, 0
      %p49 = por %p47, %p48
      %p50 = scmp.ne.s32.totalorder %s39, %s42
      %p51 = scmp.eq.s32.totalorder %s22, 1
      %p52 = por %p50, %p51
      %p53 = scmp.ne.s32.totalorder %s42, %s43
      %p54 = scmp.eq.s32.totalorder %s22, 0
      %p55 = por %p53, %p54
      %p56 = scmp.ne.s32.totalorder %s42, %s43
      %p57 = scmp.eq.s32.totalorder %s23, 1
      %p58 = por %p56, %p57
      %p60 = scmp.ne.s32.totalorder %s43, %s59
      %p61 = scmp.eq.s32.totalorder %s23, 0
      %p62 = por %p60, %p61
      %s64 = sadd.s32 %s63, 1
      %p67 = scmp.eq.s32.totalorder %s17, 1
      %p68 = scmp.ne.s32.totalorder %s63, %s65
      %p69 = scmp.eq.s32.totalorder %s17, 0
      %p70 = por %p68, %p69
      %p71 = scmp.ne.s32.totalorder %s63, %s65
      %p72 = scmp.eq.s32.totalorder %s22, 1
      %p73 = por %p71, %p72
      %p74 = scmp.ne.s32.totalorder %s65, %s66
      %p75 = scmp.eq.s32.totalorder %s22, 0
      %p76 = por %p74, %p75
      %p77 = scmp.ne.s32.totalorder %s65, %s66
      %p78 = scmp.eq.s32.totalorder %s23, 1
      %p79 = por %p77, %p78
      %p81 = scmp.ne.s32.totalorder %s66, %s80
      %p82 = scmp.eq.s32.totalorder %s23, 0
      %p83 = por %p81, %p82
      %s85 = sadd.s32 %s84, 1
      %p88 = scmp.eq.s32.totalorder %s17, 1
      %p89 = scmp.ne.s32.totalorder %s84, %s86
      %p90 = scmp.eq.s32.totalorder %s17, 0
      %p91 = por %p89, %p90
      %p92 = scmp.ne.s32.totalorder %s84, %s86
      %p93 = scmp.eq.s32.totalorder %s22, 1
      %p94 = por %p92, %p93
      %p95 = scmp.ne.s32.totalorder %s86, %s87
      %p96 = scmp.eq.s32.totalorder %s22, 0
      %p97 = por %p95, %p96
      %p98 = scmp.ne.s32.totalorder %s86, %s87
      %p99 = scmp.eq.s32.totalorder %s23, 1
      %p100 = por %p98, %p99
      %p102 = scmp.ne.s32.totalorder %s87, %s101
      %p103 = scmp.eq.s32.totalorder %s23, 0
      %p104 = por %p102, %p103
      %s106 = sadd.s32 %s105, 1
      %p109 = scmp.eq.s32.totalorder %s17, 1
      %p110 = scmp.ne.s32.totalorder %s105, %s107
      %p111 = scmp.eq.s32.totalorder %s17, 0
      %p112 = por %p110, %p111
      %p113 = scmp.ne.s32.totalorder %s105, %s107
      %p114 = scmp.eq.s32.totalorder %s22, 1
      %p115 = por %p113, %p114
      %p116 = scmp.ne.s32.totalorder %s107, %s108
      %p117 = scmp.eq.s32.totalorder %s22, 0
      %p118 = por %p116, %p117
      %p119 = scmp.ne.s32.totalorder %s107, %s108
      %p120 = scmp.eq.s32.totalorder %s23, 1
      %p121 = por %p119, %p120
      %p123 = scmp.ne.s32.totalorder %s108, %s122
      %p124 = scmp.eq.s32.totalorder %s23, 0
      %p125 = por %p123, %p124
      %s127 = sadd.s32 %s126, 1
      %p130 = scmp.eq.s32.totalorder %s17, 1
      %p131 = scmp.ne.s32.totalorder %s126, %s128
      %p132 = scmp.eq.s32.totalorder %s17, 0
      %p133 = por %p131, %p132
      %p134 = scmp.ne.s32.totalorder %s126, %s128
      %p135 = scmp.eq.s32.totalorder %s22, 1
      %p136 = por %p134, %p135
      %p137 = scmp.ne.s32.totalorder %s128, %s129
      %p138 = scmp.eq.s32.totalorder %s22, 0
      %p139 = por %p137, %p138
      %p140 = scmp.ne.s32.totalorder %s128, %s129
      %p141 = scmp.eq.s32.totalorder %s23, 1
      %p142 = por %p140, %p141
      %p144 = scmp.ne.s32.totalorder %s129, %s143
      %p145 = scmp.eq.s32.totalorder %s23, 0
      %p146 = por %p144, %p145
      %s147 = ssub.s32 %s24, %s36
      %s148 = ssub.s32 %s25, %s32
      %s149 = sor.u32 %s147, %s148
      %p150 = scmp.eq.s32.totalorder %s149, 0
      %s152 = sadd.s32 %s151, 1
      %s153 = scalar_select %p150, %s151, %s152
      %p156 = pneg %p150
      %p157 = scmp.eq.s32.totalorder %s17, 1
      %p158 = por %p156, %p157
      %p159 = scmp.ne.s32.totalorder %s151, %s154
      %p160 = scmp.eq.s32.totalorder %s17, 0
      %p161 = por %p159, %p160
      %p162 = scmp.ne.s32.totalorder %s151, %s154
      %p163 = scmp.eq.s32.totalorder %s22, 1
      %p164 = por %p162, %p163
      %p165 = scmp.ne.s32.totalorder %s154, %s155
      %p166 = scmp.eq.s32.totalorder %s22, 0
      %p167 = por %p165, %p166
      %p168 = scmp.ne.s32.totalorder %s154, %s155
      %p169 = scmp.eq.s32.totalorder %s23, 1
      %p170 = por %p168, %p169
      %p172 = scmp.ne.s32.totalorder %s155, %s171
      %p173 = scmp.eq.s32.totalorder %s23, 0
      %p174 = por %p172, %p173
      %s175 = ssub.s32 %s24, %s36
      %s176 = ssub.s32 %s25, %s32
      %s177 = sor.u32 %s175, %s176
      %p178 = scmp.eq.s32.totalorder %s177, 0
      %s180 = sadd.s32 %s179, 1
      %s181 = scalar_select %p178, %s179, %s180
      %p184 = pneg %p178
      %p185 = scmp.eq.s32.totalorder %s17, 1
      %p186 = por %p184, %p185
      %p187 = scmp.ne.s32.totalorder %s179, %s182
      %p188 = scmp.eq.s32.totalorder %s17, 0
      %p189 = por %p187, %p188
      %p190 = scmp.ne.s32.totalorder %s179, %s182
      %p191 = scmp.eq.s32.totalorder %s22, 1
      %p192 = por %p190, %p191
      %p193 = scmp.ne.s32.totalorder %s182, %s183
      %p194 = scmp.eq.s32.totalorder %s22, 0
      %p195 = por %p193, %p194
      %p196 = scmp.ne.s32.totalorder %s182, %s183
      %p197 = scmp.eq.s32.totalorder %s23, 1
      %p198 = por %p196, %p197
      %p200 = scmp.ne.s32.totalorder %s183, %s199
      %p201 = scmp.eq.s32.totalorder %s23, 0
      %p202 = por %p200, %p201
      %p203 = scmp.le.s32.totalorder 1, %s17
      %p204 = scmp.lt.s32.totalorder %s17, 3
      %p205 = pnand %p203, %p204
      %p206 = pneg %p205
      // Predicated region
      $region9: #{upsampling_add.1} parent=5 // pred_check
        _
      $region10: #{upsampling_add.1} parent=5 // pred_check_branch
        %208 = sbr.rel (%p205) target = $region12
      $region11: #{upsampling_add.1} parent=5 // pred_region
        %s209 = ssub.s32 %s17, 1
        // Predicated region
        $region13: #{upsampling_add.1} parent=11 // pred_check
          %p210 = pneg %p76
        $region14: #{upsampling_add.1} parent=11 // pred_check_branch
          %212 = sbr.rel (%p210) target = $region16
        $region15: #{upsampling_add.1} parent=11 // pred_region
          _
        $region16: #{upsampling_add.1} parent=11 // pred_fallthru
          _
        // Predicated region
        $region17: #{upsampling_add.1} parent=11 // pred_check
          %p213 = pneg %p97
        $region18: #{upsampling_add.1} parent=11 // pred_check_branch
          %215 = sbr.rel (%p213) target = $region20
        $region19: #{upsampling_add.1} parent=11 // pred_region
          _
        $region20: #{upsampling_add.1} parent=11 // pred_fallthru
          _
        // Predicated region
        $region21: #{upsampling_add.1} parent=11 // pred_check
          %p216 = pneg %p118
        $region22: #{upsampling_add.1} parent=11 // pred_check_branch
          %218 = sbr.rel (%p216) target = $region24
        $region23: #{upsampling_add.1} parent=11 // pred_region
          %220 = vsyncadd [#allocation4], 0
          %s222 = sshll.u32 %s3, 4
          %s223 = int_to_ptr.vmem [resolvable:$true] %s222
          %225 = dma.vmem_to_smem %s223, 16, [#allocation2], [#allocation4]
        $region24: #{upsampling_add.1} parent=11 // pred_fallthru
          _
        // Predicated region
        $region25: #{upsampling_add.1} parent=11 // pred_check
          %p226 = pneg %p139
        $region26: #{upsampling_add.1} parent=11 // pred_check_branch
          %228 = sbr.rel (%p226) target = $region28
        $region27: #{upsampling_add.1} parent=11 // pred_region
          %230 = vsyncadd [#allocation6], 0
          %s232 = sshll.u32 %s4, 4
          %s233 = int_to_ptr.vmem [resolvable:$true] %s232
          %235 = dma.vmem_to_smem %s233, 16, [#allocation5], [#allocation6]
        $region28: #{upsampling_add.1} parent=11 // pred_fallthru
          _
      $region12: #{upsampling_add.1} parent=5 // pred_fallthru
        _
      %p236 = scmp.lt.s32.totalorder %s17, 2
      // Predicated region
      $region29: #{upsampling_add.1} parent=5 // pred_check
        %p237 = pneg %p236
      $region30: #{upsampling_add.1} parent=5 // pred_check_branch
        %239 = sbr.rel (%p237) target = $region32
      $region31: #{upsampling_add.1} parent=5 // pred_region
        // Predicated region
        $region33: #{upsampling_add.1} parent=31 // pred_check
          %p240 = pneg %p49
        $region34: #{upsampling_add.1} parent=31 // pred_check_branch
          %242 = sbr.rel (%p240) target = $region36
        $region35: #{upsampling_add.1} parent=31 // pred_region
          %p243 = scmp.lt.s32.totalorder %s24, 1
          %s244 = scalar_select %p243, %s24, 1
          %s245 = smul.addr %s244, 16
          %s246 = smul.addr %s245, 8
          %s247 = scalar_lea.vmem %s0, %s246
        $region36: #{upsampling_add.1} parent=31 // pred_fallthru
          _
        // Predicated region
        $region37: #{upsampling_add.1} parent=31 // pred_check
          %p248 = pneg %p161
        $region38: #{upsampling_add.1} parent=31 // pred_check_branch
          %250 = sbr.rel (%p248) target = $region40
        $region39: #{upsampling_add.1} parent=31 // pred_region
          %s251 = smul.u32 8, %s25
          %p252 = scmp.lt.s32.totalorder %s24, 1
          %s253 = scalar_select %p252, %s24, 1
          %p254 = scmp.lt.s32.totalorder %s251, 7
          %s255 = scalar_select %p254, %s251, 7
          %s256 = smul.addr %s255, 2
          %s257 = smul.addr %s253, 16
          %s258 = sadd.s32 %s256, %s257
          %s259 = smul.addr %s258, 8
          %s260 = scalar_lea.vmem %s5, %s259
          %s261 = smul.u32 8, %s25
        $region40: #{upsampling_add.1} parent=31 // pred_fallthru
          _
      $region32: #{upsampling_add.1} parent=5 // pred_fallthru
        _
      %p262 = scmp.le.s32.totalorder 1, %s17
      %p263 = scmp.lt.s32.totalorder %s17, 3
      %p264 = pnand %p262, %p263
      %p265 = pneg %p264
      // Predicated region
      $region41: #{upsampling_add.1} parent=5 // pred_check
        _
      $region42: #{upsampling_add.1} parent=5 // pred_check_branch
        %267 = sbr.rel (%p264) target = $region44
      $region43: #{upsampling_add.1} parent=5 // pred_region
        %s268 = ssub.s32 %s17, 1
        // Predicated region
        $region45: #{upsampling_add.1} parent=43 // pred_check
          %p269 = pneg %p118
        $region46: #{upsampling_add.1} parent=43 // pred_check_branch
          %271 = sbr.rel (%p269) target = $region48
        $region47: #{upsampling_add.1} parent=43 // pred_region
          %273 = dma.done [#allocation4], 16
        $region48: #{upsampling_add.1} parent=43 // pred_fallthru
          _
        // Predicated region
        $region49: #{upsampling_add.1} parent=43 // pred_check
          %p274 = pneg %p139
        $region50: #{upsampling_add.1} parent=43 // pred_check_branch
          %276 = sbr.rel (%p274) target = $region52
        $region51: #{upsampling_add.1} parent=43 // pred_region
          %278 = dma.done [#allocation6], 16
        $region52: #{upsampling_add.1} parent=43 // pred_fallthru
          _
        %279 = sfence
        %p280 = scmp.lt.s32.totalorder %s26, 1
        %s281 = scalar_select %p280, %s26, 1
        %s282 = smul.addr %s281, 16
        %s283 = smul.addr %s282, 8
        %s284 = scalar_lea.vmem %s0, %s283
        %p285 = pneg %p55
        %p286 = pneg %p52
        %p287 = pneg %p76
        %p288 = pneg %p73
        %p289 = pneg %p97
        %p290 = pneg %p94
        %p291 = pneg %p118
        %p292 = pneg %p115
        %p293 = pneg %p139
        %p294 = pneg %p136
        %s295 = smul.u32 8, %s27
        %p296 = scmp.lt.s32.totalorder %s26, 1
        %s297 = scalar_select %p296, %s26, 1
        %p298 = scmp.lt.s32.totalorder %s295, 7
        %s299 = scalar_select %p298, %s295, 7
        %s300 = smul.addr %s299, 2
        %s301 = smul.addr %s297, 16
        %s302 = sadd.s32 %s300, %s301
        %s303 = smul.addr %s302, 8
        %s304 = scalar_lea.vmem %s5, %s303
        %p305 = pneg %p167
        %p306 = pneg %p164
        %p307 = pneg %p195
        %p308 = pneg %p192
        %s309 = sand.u32 %s182, 1
        %s310 = scalar_lea.sflag [#allocation3], %s309
        %s311 = sand.u32 %s182, 1
        %s312 = smul.addr %s311, 128
        %s313 = scalar_lea.vmem [#allocation7], %s312
        %p314 = scmp.lt.s32.totalorder %s26, 1
        %s315 = scalar_select %p314, %s26, 1
        %s316 = smul.addr %s315, 16
        %s317 = smul.addr %s316, 8
        %s318 = scalar_lea.vmem %s0, %s317
        %s319 = smul.u32 8, %s27
        %p320 = scmp.lt.s32.totalorder %s26, 1
        %s321 = scalar_select %p320, %s26, 1
        %p322 = scmp.lt.s32.totalorder %s319, 7
        %s323 = scalar_select %p322, %s319, 7
        %s324 = smul.addr %s323, 2
        %s325 = smul.addr %s321, 16
        %s326 = sadd.s32 %s324, %s325
        %s327 = smul.addr %s326, 8
        %s328 = scalar_lea.vmem %s5, %s327
        %s329 = smul.u32 8, %s27
        %s330 = smul.u32 8, %s27
        %v331 = vld [vmem:[%s318] sm:$0xff]
        %v332 = vld [vmem:[%s318 + $0x8] sm:$0xff]
        %v333 = vld [vmem:[%s318 + $0x10] sm:$0xff]
        %v334 = vld [vmem:[%s318 + $0x18] sm:$0xff]
        %v335 = vld [vmem:[%s318 + $0x20] sm:$0xff]
        %v336 = vld [vmem:[%s318 + $0x28] sm:$0xff]
        %v337 = vld [vmem:[%s318 + $0x30] sm:$0xff]
        %v338 = vld [vmem:[%s318 + $0x38] sm:$0xff]
        %v339 = vld [vmem:[%s318 + $0x40] sm:$0xff]
        %v340 = vld [vmem:[%s318 + $0x48] sm:$0xff]
        %v341 = vld [vmem:[%s318 + $0x50] sm:$0xff]
        %v342 = vld [vmem:[%s318 + $0x58] sm:$0xff]
        %v343 = vld [vmem:[%s318 + $0x60] sm:$0xff]
        %v344 = vld [vmem:[%s318 + $0x68] sm:$0xff]
        %v345 = vld [vmem:[%s318 + $0x70] sm:$0xff]
        %v346 = vld [vmem:[%s318 + $0x78] sm:$0xff]
        %v347 = vld [vmem:[%s1] sm:$0xff]
        %v348 = vld [vmem:[%s1 + $0x8] sm:$0xff]
        %v349 = vld [vmem:[%s2] sm:$0xff]
        %s350 = smul.u32 %s27, 8
        %s351 = smul.u32 %s27, 128
        %s352 = sld [smem:[#allocation2 + %s351]]
        %v353 = vstv %s352
        %v354 = vmul.f32 %v353, %v331
        %s355 = sadd.s32 %s351, 1
        %s356 = sld [smem:[#allocation2 + %s355]]
        %v357 = vstv %s356
        %v358 = vmul.f32 %v357, %v332
        %v359 = vadd.f32 %v354, %v358
        %s360 = sadd.s32 %s351, 2
        %s361 = sld [smem:[#allocation2 + %s360]]
        %v362 = vstv %s361
        %v363 = vmul.f32 %v362, %v333
        %v364 = vadd.f32 %v359, %v363
        %s365 = sadd.s32 %s351, 3
        %s366 = sld [smem:[#allocation2 + %s365]]
        %v367 = vstv %s366
        %v368 = vmul.f32 %v367, %v334
        %v369 = vadd.f32 %v364, %v368
        %s370 = sadd.s32 %s351, 4
        %s371 = sld [smem:[#allocation2 + %s370]]
        %v372 = vstv %s371
        %v373 = vmul.f32 %v372, %v335
        %v374 = vadd.f32 %v369, %v373
        %s375 = sadd.s32 %s351, 5
        %s376 = sld [smem:[#allocation2 + %s375]]
        %v377 = vstv %s376
        %v378 = vmul.f32 %v377, %v336
        %v379 = vadd.f32 %v374, %v378
        %s380 = sadd.s32 %s351, 6
        %s381 = sld [smem:[#allocation2 + %s380]]
        %v382 = vstv %s381
        %v383 = vmul.f32 %v382, %v337
        %v384 = vadd.f32 %v379, %v383
        %s385 = sadd.s32 %s351, 7
        %s386 = sld [smem:[#allocation2 + %s385]]
        %v387 = vstv %s386
        %v388 = vmul.f32 %v387, %v338
        %v389 = vadd.f32 %v384, %v388
        %s390 = sadd.s32 %s351, 8
        %s391 = sld [smem:[#allocation2 + %s390]]
        %v392 = vstv %s391
        %v393 = vmul.f32 %v392, %v339
        %v394 = vadd.f32 %v389, %v393
        %s395 = sadd.s32 %s351, 9
        %s396 = sld [smem:[#allocation2 + %s395]]
        %v397 = vstv %s396
        %v398 = vmul.f32 %v397, %v340
        %v399 = vadd.f32 %v394, %v398
        %s400 = sadd.s32 %s351, 10
        %s401 = sld [smem:[#allocation2 + %s400]]
        %v402 = vstv %s401
        %v403 = vmul.f32 %v402, %v341
        %v404 = vadd.f32 %v399, %v403
        %s405 = sadd.s32 %s351, 11
        %s406 = sld [smem:[#allocation2 + %s405]]
        %v407 = vstv %s406
        %v408 = vmul.f32 %v407, %v342
        %v409 = vadd.f32 %v404, %v408
        %s410 = sadd.s32 %s351, 12
        %s411 = sld [smem:[#allocation2 + %s410]]
        %v412 = vstv %s411
        %v413 = vmul.f32 %v412, %v343
        %v414 = vadd.f32 %v409, %v413
        %s415 = sadd.s32 %s351, 13
        %s416 = sld [smem:[#allocation2 + %s415]]
        %v417 = vstv %s416
        %v418 = vmul.f32 %v417, %v344
        %v419 = vadd.f32 %v414, %v418
        %s420 = sadd.s32 %s351, 14
        %s421 = sld [smem:[#allocation2 + %s420]]
        %v422 = vstv %s421
        %v423 = vmul.f32 %v422, %v345
        %v424 = vadd.f32 %v419, %v423
        %s425 = sadd.s32 %s351, 15
        %s426 = sld [smem:[#allocation2 + %s425]]
        %v427 = vstv %s426
        %v428 = vmul.f32 %v427, %v346
        %v429 = vadd.f32 %v424, %v428
        %vm430 = vcmask 64512
        %v432 = vsel %vm430, %v429, 0
        %434 = vmatpush.msra.mxu0 0.0
        %435 = vmatpush.msra.mxu0 0.0
        %436 = vmatpush.msra.mxu0 0.0
        %437 = vmatpush.msra.mxu0 0.0
        %438 = vmatpush.msra.mxu0 0.0
        %439 = vmatpush.msra.mxu0 0.0
        %440 = vmatpush.msra.mxu0 0.0
        %441 = vmatpush.msra.mxu0 0.0
        %442 = vmatpush.msra.mxu0 0.0
        %443 = vmatpush.msra.mxu0 0.0
        %444 = vmatpush.msra.mxu0 0.0
        %445 = vmatpush.msra.mxu0 0.0
        %446 = vmatpush.msra.mxu0 0.0
        %447 = vmatpush.msra.mxu0 0.0
        %448 = vmatpush.msra.mxu0 0.0
        %449 = vmatpush.msra.mxu0 %v349
        %450 = vmatmul.f32.gmra.mxu0 %v432
        %v451 = vpop.f32.mrf.mxu0
        %v452 = vadd.f32 0.0, %v451
        %453 = vdwg.mxu0
        %s454 = sld [smem:[#allocation5 + %s350]]
        %v455 = vstv %s454
        %v457 = vsel %vm430, %v347, 0
        %v460 = vsel %vm430, %v348, 0
        %462 = vmatpush.msra.mxu0 0.0
        %463 = vmatpush.msra.mxu0 0.0
        %464 = vmatpush.msra.mxu0 0.0
        %465 = vmatpush.msra.mxu0 0.0
        %466 = vmatpush.msra.mxu0 0.0
        %467 = vmatpush.msra.mxu0 0.0
        %468 = vmatpush.msra.mxu0 0.0
        %469 = vmatpush.msra.mxu0 0.0
        %470 = vmatpush.msra.mxu0 0.0
        %471 = vmatpush.msra.mxu0 0.0
        %472 = vmatpush.msra.mxu0 0.0
        %473 = vmatpush.msra.mxu0 0.0
        %474 = vmatpush.msra.mxu0 0.0
        %475 = vmatpush.msra.mxu0 0.0
        %476 = vmatpush.msra.mxu0 0.0
        %477 = vmatpush.msra.mxu0 %v452
        %478 = vmatmul.f32.gmra.mxu0 %v457
        %v479 = vpop.f32.mrf.mxu0
        %v480 = vadd.f32 %v455, %v479
        %481 = vmatmul.f32.gmra.mxu0 %v460
        %v482 = vpop.f32.mrf.mxu0
        %v483 = vadd.f32 %v455, %v482
        %484 = vdwg.mxu0
        %v485 = vld [vmem:[%s328] sm:$0xff]
        %v486 = vld [vmem:[%s328 + $0x8] sm:$0xff]
        %v487 = vadd.f32 %v480, %v485
        %v488 = vadd.f32 %v483, %v486
        %vm489 = vcmask 130048
        %490 = vst.msk [vmem:[%s313] sm:$0xff] %vm489, %v487
        %491 = vst.msk [vmem:[%s313 + $0x8] sm:$0xff] %vm489, %v488
        %s492 = sadd.s32 %s350, 1
        %s493 = smul.u32 %s492, 16
        %s494 = sld [smem:[#allocation2 + %s493]]
        %v495 = vstv %s494
        %v496 = vmul.f32 %v495, %v331
        %s497 = sadd.s32 %s493, 1
        %s498 = sld [smem:[#allocation2 + %s497]]
        %v499 = vstv %s498
        %v500 = vmul.f32 %v499, %v332
        %v501 = vadd.f32 %v496, %v500
        %s502 = sadd.s32 %s493, 2
        %s503 = sld [smem:[#allocation2 + %s502]]
        %v504 = vstv %s503
        %v505 = vmul.f32 %v504, %v333
        %v506 = vadd.f32 %v501, %v505
        %s507 = sadd.s32 %s493, 3
        %s508 = sld [smem:[#allocation2 + %s507]]
        %v509 = vstv %s508
        %v510 = vmul.f32 %v509, %v334
        %v511 = vadd.f32 %v506, %v510
        %s512 = sadd.s32 %s493, 4
        %s513 = sld [smem:[#allocation2 + %s512]]
        %v514 = vstv %s513
        %v515 = vmul.f32 %v514, %v335
        %v516 = vadd.f32 %v511, %v515
        %s517 = sadd.s32 %s493, 5
        %s518 = sld [smem:[#allocation2 + %s517]]
        %v519 = vstv %s518
        %v520 = vmul.f32 %v519, %v336
        %v521 = vadd.f32 %v516, %v520
        %s522 = sadd.s32 %s493, 6
        %s523 = sld [smem:[#allocation2 + %s522]]
        %v524 = vstv %s523
        %v525 = vmul.f32 %v524, %v337
        %v526 = vadd.f32 %v521, %v525
        %s527 = sadd.s32 %s493, 7
        %s528 = sld [smem:[#allocation2 + %s527]]
        %v529 = vstv %s528
        %v530 = vmul.f32 %v529, %v338
        %v531 = vadd.f32 %v526, %v530
        %s532 = sadd.s32 %s493, 8
        %s533 = sld [smem:[#allocation2 + %s532]]
        %v534 = vstv %s533
        %v535 = vmul.f32 %v534, %v339
        %v536 = vadd.f32 %v531, %v535
        %s537 = sadd.s32 %s493, 9
        %s538 = sld [smem:[#allocation2 + %s537]]
        %v539 = vstv %s538
        %v540 = vmul.f32 %v539, %v340
        %v541 = vadd.f32 %v536, %v540
        %s542 = sadd.s32 %s493, 10
        %s543 = sld [smem:[#allocation2 + %s542]]
        %v544 = vstv %s543
        %v545 = vmul.f32 %v544, %v341
        %v546 = vadd.f32 %v541, %v545
        %s547 = sadd.s32 %s493, 11
        %s548 = sld [smem:[#allocation2 + %s547]]
        %v549 = vstv %s548
        %v550 = vmul.f32 %v549, %v342
        %v551 = vadd.f32 %v546, %v550
        %s552 = sadd.s32 %s493, 12
        %s553 = sld [smem:[#allocation2 + %s552]]
        %v554 = vstv %s553
        %v555 = vmul.f32 %v554, %v343
        %v556 = vadd.f32 %v551, %v555
        %s557 = sadd.s32 %s493, 13
        %s558 = sld [smem:[#allocation2 + %s557]]
        %v559 = vstv %s558
        %v560 = vmul.f32 %v559, %v344
        %v561 = vadd.f32 %v556, %v560
        %s562 = sadd.s32 %s493, 14
        %s563 = sld [smem:[#allocation2 + %s562]]
        %v564 = vstv %s563
        %v565 = vmul.f32 %v564, %v345
        %v566 = vadd.f32 %v561, %v565
        %s567 = sadd.s32 %s493, 15
        %s568 = sld [smem:[#allocation2 + %s567]]
        %v569 = vstv %s568
        %v570 = vmul.f32 %v569, %v346
        %v571 = vadd.f32 %v566, %v570
        %v573 = vsel %vm430, %v571, 0
        %575 = vmatpush.msra.mxu0 0.0
        %576 = vmatpush.msra.mxu0 0.0
        %577 = vmatpush.msra.mxu0 0.0
        %578 = vmatpush.msra.mxu0 0.0
        %579 = vmatpush.msra.mxu0 0.0
        %580 = vmatpush.msra.mxu0 0.0
        %581 = vmatpush.msra.mxu0 0.0
        %582 = vmatpush.msra.mxu0 0.0
        %583 = vmatpush.msra.mxu0 0.0
        %584 = vmatpush.msra.mxu0 0.0
        %585 = vmatpush.msra.mxu0 0.0
        %586 = vmatpush.msra.mxu0 0.0
        %587 = vmatpush.msra.mxu0 0.0
        %588 = vmatpush.msra.mxu0 0.0
        %589 = vmatpush.msra.mxu0 0.0
        %590 = vmatpush.msra.mxu0 %v349
        %591 = vmatmul.f32.gmra.mxu0 %v573
        %v592 = vpop.f32.mrf.mxu0
        %v593 = vadd.f32 0.0, %v592
        %594 = vdwg.mxu0
        %s595 = sld [smem:[#allocation5 + %s492]]
        %v596 = vstv %s595
        %597 = vmatpush.msra.mxu0 0.0
        %598 = vmatpush.msra.mxu0 0.0
        %599 = vmatpush.msra.mxu0 0.0
        %600 = vmatpush.msra.mxu0 0.0
        %601 = vmatpush.msra.mxu0 0.0
        %602 = vmatpush.msra.mxu0 0.0
        %603 = vmatpush.msra.mxu0 0.0
        %604 = vmatpush.msra.mxu0 0.0
        %605 = vmatpush.msra.mxu0 0.0
        %606 = vmatpush.msra.mxu0 0.0
        %607 = vmatpush.msra.mxu0 0.0
        %608 = vmatpush.msra.mxu0 0.0
        %609 = vmatpush.msra.mxu0 0.0
        %610 = vmatpush.msra.mxu0 0.0
        %611 = vmatpush.msra.mxu0 0.0
        %612 = vmatpush.msra.mxu0 %v593
        %613 = vmatmul.f32.gmra.mxu0 %v457
        %v614 = vpop.f32.mrf.mxu0
        %v615 = vadd.f32 %v596, %v614
        %616 = vmatmul.f32.gmra.mxu0 %v460
        %v617 = vpop.f32.mrf.mxu0
        %v618 = vadd.f32 %v596, %v617
        %619 = vdwg.mxu0
        %s620 = scalar_lea.vmem %s328, 16
        %v621 = vld [vmem:[%s620] sm:$0xff]
        %v622 = vld [vmem:[%s620 + $0x8] sm:$0xff]
        %v623 = vadd.f32 %v615, %v621
        %v624 = vadd.f32 %v618, %v622
        %s625 = scalar_lea.vmem %s313, 16 [#allocation7]
        %626 = vst.msk [vmem:[%s625] sm:$0xff] %vm489, %v623
        %627 = vst.msk [vmem:[%s625 + $0x8] sm:$0xff] %vm489, %v624
        %s628 = sadd.s32 %s350, 2
        %s629 = smul.u32 %s628, 16
        %s630 = sld [smem:[#allocation2 + %s629]]
        %v631 = vstv %s630
        %v632 = vmul.f32 %v631, %v331
        %s633 = sadd.s32 %s629, 1
        %s634 = sld [smem:[#allocation2 + %s633]]
        %v635 = vstv %s634
        %v636 = vmul.f32 %v635, %v332
        %v637 = vadd.f32 %v632, %v636
        %s638 = sadd.s32 %s629, 2
        %s639 = sld [smem:[#allocation2 + %s638]]
        %v640 = vstv %s639
        %v641 = vmul.f32 %v640, %v333
        %v642 = vadd.f32 %v637, %v641
        %s643 = sadd.s32 %s629, 3
        %s644 = sld [smem:[#allocation2 + %s643]]
        %v645 = vstv %s644
        %v646 = vmul.f32 %v645, %v334
        %v647 = vadd.f32 %v642, %v646
        %s648 = sadd.s32 %s629, 4
        %s649 = sld [smem:[#allocation2 + %s648]]
        %v650 = vstv %s649
        %v651 = vmul.f32 %v650, %v335
        %v652 = vadd.f32 %v647, %v651
        %s653 = sadd.s32 %s629, 5
        %s654 = sld [smem:[#allocation2 + %s653]]
        %v655 = vstv %s654
        %v656 = vmul.f32 %v655, %v336
        %v657 = vadd.f32 %v652, %v656
        %s658 = sadd.s32 %s629, 6
        %s659 = sld [smem:[#allocation2 + %s658]]
        %v660 = vstv %s659
        %v661 = vmul.f32 %v660, %v337
        %v662 = vadd.f32 %v657, %v661
        %s663 = sadd.s32 %s629, 7
        %s664 = sld [smem:[#allocation2 + %s663]]
        %v665 = vstv %s664
        %v666 = vmul.f32 %v665, %v338
        %v667 = vadd.f32 %v662, %v666
        %s668 = sadd.s32 %s629, 8
        %s669 = sld [smem:[#allocation2 + %s668]]
        %v670 = vstv %s669
        %v671 = vmul.f32 %v670, %v339
        %v672 = vadd.f32 %v667, %v671
        %s673 = sadd.s32 %s629, 9
        %s674 = sld [smem:[#allocation2 + %s673]]
        %v675 = vstv %s674
        %v676 = vmul.f32 %v675, %v340
        %v677 = vadd.f32 %v672, %v676
        %s678 = sadd.s32 %s629, 10
        %s679 = sld [smem:[#allocation2 + %s678]]
        %v680 = vstv %s679
        %v681 = vmul.f32 %v680, %v341
        %v682 = vadd.f32 %v677, %v681
        %s683 = sadd.s32 %s629, 11
        %s684 = sld [smem:[#allocation2 + %s683]]
        %v685 = vstv %s684
        %v686 = vmul.f32 %v685, %v342
        %v687 = vadd.f32 %v682, %v686
        %s688 = sadd.s32 %s629, 12
        %s689 = sld [smem:[#allocation2 + %s688]]
        %v690 = vstv %s689
        %v691 = vmul.f32 %v690, %v343
        %v692 = vadd.f32 %v687, %v691
        %s693 = sadd.s32 %s629, 13
        %s694 = sld [smem:[#allocation2 + %s693]]
        %v695 = vstv %s694
        %v696 = vmul.f32 %v695, %v344
        %v697 = vadd.f32 %v692, %v696
        %s698 = sadd.s32 %s629, 14
        %s699 = sld [smem:[#allocation2 + %s698]]
        %v700 = vstv %s699
        %v701 = vmul.f32 %v700, %v345
        %v702 = vadd.f32 %v697, %v701
        %s703 = sadd.s32 %s629, 15
        %s704 = sld [smem:[#allocation2 + %s703]]
        %v705 = vstv %s704
        %v706 = vmul.f32 %v705, %v346
        %v707 = vadd.f32 %v702, %v706
        %v709 = vsel %vm430, %v707, 0
        %711 = vmatpush.msra.mxu0 0.0
        %712 = vmatpush.msra.mxu0 0.0
        %713 = vmatpush.msra.mxu0 0.0
        %714 = vmatpush.msra.mxu0 0.0
        %715 = vmatpush.msra.mxu0 0.0
        %716 = vmatpush.msra.mxu0 0.0
        %717 = vmatpush.msra.mxu0 0.0
        %718 = vmatpush.msra.mxu0 0.0
        %719 = vmatpush.msra.mxu0 0.0
        %720 = vmatpush.msra.mxu0 0.0
        %721 = vmatpush.msra.mxu0 0.0
        %722 = vmatpush.msra.mxu0 0.0
        %723 = vmatpush.msra.mxu0 0.0
        %724 = vmatpush.msra.mxu0 0.0
        %725 = vmatpush.msra.mxu0 0.0
        %726 = vmatpush.msra.mxu0 %v349
        %727 = vmatmul.f32.gmra.mxu0 %v709
        %v728 = vpop.f32.mrf.mxu0
        %v729 = vadd.f32 0.0, %v728
        %730 = vdwg.mxu0
        %s731 = sld [smem:[#allocation5 + %s628]]
        %v732 = vstv %s731
        %733 = vmatpush.msra.mxu0 0.0
        %734 = vmatpush.msra.mxu0 0.0
        %735 = vmatpush.msra.mxu0 0.0
        %736 = vmatpush.msra.mxu0 0.0
        %737 = vmatpush.msra.mxu0 0.0
        %738 = vmatpush.msra.mxu0 0.0
        %739 = vmatpush.msra.mxu0 0.0
        %740 = vmatpush.msra.mxu0 0.0
        %741 = vmatpush.msra.mxu0 0.0
        %742 = vmatpush.msra.mxu0 0.0
        %743 = vmatpush.msra.mxu0 0.0
        %744 = vmatpush.msra.mxu0 0.0
        %745 = vmatpush.msra.mxu0 0.0
        %746 = vmatpush.msra.mxu0 0.0
        %747 = vmatpush.msra.mxu0 0.0
        %748 = vmatpush.msra.mxu0 %v729
        %749 = vmatmul.f32.gmra.mxu0 %v457
        %v750 = vpop.f32.mrf.mxu0
        %v751 = vadd.f32 %v732, %v750
        %752 = vmatmul.f32.gmra.mxu0 %v460
        %v753 = vpop.f32.mrf.mxu0
        %v754 = vadd.f32 %v732, %v753
        %755 = vdwg.mxu0
        %s756 = scalar_lea.vmem %s328, 32
        %v757 = vld [vmem:[%s756] sm:$0xff]
        %v758 = vld [vmem:[%s756 + $0x8] sm:$0xff]
        %v759 = vadd.f32 %v751, %v757
        %v760 = vadd.f32 %v754, %v758
        %s761 = scalar_lea.vmem %s313, 32 [#allocation7]
        %762 = vst.msk [vmem:[%s761] sm:$0xff] %vm489, %v759
        %763 = vst.msk [vmem:[%s761 + $0x8] sm:$0xff] %vm489, %v760
        %s764 = sadd.s32 %s350, 3
        %s765 = smul.u32 %s764, 16
        %s766 = sld [smem:[#allocation2 + %s765]]
        %v767 = vstv %s766
        %v768 = vmul.f32 %v767, %v331
        %s769 = sadd.s32 %s765, 1
        %s770 = sld [smem:[#allocation2 + %s769]]
        %v771 = vstv %s770
        %v772 = vmul.f32 %v771, %v332
        %v773 = vadd.f32 %v768, %v772
        %s774 = sadd.s32 %s765, 2
        %s775 = sld [smem:[#allocation2 + %s774]]
        %v776 = vstv %s775
        %v777 = vmul.f32 %v776, %v333
        %v778 = vadd.f32 %v773, %v777
        %s779 = sadd.s32 %s765, 3
        %s780 = sld [smem:[#allocation2 + %s779]]
        %v781 = vstv %s780
        %v782 = vmul.f32 %v781, %v334
        %v783 = vadd.f32 %v778, %v782
        %s784 = sadd.s32 %s765, 4
        %s785 = sld [smem:[#allocation2 + %s784]]
        %v786 = vstv %s785
        %v787 = vmul.f32 %v786, %v335
        %v788 = vadd.f32 %v783, %v787
        %s789 = sadd.s32 %s765, 5
        %s790 = sld [smem:[#allocation2 + %s789]]
        %v791 = vstv %s790
        %v792 = vmul.f32 %v791, %v336
        %v793 = vadd.f32 %v788, %v792
        %s794 = sadd.s32 %s765, 6
        %s795 = sld [smem:[#allocation2 + %s794]]
        %v796 = vstv %s795
        %v797 = vmul.f32 %v796, %v337
        %v798 = vadd.f32 %v793, %v797
        %s799 = sadd.s32 %s765, 7
        %s800 = sld [smem:[#allocation2 + %s799]]
        %v801 = vstv %s800
        %v802 = vmul.f32 %v801, %v338
        %v803 = vadd.f32 %v798, %v802
        %s804 = sadd.s32 %s765, 8
        %s805 = sld [smem:[#allocation2 + %s804]]
        %v806 = vstv %s805
        %v807 = vmul.f32 %v806, %v339
        %v808 = vadd.f32 %v803, %v807
        %s809 = sadd.s32 %s765, 9
        %s810 = sld [smem:[#allocation2 + %s809]]
        %v811 = vstv %s810
        %v812 = vmul.f32 %v811, %v340
        %v813 = vadd.f32 %v808, %v812
        %s814 = sadd.s32 %s765, 10
        %s815 = sld [smem:[#allocation2 + %s814]]
        %v816 = vstv %s815
        %v817 = vmul.f32 %v816, %v341
        %v818 = vadd.f32 %v813, %v817
        %s819 = sadd.s32 %s765, 11
        %s820 = sld [smem:[#allocation2 + %s819]]
        %v821 = vstv %s820
        %v822 = vmul.f32 %v821, %v342
        %v823 = vadd.f32 %v818, %v822
        %s824 = sadd.s32 %s765, 12
        %s825 = sld [smem:[#allocation2 + %s824]]
        %v826 = vstv %s825
        %v827 = vmul.f32 %v826, %v343
        %v828 = vadd.f32 %v823, %v827
        %s829 = sadd.s32 %s765, 13
        %s830 = sld [smem:[#allocation2 + %s829]]
        %v831 = vstv %s830
        %v832 = vmul.f32 %v831, %v344
        %v833 = vadd.f32 %v828, %v832
        %s834 = sadd.s32 %s765, 14
        %s835 = sld [smem:[#allocation2 + %s834]]
        %v836 = vstv %s835
        %v837 = vmul.f32 %v836, %v345
        %v838 = vadd.f32 %v833, %v837
        %s839 = sadd.s32 %s765, 15
        %s840 = sld [smem:[#allocation2 + %s839]]
        %v841 = vstv %s840
        %v842 = vmul.f32 %v841, %v346
        %v843 = vadd.f32 %v838, %v842
        %v845 = vsel %vm430, %v843, 0
        %847 = vmatpush.msra.mxu0 0.0
        %848 = vmatpush.msra.mxu0 0.0
        %849 = vmatpush.msra.mxu0 0.0
        %850 = vmatpush.msra.mxu0 0.0
        %851 = vmatpush.msra.mxu0 0.0
        %852 = vmatpush.msra.mxu0 0.0
        %853 = vmatpush.msra.mxu0 0.0
        %854 = vmatpush.msra.mxu0 0.0
        %855 = vmatpush.msra.mxu0 0.0
        %856 = vmatpush.msra.mxu0 0.0
        %857 = vmatpush.msra.mxu0 0.0
        %858 = vmatpush.msra.mxu0 0.0
        %859 = vmatpush.msra.mxu0 0.0
        %860 = vmatpush.msra.mxu0 0.0
        %861 = vmatpush.msra.mxu0 0.0
        %862 = vmatpush.msra.mxu0 %v349
        %863 = vmatmul.f32.gmra.mxu0 %v845
        %v864 = vpop.f32.mrf.mxu0
        %v865 = vadd.f32 0.0, %v864
        %866 = vdwg.mxu0
        %s867 = sld [smem:[#allocation5 + %s764]]
        %v868 = vstv %s867
        %869 = vmatpush.msra.mxu0 0.0
        %870 = vmatpush.msra.mxu0 0.0
        %871 = vmatpush.msra.mxu0 0.0
        %872 = vmatpush.msra.mxu0 0.0
        %873 = vmatpush.msra.mxu0 0.0
        %874 = vmatpush.msra.mxu0 0.0
        %875 = vmatpush.msra.mxu0 0.0
        %876 = vmatpush.msra.mxu0 0.0
        %877 = vmatpush.msra.mxu0 0.0
        %878 = vmatpush.msra.mxu0 0.0
        %879 = vmatpush.msra.mxu0 0.0
        %880 = vmatpush.msra.mxu0 0.0
        %881 = vmatpush.msra.mxu0 0.0
        %882 = vmatpush.msra.mxu0 0.0
        %883 = vmatpush.msra.mxu0 0.0
        %884 = vmatpush.msra.mxu0 %v865
        %885 = vmatmul.f32.gmra.mxu0 %v457
        %v886 = vpop.f32.mrf.mxu0
        %v887 = vadd.f32 %v868, %v886
        %888 = vmatmul.f32.gmra.mxu0 %v460
        %v889 = vpop.f32.mrf.mxu0
        %v890 = vadd.f32 %v868, %v889
        %891 = vdwg.mxu0
        %s892 = scalar_lea.vmem %s328, 48
        %v893 = vld [vmem:[%s892] sm:$0xff]
        %v894 = vld [vmem:[%s892 + $0x8] sm:$0xff]
        %v895 = vadd.f32 %v887, %v893
        %v896 = vadd.f32 %v890, %v894
        %s897 = scalar_lea.vmem %s313, 48 [#allocation7]
        %898 = vst.msk [vmem:[%s897] sm:$0xff] %vm489, %v895
        %899 = vst.msk [vmem:[%s897 + $0x8] sm:$0xff] %vm489, %v896
        %s900 = sadd.s32 %s350, 4
        %s901 = smul.u32 %s900, 16
        %s902 = sld [smem:[#allocation2 + %s901]]
        %v903 = vstv %s902
        %v904 = vmul.f32 %v903, %v331
        %s905 = sadd.s32 %s901, 1
        %s906 = sld [smem:[#allocation2 + %s905]]
        %v907 = vstv %s906
        %v908 = vmul.f32 %v907, %v332
        %v909 = vadd.f32 %v904, %v908
        %s910 = sadd.s32 %s901, 2
        %s911 = sld [smem:[#allocation2 + %s910]]
        %v912 = vstv %s911
        %v913 = vmul.f32 %v912, %v333
        %v914 = vadd.f32 %v909, %v913
        %s915 = sadd.s32 %s901, 3
        %s916 = sld [smem:[#allocation2 + %s915]]
        %v917 = vstv %s916
        %v918 = vmul.f32 %v917, %v334
        %v919 = vadd.f32 %v914, %v918
        %s920 = sadd.s32 %s901, 4
        %s921 = sld [smem:[#allocation2 + %s920]]
        %v922 = vstv %s921
        %v923 = vmul.f32 %v922, %v335
        %v924 = vadd.f32 %v919, %v923
        %s925 = sadd.s32 %s901, 5
        %s926 = sld [smem:[#allocation2 + %s925]]
        %v927 = vstv %s926
        %v928 = vmul.f32 %v927, %v336
        %v929 = vadd.f32 %v924, %v928
        %s930 = sadd.s32 %s901, 6
        %s931 = sld [smem:[#allocation2 + %s930]]
        %v932 = vstv %s931
        %v933 = vmul.f32 %v932, %v337
        %v934 = vadd.f32 %v929, %v933
        %s935 = sadd.s32 %s901, 7
        %s936 = sld [smem:[#allocation2 + %s935]]
        %v937 = vstv %s936
        %v938 = vmul.f32 %v937, %v338
        %v939 = vadd.f32 %v934, %v938
        %s940 = sadd.s32 %s901, 8
        %s941 = sld [smem:[#allocation2 + %s940]]
        %v942 = vstv %s941
        %v943 = vmul.f32 %v942, %v339
        %v944 = vadd.f32 %v939, %v943
        %s945 = sadd.s32 %s901, 9
        %s946 = sld [smem:[#allocation2 + %s945]]
        %v947 = vstv %s946
        %v948 = vmul.f32 %v947, %v340
        %v949 = vadd.f32 %v944, %v948
        %s950 = sadd.s32 %s901, 10
        %s951 = sld [smem:[#allocation2 + %s950]]
        %v952 = vstv %s951
        %v953 = vmul.f32 %v952, %v341
        %v954 = vadd.f32 %v949, %v953
        %s955 = sadd.s32 %s901, 11
        %s956 = sld [smem:[#allocation2 + %s955]]
        %v957 = vstv %s956
        %v958 = vmul.f32 %v957, %v342
        %v959 = vadd.f32 %v954, %v958
        %s960 = sadd.s32 %s901, 12
        %s961 = sld [smem:[#allocation2 + %s960]]
        %v962 = vstv %s961
        %v963 = vmul.f32 %v962, %v343
        %v964 = vadd.f32 %v959, %v963
        %s965 = sadd.s32 %s901, 13
        %s966 = sld [smem:[#allocation2 + %s965]]
        %v967 = vstv %s966
        %v968 = vmul.f32 %v967, %v344
        %v969 = vadd.f32 %v964, %v968
        %s970 = sadd.s32 %s901, 14
        %s971 = sld [smem:[#allocation2 + %s970]]
        %v972 = vstv %s971
        %v973 = vmul.f32 %v972, %v345
        %v974 = vadd.f32 %v969, %v973
        %s975 = sadd.s32 %s901, 15
        %s976 = sld [smem:[#allocation2 + %s975]]
        %v977 = vstv %s976
        %v978 = vmul.f32 %v977, %v346
        %v979 = vadd.f32 %v974, %v978
        %v981 = vsel %vm430, %v979, 0
        %983 = vmatpush.msra.mxu0 0.0
        %984 = vmatpush.msra.mxu0 0.0
        %985 = vmatpush.msra.mxu0 0.0
        %986 = vmatpush.msra.mxu0 0.0
        %987 = vmatpush.msra.mxu0 0.0
        %988 = vmatpush.msra.mxu0 0.0
        %989 = vmatpush.msra.mxu0 0.0
        %990 = vmatpush.msra.mxu0 0.0
        %991 = vmatpush.msra.mxu0 0.0
        %992 = vmatpush.msra.mxu0 0.0
        %993 = vmatpush.msra.mxu0 0.0
        %994 = vmatpush.msra.mxu0 0.0
        %995 = vmatpush.msra.mxu0 0.0
        %996 = vmatpush.msra.mxu0 0.0
        %997 = vmatpush.msra.mxu0 0.0
        %998 = vmatpush.msra.mxu0 %v349
        %999 = vmatmul.f32.gmra.mxu0 %v981
        %v1000 = vpop.f32.mrf.mxu0
        %v1001 = vadd.f32 0.0, %v1000
        %1002 = vdwg.mxu0
        %s1003 = sld [smem:[#allocation5 + %s900]]
        %v1004 = vstv %s1003
        %1005 = vmatpush.msra.mxu0 0.0
        %1006 = vmatpush.msra.mxu0 0.0
        %1007 = vmatpush.msra.mxu0 0.0
        %1008 = vmatpush.msra.mxu0 0.0
        %1009 = vmatpush.msra.mxu0 0.0
        %1010 = vmatpush.msra.mxu0 0.0
        %1011 = vmatpush.msra.mxu0 0.0
        %1012 = vmatpush.msra.mxu0 0.0
        %1013 = vmatpush.msra.mxu0 0.0
        %1014 = vmatpush.msra.mxu0 0.0
        %1015 = vmatpush.msra.mxu0 0.0
        %1016 = vmatpush.msra.mxu0 0.0
        %1017 = vmatpush.msra.mxu0 0.0
        %1018 = vmatpush.msra.mxu0 0.0
        %1019 = vmatpush.msra.mxu0 0.0
        %1020 = vmatpush.msra.mxu0 %v1001
        %1021 = vmatmul.f32.gmra.mxu0 %v457
        %v1022 = vpop.f32.mrf.mxu0
        %v1023 = vadd.f32 %v1004, %v1022
        %1024 = vmatmul.f32.gmra.mxu0 %v460
        %v1025 = vpop.f32.mrf.mxu0
        %v1026 = vadd.f32 %v1004, %v1025
        %1027 = vdwg.mxu0
        %s1028 = scalar_lea.vmem %s328, 64
        %v1029 = vld [vmem:[%s1028] sm:$0xff]
        %v1030 = vld [vmem:[%s1028 + $0x8] sm:$0xff]
        %v1031 = vadd.f32 %v1023, %v1029
        %v1032 = vadd.f32 %v1026, %v1030
        %s1033 = scalar_lea.vmem %s313, 64 [#allocation7]
        %1034 = vst.msk [vmem:[%s1033] sm:$0xff] %vm489, %v1031
        %1035 = vst.msk [vmem:[%s1033 + $0x8] sm:$0xff] %vm489, %v1032
        %s1036 = sadd.s32 %s350, 5
        %s1037 = smul.u32 %s1036, 16
        %s1038 = sld [smem:[#allocation2 + %s1037]]
        %v1039 = vstv %s1038
        %v1040 = vmul.f32 %v1039, %v331
        %s1041 = sadd.s32 %s1037, 1
        %s1042 = sld [smem:[#allocation2 + %s1041]]
        %v1043 = vstv %s1042
        %v1044 = vmul.f32 %v1043, %v332
        %v1045 = vadd.f32 %v1040, %v1044
        %s1046 = sadd.s32 %s1037, 2
        %s1047 = sld [smem:[#allocation2 + %s1046]]
        %v1048 = vstv %s1047
        %v1049 = vmul.f32 %v1048, %v333
        %v1050 = vadd.f32 %v1045, %v1049
        %s1051 = sadd.s32 %s1037, 3
        %s1052 = sld [smem:[#allocation2 + %s1051]]
        %v1053 = vstv %s1052
        %v1054 = vmul.f32 %v1053, %v334
        %v1055 = vadd.f32 %v1050, %v1054
        %s1056 = sadd.s32 %s1037, 4
        %s1057 = sld [smem:[#allocation2 + %s1056]]
        %v1058 = vstv %s1057
        %v1059 = vmul.f32 %v1058, %v335
        %v1060 = vadd.f32 %v1055, %v1059
        %s1061 = sadd.s32 %s1037, 5
        %s1062 = sld [smem:[#allocation2 + %s1061]]
        %v1063 = vstv %s1062
        %v1064 = vmul.f32 %v1063, %v336
        %v1065 = vadd.f32 %v1060, %v1064
        %s1066 = sadd.s32 %s1037, 6
        %s1067 = sld [smem:[#allocation2 + %s1066]]
        %v1068 = vstv %s1067
        %v1069 = vmul.f32 %v1068, %v337
        %v1070 = vadd.f32 %v1065, %v1069
        %s1071 = sadd.s32 %s1037, 7
        %s1072 = sld [smem:[#allocation2 + %s1071]]
        %v1073 = vstv %s1072
        %v1074 = vmul.f32 %v1073, %v338
        %v1075 = vadd.f32 %v1070, %v1074
        %s1076 = sadd.s32 %s1037, 8
        %s1077 = sld [smem:[#allocation2 + %s1076]]
        %v1078 = vstv %s1077
        %v1079 = vmul.f32 %v1078, %v339
        %v1080 = vadd.f32 %v1075, %v1079
        %s1081 = sadd.s32 %s1037, 9
        %s1082 = sld [smem:[#allocation2 + %s1081]]
        %v1083 = vstv %s1082
        %v1084 = vmul.f32 %v1083, %v340
        %v1085 = vadd.f32 %v1080, %v1084
        %s1086 = sadd.s32 %s1037, 10
        %s1087 = sld [smem:[#allocation2 + %s1086]]
        %v1088 = vstv %s1087
        %v1089 = vmul.f32 %v1088, %v341
        %v1090 = vadd.f32 %v1085, %v1089
        %s1091 = sadd.s32 %s1037, 11
        %s1092 = sld [smem:[#allocation2 + %s1091]]
        %v1093 = vstv %s1092
        %v1094 = vmul.f32 %v1093, %v342
        %v1095 = vadd.f32 %v1090, %v1094
        %s1096 = sadd.s32 %s1037, 12
        %s1097 = sld [smem:[#allocation2 + %s1096]]
        %v1098 = vstv %s1097
        %v1099 = vmul.f32 %v1098, %v343
        %v1100 = vadd.f32 %v1095, %v1099
        %s1101 = sadd.s32 %s1037, 13
        %s1102 = sld [smem:[#allocation2 + %s1101]]
        %v1103 = vstv %s1102
        %v1104 = vmul.f32 %v1103, %v344
        %v1105 = vadd.f32 %v1100, %v1104
        %s1106 = sadd.s32 %s1037, 14
        %s1107 = sld [smem:[#allocation2 + %s1106]]
        %v1108 = vstv %s1107
        %v1109 = vmul.f32 %v1108, %v345
        %v1110 = vadd.f32 %v1105, %v1109
        %s1111 = sadd.s32 %s1037, 15
        %s1112 = sld [smem:[#allocation2 + %s1111]]
        %v1113 = vstv %s1112
        %v1114 = vmul.f32 %v1113, %v346
        %v1115 = vadd.f32 %v1110, %v1114
        %v1117 = vsel %vm430, %v1115, 0
        %1119 = vmatpush.msra.mxu0 0.0
        %1120 = vmatpush.msra.mxu0 0.0
        %1121 = vmatpush.msra.mxu0 0.0
        %1122 = vmatpush.msra.mxu0 0.0
        %1123 = vmatpush.msra.mxu0 0.0
        %1124 = vmatpush.msra.mxu0 0.0
        %1125 = vmatpush.msra.mxu0 0.0
        %1126 = vmatpush.msra.mxu0 0.0
        %1127 = vmatpush.msra.mxu0 0.0
        %1128 = vmatpush.msra.mxu0 0.0
        %1129 = vmatpush.msra.mxu0 0.0
        %1130 = vmatpush.msra.mxu0 0.0
        %1131 = vmatpush.msra.mxu0 0.0
        %1132 = vmatpush.msra.mxu0 0.0
        %1133 = vmatpush.msra.mxu0 0.0
        %1134 = vmatpush.msra.mxu0 %v349
        %1135 = vmatmul.f32.gmra.mxu0 %v1117
        %v1136 = vpop.f32.mrf.mxu0
        %v1137 = vadd.f32 0.0, %v1136
        %1138 = vdwg.mxu0
        %s1139 = sld [smem:[#allocation5 + %s1036]]
        %v1140 = vstv %s1139
        %1141 = vmatpush.msra.mxu0 0.0
        %1142 = vmatpush.msra.mxu0 0.0
        %1143 = vmatpush.msra.mxu0 0.0
        %1144 = vmatpush.msra.mxu0 0.0
        %1145 = vmatpush.msra.mxu0 0.0
        %1146 = vmatpush.msra.mxu0 0.0
        %1147 = vmatpush.msra.mxu0 0.0
        %1148 = vmatpush.msra.mxu0 0.0
        %1149 = vmatpush.msra.mxu0 0.0
        %1150 = vmatpush.msra.mxu0 0.0
        %1151 = vmatpush.msra.mxu0 0.0
        %1152 = vmatpush.msra.mxu0 0.0
        %1153 = vmatpush.msra.mxu0 0.0
        %1154 = vmatpush.msra.mxu0 0.0
        %1155 = vmatpush.msra.mxu0 0.0
        %1156 = vmatpush.msra.mxu0 %v1137
        %1157 = vmatmul.f32.gmra.mxu0 %v457
        %v1158 = vpop.f32.mrf.mxu0
        %v1159 = vadd.f32 %v1140, %v1158
        %1160 = vmatmul.f32.gmra.mxu0 %v460
        %v1161 = vpop.f32.mrf.mxu0
        %v1162 = vadd.f32 %v1140, %v1161
        %1163 = vdwg.mxu0
        %s1164 = scalar_lea.vmem %s328, 80
        %v1165 = vld [vmem:[%s1164] sm:$0xff]
        %v1166 = vld [vmem:[%s1164 + $0x8] sm:$0xff]
        %v1167 = vadd.f32 %v1159, %v1165
        %v1168 = vadd.f32 %v1162, %v1166
        %s1169 = scalar_lea.vmem %s313, 80 [#allocation7]
        %1170 = vst.msk [vmem:[%s1169] sm:$0xff] %vm489, %v1167
        %1171 = vst.msk [vmem:[%s1169 + $0x8] sm:$0xff] %vm489, %v1168
        %s1172 = sadd.s32 %s350, 6
        %s1173 = smul.u32 %s1172, 16
        %s1174 = sld [smem:[#allocation2 + %s1173]]
        %v1175 = vstv %s1174
        %v1176 = vmul.f32 %v1175, %v331
        %s1177 = sadd.s32 %s1173, 1
        %s1178 = sld [smem:[#allocation2 + %s1177]]
        %v1179 = vstv %s1178
        %v1180 = vmul.f32 %v1179, %v332
        %v1181 = vadd.f32 %v1176, %v1180
        %s1182 = sadd.s32 %s1173, 2
        %s1183 = sld [smem:[#allocation2 + %s1182]]
        %v1184 = vstv %s1183
        %v1185 = vmul.f32 %v1184, %v333
        %v1186 = vadd.f32 %v1181, %v1185
        %s1187 = sadd.s32 %s1173, 3
        %s1188 = sld [smem:[#allocation2 + %s1187]]
        %v1189 = vstv %s1188
        %v1190 = vmul.f32 %v1189, %v334
        %v1191 = vadd.f32 %v1186, %v1190
        %s1192 = sadd.s32 %s1173, 4
        %s1193 = sld [smem:[#allocation2 + %s1192]]
        %v1194 = vstv %s1193
        %v1195 = vmul.f32 %v1194, %v335
        %v1196 = vadd.f32 %v1191, %v1195
        %s1197 = sadd.s32 %s1173, 5
        %s1198 = sld [smem:[#allocation2 + %s1197]]
        %v1199 = vstv %s1198
        %v1200 = vmul.f32 %v1199, %v336
        %v1201 = vadd.f32 %v1196, %v1200
        %s1202 = sadd.s32 %s1173, 6
        %s1203 = sld [smem:[#allocation2 + %s1202]]
        %v1204 = vstv %s1203
        %v1205 = vmul.f32 %v1204, %v337
        %v1206 = vadd.f32 %v1201, %v1205
        %s1207 = sadd.s32 %s1173, 7
        %s1208 = sld [smem:[#allocation2 + %s1207]]
        %v1209 = vstv %s1208
        %v1210 = vmul.f32 %v1209, %v338
        %v1211 = vadd.f32 %v1206, %v1210
        %s1212 = sadd.s32 %s1173, 8
        %s1213 = sld [smem:[#allocation2 + %s1212]]
        %v1214 = vstv %s1213
        %v1215 = vmul.f32 %v1214, %v339
        %v1216 = vadd.f32 %v1211, %v1215
        %s1217 = sadd.s32 %s1173, 9
        %s1218 = sld [smem:[#allocation2 + %s1217]]
        %v1219 = vstv %s1218
        %v1220 = vmul.f32 %v1219, %v340
        %v1221 = vadd.f32 %v1216, %v1220
        %s1222 = sadd.s32 %s1173, 10
        %s1223 = sld [smem:[#allocation2 + %s1222]]
        %v1224 = vstv %s1223
        %v1225 = vmul.f32 %v1224, %v341
        %v1226 = vadd.f32 %v1221, %v1225
        %s1227 = sadd.s32 %s1173, 11
        %s1228 = sld [smem:[#allocation2 + %s1227]]
        %v1229 = vstv %s1228
        %v1230 = vmul.f32 %v1229, %v342
        %v1231 = vadd.f32 %v1226, %v1230
        %s1232 = sadd.s32 %s1173, 12
        %s1233 = sld [smem:[#allocation2 + %s1232]]
        %v1234 = vstv %s1233
        %v1235 = vmul.f32 %v1234, %v343
        %v1236 = vadd.f32 %v1231, %v1235
        %s1237 = sadd.s32 %s1173, 13
        %s1238 = sld [smem:[#allocation2 + %s1237]]
        %v1239 = vstv %s1238
        %v1240 = vmul.f32 %v1239, %v344
        %v1241 = vadd.f32 %v1236, %v1240
        %s1242 = sadd.s32 %s1173, 14
        %s1243 = sld [smem:[#allocation2 + %s1242]]
        %v1244 = vstv %s1243
        %v1245 = vmul.f32 %v1244, %v345
        %v1246 = vadd.f32 %v1241, %v1245
        %s1247 = sadd.s32 %s1173, 15
        %s1248 = sld [smem:[#allocation2 + %s1247]]
        %v1249 = vstv %s1248
        %v1250 = vmul.f32 %v1249, %v346
        %v1251 = vadd.f32 %v1246, %v1250
        %v1253 = vsel %vm430, %v1251, 0
        %1255 = vmatpush.msra.mxu0 0.0
        %1256 = vmatpush.msra.mxu0 0.0
        %1257 = vmatpush.msra.mxu0 0.0
        %1258 = vmatpush.msra.mxu0 0.0
        %1259 = vmatpush.msra.mxu0 0.0
        %1260 = vmatpush.msra.mxu0 0.0
        %1261 = vmatpush.msra.mxu0 0.0
        %1262 = vmatpush.msra.mxu0 0.0
        %1263 = vmatpush.msra.mxu0 0.0
        %1264 = vmatpush.msra.mxu0 0.0
        %1265 = vmatpush.msra.mxu0 0.0
        %1266 = vmatpush.msra.mxu0 0.0
        %1267 = vmatpush.msra.mxu0 0.0
        %1268 = vmatpush.msra.mxu0 0.0
        %1269 = vmatpush.msra.mxu0 0.0
        %1270 = vmatpush.msra.mxu0 %v349
        %1271 = vmatmul.f32.gmra.mxu0 %v1253
        %v1272 = vpop.f32.mrf.mxu0
        %v1273 = vadd.f32 0.0, %v1272
        %1274 = vdwg.mxu0
        %s1275 = sld [smem:[#allocation5 + %s1172]]
        %v1276 = vstv %s1275
        %1277 = vmatpush.msra.mxu0 0.0
        %1278 = vmatpush.msra.mxu0 0.0
        %1279 = vmatpush.msra.mxu0 0.0
        %1280 = vmatpush.msra.mxu0 0.0
        %1281 = vmatpush.msra.mxu0 0.0
        %1282 = vmatpush.msra.mxu0 0.0
        %1283 = vmatpush.msra.mxu0 0.0
        %1284 = vmatpush.msra.mxu0 0.0
        %1285 = vmatpush.msra.mxu0 0.0
        %1286 = vmatpush.msra.mxu0 0.0
        %1287 = vmatpush.msra.mxu0 0.0
        %1288 = vmatpush.msra.mxu0 0.0
        %1289 = vmatpush.msra.mxu0 0.0
        %1290 = vmatpush.msra.mxu0 0.0
        %1291 = vmatpush.msra.mxu0 0.0
        %1292 = vmatpush.msra.mxu0 %v1273
        %1293 = vmatmul.f32.gmra.mxu0 %v457
        %v1294 = vpop.f32.mrf.mxu0
        %v1295 = vadd.f32 %v1276, %v1294
        %1296 = vmatmul.f32.gmra.mxu0 %v460
        %v1297 = vpop.f32.mrf.mxu0
        %v1298 = vadd.f32 %v1276, %v1297
        %1299 = vdwg.mxu0
        %s1300 = scalar_lea.vmem %s328, 96
        %v1301 = vld [vmem:[%s1300] sm:$0xff]
        %v1302 = vld [vmem:[%s1300 + $0x8] sm:$0xff]
        %v1303 = vadd.f32 %v1295, %v1301
        %v1304 = vadd.f32 %v1298, %v1302
        %s1305 = scalar_lea.vmem %s313, 96 [#allocation7]
        %1306 = vst.msk [vmem:[%s1305] sm:$0xff] %vm489, %v1303
        %1307 = vst.msk [vmem:[%s1305 + $0x8] sm:$0xff] %vm489, %v1304
        %s1308 = sadd.s32 %s350, 7
        %s1309 = smul.u32 %s1308, 16
        %s1310 = sld [smem:[#allocation2 + %s1309]]
        %v1311 = vstv %s1310
        %v1312 = vmul.f32 %v1311, %v331
        %s1313 = sadd.s32 %s1309, 1
        %s1314 = sld [smem:[#allocation2 + %s1313]]
        %v1315 = vstv %s1314
        %v1316 = vmul.f32 %v1315, %v332
        %v1317 = vadd.f32 %v1312, %v1316
        %s1318 = sadd.s32 %s1309, 2
        %s1319 = sld [smem:[#allocation2 + %s1318]]
        %v1320 = vstv %s1319
        %v1321 = vmul.f32 %v1320, %v333
        %v1322 = vadd.f32 %v1317, %v1321
        %s1323 = sadd.s32 %s1309, 3
        %s1324 = sld [smem:[#allocation2 + %s1323]]
        %v1325 = vstv %s1324
        %v1326 = vmul.f32 %v1325, %v334
        %v1327 = vadd.f32 %v1322, %v1326
        %s1328 = sadd.s32 %s1309, 4
        %s1329 = sld [smem:[#allocation2 + %s1328]]
        %v1330 = vstv %s1329
        %v1331 = vmul.f32 %v1330, %v335
        %v1332 = vadd.f32 %v1327, %v1331
        %s1333 = sadd.s32 %s1309, 5
        %s1334 = sld [smem:[#allocation2 + %s1333]]
        %v1335 = vstv %s1334
        %v1336 = vmul.f32 %v1335, %v336
        %v1337 = vadd.f32 %v1332, %v1336
        %s1338 = sadd.s32 %s1309, 6
        %s1339 = sld [smem:[#allocation2 + %s1338]]
        %v1340 = vstv %s1339
        %v1341 = vmul.f32 %v1340, %v337
        %v1342 = vadd.f32 %v1337, %v1341
        %s1343 = sadd.s32 %s1309, 7
        %s1344 = sld [smem:[#allocation2 + %s1343]]
        %v1345 = vstv %s1344
        %v1346 = vmul.f32 %v1345, %v338
        %v1347 = vadd.f32 %v1342, %v1346
        %s1348 = sadd.s32 %s1309, 8
        %s1349 = sld [smem:[#allocation2 + %s1348]]
        %v1350 = vstv %s1349
        %v1351 = vmul.f32 %v1350, %v339
        %v1352 = vadd.f32 %v1347, %v1351
        %s1353 = sadd.s32 %s1309, 9
        %s1354 = sld [smem:[#allocation2 + %s1353]]
        %v1355 = vstv %s1354
        %v1356 = vmul.f32 %v1355, %v340
        %v1357 = vadd.f32 %v1352, %v1356
        %s1358 = sadd.s32 %s1309, 10
        %s1359 = sld [smem:[#allocation2 + %s1358]]
        %v1360 = vstv %s1359
        %v1361 = vmul.f32 %v1360, %v341
        %v1362 = vadd.f32 %v1357, %v1361
        %s1363 = sadd.s32 %s1309, 11
        %s1364 = sld [smem:[#allocation2 + %s1363]]
        %v1365 = vstv %s1364
        %v1366 = vmul.f32 %v1365, %v342
        %v1367 = vadd.f32 %v1362, %v1366
        %s1368 = sadd.s32 %s1309, 12
        %s1369 = sld [smem:[#allocation2 + %s1368]]
        %v1370 = vstv %s1369
        %v1371 = vmul.f32 %v1370, %v343
        %v1372 = vadd.f32 %v1367, %v1371
        %s1373 = sadd.s32 %s1309, 13
        %s1374 = sld [smem:[#allocation2 + %s1373]]
        %v1375 = vstv %s1374
        %v1376 = vmul.f32 %v1375, %v344
        %v1377 = vadd.f32 %v1372, %v1376
        %s1378 = sadd.s32 %s1309, 14
        %s1379 = sld [smem:[#allocation2 + %s1378]]
        %v1380 = vstv %s1379
        %v1381 = vmul.f32 %v1380, %v345
        %v1382 = vadd.f32 %v1377, %v1381
        %s1383 = sadd.s32 %s1309, 15
        %s1384 = sld [smem:[#allocation2 + %s1383]]
        %v1385 = vstv %s1384
        %v1386 = vmul.f32 %v1385, %v346
        %v1387 = vadd.f32 %v1382, %v1386
        %v1389 = vsel %vm430, %v1387, 0
        %1391 = vmatpush.msra.mxu0 0.0
        %1392 = vmatpush.msra.mxu0 0.0
        %1393 = vmatpush.msra.mxu0 0.0
        %1394 = vmatpush.msra.mxu0 0.0
        %1395 = vmatpush.msra.mxu0 0.0
        %1396 = vmatpush.msra.mxu0 0.0
        %1397 = vmatpush.msra.mxu0 0.0
        %1398 = vmatpush.msra.mxu0 0.0
        %1399 = vmatpush.msra.mxu0 0.0
        %1400 = vmatpush.msra.mxu0 0.0
        %1401 = vmatpush.msra.mxu0 0.0
        %1402 = vmatpush.msra.mxu0 0.0
        %1403 = vmatpush.msra.mxu0 0.0
        %1404 = vmatpush.msra.mxu0 0.0
        %1405 = vmatpush.msra.mxu0 0.0
        %1406 = vmatpush.msra.mxu0 %v349
        %1407 = vmatmul.f32.gmra.mxu0 %v1389
        %v1408 = vpop.f32.mrf.mxu0
        %v1409 = vadd.f32 0.0, %v1408
        %1410 = vdwg.mxu0
        %s1411 = sld [smem:[#allocation5 + %s1308]]
        %v1412 = vstv %s1411
        %1413 = vmatpush.msra.mxu0 0.0
        %1414 = vmatpush.msra.mxu0 0.0
        %1415 = vmatpush.msra.mxu0 0.0
        %1416 = vmatpush.msra.mxu0 0.0
        %1417 = vmatpush.msra.mxu0 0.0
        %1418 = vmatpush.msra.mxu0 0.0
        %1419 = vmatpush.msra.mxu0 0.0
        %1420 = vmatpush.msra.mxu0 0.0
        %1421 = vmatpush.msra.mxu0 0.0
        %1422 = vmatpush.msra.mxu0 0.0
        %1423 = vmatpush.msra.mxu0 0.0
        %1424 = vmatpush.msra.mxu0 0.0
        %1425 = vmatpush.msra.mxu0 0.0
        %1426 = vmatpush.msra.mxu0 0.0
        %1427 = vmatpush.msra.mxu0 0.0
        %1428 = vmatpush.msra.mxu0 %v1409
        %1429 = vmatmul.f32.gmra.mxu0 %v457
        %v1430 = vpop.f32.mrf.mxu0
        %v1431 = vadd.f32 %v1412, %v1430
        %1432 = vmatmul.f32.gmra.mxu0 %v460
        %v1433 = vpop.f32.mrf.mxu0
        %v1434 = vadd.f32 %v1412, %v1433
        %1435 = vdwg.mxu0
        %s1436 = scalar_lea.vmem %s328, 112
        %v1437 = vld [vmem:[%s1436] sm:$0xff]
        %v1438 = vld [vmem:[%s1436 + $0x8] sm:$0xff]
        %v1439 = vadd.f32 %v1431, %v1437
        %v1440 = vadd.f32 %v1434, %v1438
        %s1441 = scalar_lea.vmem %s313, 112 [#allocation7]
        %1442 = vst.msk [vmem:[%s1441] sm:$0xff] %vm489, %v1439
        %1443 = vst.msk [vmem:[%s1441 + $0x8] sm:$0xff] %vm489, %v1440
        %s1444 = sand.u32 %s182, 1
        %s1445 = scalar_lea.sflag [#allocation3], %s1444
        %s1446 = sand.u32 %s182, 1
        %s1447 = smul.addr %s1446, 128
        %s1448 = scalar_lea.vmem [#allocation7], %s1447
        // Predicated region
        $region53: #{upsampling_add.1} parent=43 // pred_check
          %p1449 = pneg %p192
        $region54: #{upsampling_add.1} parent=43 // pred_check_branch
          %1451 = sbr.rel (%p1449) target = $region56
        $region55: #{upsampling_add.1} parent=43 // pred_region
          %s1452 = smul.u32 8, %s27
          %1454 = vsyncadd %s1445, 0
          %s1455 = smul.addr %s1452, 2
          %s1456 = smul.addr %s26, 16
          %s1457 = sadd.s32 %s1455, %s1456
          %s1458 = smul.addr %s1457, 8
          %s1459 = scalar_lea.hbm %s6, %s1458
          %s1460 = sshll.u32 %s1448, 4
          %s1461 = int_to_ptr.vmem [resolvable:$true] %s1460
          %s1462 = sshll.u32 %s1459, 4
          %s1463 = int_to_ptr.hbm [resolvable:$true] %s1462
          %1468 = dma.vmem_to_hbm [thread:$0]  %s1461, 2048, %s1463, %s1445, 128, 128, 8
        $region56: #{upsampling_add.1} parent=43 // pred_fallthru
          _
      $region44: #{upsampling_add.1} parent=5 // pred_fallthru
        _
      %p1469 = scmp.le.s32.totalorder 2, %s17
      // Predicated region
      $region57: #{upsampling_add.1} parent=5 // pred_check
        %p1470 = pneg %p1469
      $region58: #{upsampling_add.1} parent=5 // pred_check_branch
        %1472 = sbr.rel (%p1470) target = $region60
      $region59: #{upsampling_add.1} parent=5 // pred_region
        %s1473 = ssub.s32 %s17, 2
        // Predicated region
        $region61: #{upsampling_add.1} parent=59 // pred_check
          %p1474 = pneg %p198
        $region62: #{upsampling_add.1} parent=59 // pred_check_branch
          %1476 = sbr.rel (%p1474) target = $region64
        $region63: #{upsampling_add.1} parent=59 // pred_region
          %s1477 = sand.u32 %s183, 1
          %s1478 = scalar_lea.sflag [#allocation3], %s1477
          %s1479 = sand.u32 %s183, 1
          %s1480 = smul.addr %s1479, 128
          %s1481 = scalar_lea.vmem [#allocation7], %s1480
          %1483 = dma.done %s1478, 2048
        $region64: #{upsampling_add.1} parent=59 // pred_fallthru
          _
      $region60: #{upsampling_add.1} parent=5 // pred_fallthru
        _
    $region6: #{upsampling_add.1} parent=1 // loop_footer
      %s21 = sadd.s32 1, %s17
    $region7: #{upsampling_add.1} parent=1 // loop_footer_branch
      %16 = sbr.rel target = $region3
    $region8: #{upsampling_add.1} parent=1 // loop_exit
      _
    %1484 = vsyncpa [#allocation3], 1
    %s1485 = scalar_lea.sflag [#allocation3], 1
    %1486 = vsyncpa %s1485, 1
    %1487 = vsyncpa [#allocation4], 1
    %s1488 = scalar_lea.sflag [#allocation4], 1
    %1489 = vsyncpa %s1488, 1
    %1490 = vsyncpa [#allocation6], 1

</llo_original>
